<compile_context>
chip_gen: v7x
topology: tpu7x:2x2x1
jax: 0.10.0
libtpu: 0.0.40
codegen_flags: <defaults>
</compile_context>

<pallas_src>
import functools

import numpy as np

import jax
import jax.numpy as jnp
from jax.experimental import pallas as pl
from jax.experimental.pallas import tpu as pltpu

F32 = jnp.float32


# ----------------------------------------------------------------------------
# Constant helpers built once on the host (all tiny).
# ----------------------------------------------------------------------------
def _boundary_mask(B, T, d):
    """mask[0, b*T + t] = 1 iff 0 <= t + d < T  (valid 'same'-conv source)."""
    t = np.arange(T)
    valid = ((t + d) >= 0) & ((t + d) < T)
    m = np.tile(valid.astype(np.float32), B).reshape(1, B * T)
    return jnp.asarray(m)


def _pool_matrices(B, T):
    """P[n, b] = 1 iff column n belongs to sample b (and its transpose)."""
    P = np.zeros((B * T, B), np.float32)
    for b in range(B):
        P[b * T:(b + 1) * T, b] = 1.0
    return jnp.asarray(P), jnp.asarray(P.T)


def _needed_shift_offsets(config):
    ks = [config["c1"][0], config["c2"][0], config["c3"][0]]
    for name in ("b1", "b2", "b3", "b4", "b5"):
        ks.append(config[name][1])
    ds = set()
    for k in ks:
        assert k % 2 == 1, "only odd kernel sizes give 'same' padding here"
        pad = (k - 1) // 2
        for d in range(-pad, pad + 1):
            if d != 0:
                ds.add(d)
    return tuple(sorted(ds))


# ----------------------------------------------------------------------------
# The single fused kernel: whole encoder + attention head, no grid.
# refs = [x, masks..., P, Pt, weights... (consumed in `ops` order),
#         logits_out, attn_out]
# ----------------------------------------------------------------------------
def _fused_kernel(*refs, ops, mask_ds, B, T):
    n_mask = len(mask_ds)
    x_ref = refs[0]
    mask_refs = refs[1:1 + n_mask]
    p_ref = refs[1 + n_mask]
    pt_ref = refs[2 + n_mask]
    w_refs = refs[3 + n_mask:-2]
    logits_ref, attn_ref = refs[-2], refs[-1]

    masks = {d: mask_refs[i][...] for i, d in enumerate(mask_ds)}
    wit = iter(w_refs)

    def nxt():
        return next(wit)[...]

    h = x_ref[...]                      # (C_in, B*T) f32, batch-major columns
    x_res = None

    for op in ops:
        kind = op[0]
        if kind == "tsc":
            _, k, relu = op
            dw_w, eff_w, eff_b = nxt(), nxt(), nxt()
            pad = (k - 1) // 2
            # Depthwise 'same' conv: center tap + masked lane-rolled taps.
            acc = dw_w[:, pad:pad + 1] * h
            for j in range(k):
                d = j - pad
                if d == 0:
                    continue
                shifted = jnp.roll(h, -d, axis=1) * masks[d]
                acc = acc + dw_w[:, j:j + 1] * shifted
            # Pointwise 1x1 conv with BatchNorm + biases folded in (MXU).
            z = jnp.dot(eff_w, acc, preferred_element_type=F32) + eff_b
            h = jnp.maximum(z, 0.0) if relu else z
        elif kind == "res_save":
            # Residual path of TSCBlock: 1x1 conv + BN of the block input,
            # computed from the activation already resident in VMEM.
            eff_w, eff_b = nxt(), nxt()
            x_res = jnp.dot(eff_w, h, preferred_element_type=F32) + eff_b
        elif kind == "res_add":
            h = jnp.maximum(h + x_res, 0.0)          # ReLU(x + x_res)
        else:  # "head": Linear -> tanh -> Linear -> softmax_T -> pool -> Linear
            w1, b1, w2, wo, bo = nxt(), nxt(), nxt(), nxt(), nxt()
            P = p_ref[...]                                             # (B*T, B)
            Pt = pt_ref[...]                                           # (B, B*T)
            s = jnp.tanh(jnp.dot(w1, h, preferred_element_type=F32) + b1)  # (A,B*T)
            score = jnp.sum(w2 * s, axis=0, keepdims=True)             # (1, B*T)
            # Per-sample softmax over T, stabilized with the global max
            # (shift-invariance makes any constant offset valid).
            m = jnp.max(score, axis=1, keepdims=True)                  # (1, 1)
            e = jnp.exp(score - m)                                     # (1, B*T)
            denom = jnp.dot(e, P, preferred_element_type=F32)          # (1, B)
            denom_flat = jnp.dot(denom, Pt, preferred_element_type=F32)  # (1,B*T)
            attn = e / denom_flat                                      # (1, B*T)
            attn_ref[...] = attn
            # Attention pooling + output projection, all samples at once.
            ctx = jnp.dot(h * attn, P, preferred_element_type=F32)     # (H, B)
            logits_ref[...] = (jnp.dot(wo, ctx, preferred_element_type=F32)
                               + bo)                                   # (NC, B)


# ----------------------------------------------------------------------------
# Parameter folding (eval-mode BN + biases -> effective pointwise weight/bias)
# ----------------------------------------------------------------------------
def fold_tsc(p):
    eff_w = p["bn_scale"] * p["pw_w"]
    eff_b = (p["bn_scale"] * (jnp.dot(p["pw_w"], p["dw_b"]) + p["pw_b"])
             + p["bn_shift"])
    return [p["dw_w"], eff_w, eff_b]


def fold_res(p):
    eff_w = p["bn_scale"] * p["pw_w"]
    eff_b = p["bn_scale"] * p["pw_b"] + p["bn_shift"]
    return [eff_w, eff_b]


def plan_and_flatten(params, config):
    """Static op plan + flat weight list, traversed identically in the kernel."""
    ops, flat = [], []

    def add_tsc(p, k, relu):
        flat.extend(fold_tsc(p))
        ops.append(("tsc", k, relu))

    add_tsc(params["c1"], config["c1"][0], True)
    for name in ("b1", "b2", "b3", "b4", "b5"):
        nb, k, _, _ = config[name]
        bp = params[name]
        flat.extend(fold_res(bp["res"]))
        ops.append(("res_save",))
        for li in range(nb):
            add_tsc(bp["layers"][li], k, relu=(li < nb - 1))  # last TSC: no ReLU
        ops.append(("res_add",))
    add_tsc(params["c2"], config["c2"][0], True)
    add_tsc(params["c3"], config["c3"][0], True)

    hp = params["head"]
    flat.extend([hp["w1"], hp["b1"], hp["w2"], hp["wo"], hp["bo"]])
    ops.append(("head",))
    return tuple(ops), flat


def make_classification_net(params, config, B, T):
    ops, flat = plan_and_flatten(params, config)
    mask_ds = _needed_shift_offsets(config)
    masks = [_boundary_mask(B, T, d) for d in mask_ds]
    P, Pt = _pool_matrices(B, T)
    NC = config["n_classes"]

    kernel = functools.partial(_fused_kernel, ops=ops, mask_ds=mask_ds, B=B, T=T)

    n_inputs = 1 + len(masks) + 2 + len(flat)
    vmem_spec = pl.BlockSpec(memory_space=pltpu.MemorySpace.VMEM)

    @jax.jit
    def forward(x):                      # x: (B, C_in, T)
        cin = x.shape[1]
        # lane-dense, batch-folded layout: (C_in, B*T), batch-major columns
        x2 = jnp.transpose(x, (1, 0, 2)).reshape(cin, B * T)
        logits_cb, attn_flat = pl.pallas_call(
            kernel,
            out_shape=(
                jax.ShapeDtypeStruct((NC, B), F32),
                jax.ShapeDtypeStruct((1, B * T), F32),
            ),
            in_specs=[vmem_spec] * n_inputs,
            out_specs=(vmem_spec, vmem_spec),
        )(x2, *masks, P, Pt, *flat)
        return logits_cb.T, attn_flat.reshape(B, T)

    return forward


# ----------------------------------------------------------------------------
# Deterministic synthetic parameters (no checkpoint load)
# ----------------------------------------------------------------------------
def init_tsc(key, k, cin, cout):
    ks = jax.random.split(key, 8)
    eps = 1e-5
    dw_w = jax.random.normal(ks[0], (cin, k), F32) / jnp.sqrt(float(k))
    dw_b = 0.05 * jax.random.normal(ks[1], (cin, 1), F32)
    pw_w = jax.random.normal(ks[2], (cout, cin), F32) / jnp.sqrt(float(cin))
    pw_b = 0.05 * jax.random.normal(ks[3], (cout, 1), F32)
    gamma = 1.0 + 0.1 * jax.random.normal(ks[4], (cout, 1), F32)
    beta = 0.05 * jax.random.normal(ks[5], (cout, 1), F32)
    r_mean = 0.05 * jax.random.normal(ks[6], (cout, 1), F32)
    r_var = 0.5 + jax.random.uniform(ks[7], (cout, 1), F32)
    scale = gamma / jnp.sqrt(r_var + eps)
    shift = beta - r_mean * scale
    return dict(dw_w=dw_w, dw_b=dw_b, pw_w=pw_w, pw_b=pw_b,
                bn_scale=scale, bn_shift=shift)


def init_res(key, cin, cout):
    p = init_tsc(key, 1, cin, cout)
    return dict(pw_w=p["pw_w"], pw_b=p["pw_b"],
                bn_scale=p["bn_scale"], bn_shift=p["bn_shift"])


def init_tsc_block(key, n_blocks, k, cin, cout):
    ks = jax.random.split(key, n_blocks + 1)
    layers = [init_tsc(ks[0], k, cin, cout)]
    for i in range(1, n_blocks):
        layers.append(init_tsc(ks[i], k, cout, cout))
    res = init_res(ks[n_blocks], cin, cout)
    return dict(layers=layers, res=res)


def init_head(key, hidden, attn, n_classes):
    ks = jax.random.split(key, 5)
    w1 = jax.random.normal(ks[0], (attn, hidden), F32) / jnp.sqrt(float(hidden))
    b1 = 0.05 * jax.random.normal(ks[1], (attn, 1), F32)
    w2 = jax.random.normal(ks[2], (attn, 1), F32) / jnp.sqrt(float(attn))
    wo = jax.random.normal(ks[3], (n_classes, hidden), F32) / jnp.sqrt(float(hidden))
    bo = 0.05 * jax.random.normal(ks[4], (n_classes, 1), F32)
    return dict(w1=w1, b1=b1, w2=w2, wo=wo, bo=bo)


def init_params(key, config):
    ks = jax.random.split(key, 9)
    params = {"c1": init_tsc(ks[0], *config["c1"])}
    for i, name in enumerate(["b1", "b2", "b3", "b4", "b5"]):
        nb, k, cin, cout = config[name]
        params[name] = init_tsc_block(ks[1 + i], nb, k, cin, cout)
    params["c2"] = init_tsc(ks[6], *config["c2"])
    params["c3"] = init_tsc(ks[7], *config["c3"])
    params["head"] = init_head(ks[8], config["hidden_size"], config["attn_size"],
                               config["n_classes"])
    return params


# ----------------------------------------------------------------------------
# Pure-JAX reference (mirrors ClassificationNet.forward, eval-mode BN)
# ----------------------------------------------------------------------------
_HI = jax.lax.Precision.HIGHEST


def _ref_tsc(x, p, k, relu):
    B, C, T = x.shape
    pad = (k - 1) // 2
    xp = jnp.pad(x, ((0, 0), (0, 0), (pad, pad)))
    acc = jnp.zeros((B, C, T), F32)
    for j in range(k):
        acc = acc + p["dw_w"][None, :, j:j + 1] * xp[:, :, j:j + T]
    acc = acc + p["dw_b"][None]
    z = jnp.einsum("oc,bct->bot", p["pw_w"], acc, precision=_HI) + p["pw_b"][None]
    z = z * p["bn_scale"][None] + p["bn_shift"][None]
    return jnp.maximum(z, 0.0) if relu else z


def _ref_res(x, p):
    z = jnp.einsum("oc,bct->bot", p["pw_w"], x, precision=_HI) + p["pw_b"][None]
    return z * p["bn_scale"][None] + p["bn_shift"][None]


def reference_forward(x, params, config):
    h = _ref_tsc(x, params["c1"], config["c1"][0], True)
    for name in ("b1", "b2", "b3", "b4", "b5"):
        nb, k, _, _ = config[name]
        bp = params[name]
        x_res = _ref_res(h, bp["res"])
        g = h
        for li in range(nb):
            g = _ref_tsc(g, bp["layers"][li], k, relu=(li < nb - 1))
        h = jnp.maximum(g + x_res, 0.0)
    h = _ref_tsc(h, params["c2"], config["c2"][0], True)
    h = _ref_tsc(h, params["c3"], config["c3"][0], True)

    hp = params["head"]
    ht = jnp.transpose(h, (0, 2, 1))                                   # (B, T, H)
    s = jnp.tanh(jnp.einsum("ah,bth->bta", hp["w1"], ht, precision=_HI)
                 + hp["b1"][:, 0][None, None, :])
    score = jnp.einsum("bta,a->bt", s, hp["w2"][:, 0], precision=_HI)  # (B, T)
    attn = jax.nn.softmax(score, axis=-1)                              # (B, T)
    ctx = jnp.einsum("bt,bth->bh", attn, ht, precision=_HI)            # (B, H)
    logits = (jnp.einsum("oh,bh->bo", hp["wo"], ctx, precision=_HI)
              + hp["bo"][:, 0][None, :])
    return logits, attn


# ----------------------------------------------------------------------------
if __name__ == "__main__":
    # (kernel_size, in_ch, out_ch) for c*; (n_blocks, k, in_ch, out_ch) for b*
    config = {
        "c1": (3, 4, 16),
        "b1": (2, 3, 16, 16),
        "b2": (2, 3, 16, 16),
        "b3": (2, 3, 16, 16),
        "b4": (2, 3, 16, 16),
        "b5": (2, 3, 16, 16),
        "c2": (3, 16, 24),
        "c3": (1, 24, 32),
        "hidden_size": 32,
        "attn_size": 16,
        "n_classes": 8,
    }

    key = jax.random.PRNGKey(0)
    k_params, k_x = jax.random.split(key)
    params = init_params(k_params, config)

    B, C, T = 2, 4, 16                       # input: (batch, channels, time)
    x = jax.random.normal(k_x, (B, C, T), F32)

    forward = make_classification_net(params, config, B, T)
    logits, attn = forward(x)
    logits = jax.block_until_ready(logits)
    attn = jax.block_until_ready(attn)

    ref_logits, ref_attn = reference_forward(x, params, config)

    assert logits.shape == (B, config["n_classes"])
    assert attn.shape == (B, T)
    assert bool(jnp.all(jnp.isfinite(logits)))
    assert bool(jnp.all(jnp.isfinite(attn)))
    # attention weights sum to 1 over the time axis (softmax dim=1)
    assert bool(jnp.allclose(jnp.sum(attn, axis=-1), 1.0, atol=1e-5))
    # fused kernel matches the pure-JAX reference forward pass
    assert bool(jnp.allclose(logits, ref_logits, rtol=2e-2, atol=2e-2))
    assert bool(jnp.allclose(attn, ref_attn, rtol=2e-2, atol=2e-2))

    print("KERNEL_OK")
</pallas_src>

<mosaic_0001>
module attributes {stable_mosaic.version = 11 : i64} {
  func.func @_fused_kernel(%arg0: memref<4x32xf32, #tpu.memory_space<vmem>>, %arg1: memref<1x32xf32, #tpu.memory_space<vmem>>, %arg2: memref<1x32xf32, #tpu.memory_space<vmem>>, %arg3: memref<32x2xf32, #tpu.memory_space<vmem>>, %arg4: memref<2x32xf32, #tpu.memory_space<vmem>>, %arg5: memref<4x3xf32, #tpu.memory_space<vmem>>, %arg6: memref<16x4xf32, #tpu.memory_space<vmem>>, %arg7: memref<16x1xf32, #tpu.memory_space<vmem>>, %arg8: memref<16x16xf32, #tpu.memory_space<vmem>>, %arg9: memref<16x1xf32, #tpu.memory_space<vmem>>, %arg10: memref<16x3xf32, #tpu.memory_space<vmem>>, %arg11: memref<16x16xf32, #tpu.memory_space<vmem>>, %arg12: memref<16x1xf32, #tpu.memory_space<vmem>>, %arg13: memref<16x3xf32, #tpu.memory_space<vmem>>, %arg14: memref<16x16xf32, #tpu.memory_space<vmem>>, %arg15: memref<16x1xf32, #tpu.memory_space<vmem>>, %arg16: memref<16x16xf32, #tpu.memory_space<vmem>>, %arg17: memref<16x1xf32, #tpu.memory_space<vmem>>, %arg18: memref<16x3xf32, #tpu.memory_space<vmem>>, %arg19: memref<16x16xf32, #tpu.memory_space<vmem>>, %arg20: memref<16x1xf32, #tpu.memory_space<vmem>>, %arg21: memref<16x3xf32, #tpu.memory_space<vmem>>, %arg22: memref<16x16xf32, #tpu.memory_space<vmem>>, %arg23: memref<16x1xf32, #tpu.memory_space<vmem>>, %arg24: memref<16x16xf32, #tpu.memory_space<vmem>>, %arg25: memref<16x1xf32, #tpu.memory_space<vmem>>, %arg26: memref<16x3xf32, #tpu.memory_space<vmem>>, %arg27: memref<16x16xf32, #tpu.memory_space<vmem>>, %arg28: memref<16x1xf32, #tpu.memory_space<vmem>>, %arg29: memref<16x3xf32, #tpu.memory_space<vmem>>, %arg30: memref<16x16xf32, #tpu.memory_space<vmem>>, %arg31: memref<16x1xf32, #tpu.memory_space<vmem>>, %arg32: memref<16x16xf32, #tpu.memory_space<vmem>>, %arg33: memref<16x1xf32, #tpu.memory_space<vmem>>, %arg34: memref<16x3xf32, #tpu.memory_space<vmem>>, %arg35: memref<16x16xf32, #tpu.memory_space<vmem>>, %arg36: memref<16x1xf32, #tpu.memory_space<vmem>>, %arg37: memref<16x3xf32, #tpu.memory_space<vmem>>, %arg38: memref<16x16xf32, #tpu.memory_space<vmem>>, %arg39: memref<16x1xf32, #tpu.memory_space<vmem>>, %arg40: memref<16x16xf32, #tpu.memory_space<vmem>>, %arg41: memref<16x1xf32, #tpu.memory_space<vmem>>, %arg42: memref<16x3xf32, #tpu.memory_space<vmem>>, %arg43: memref<16x16xf32, #tpu.memory_space<vmem>>, %arg44: memref<16x1xf32, #tpu.memory_space<vmem>>, %arg45: memref<16x3xf32, #tpu.memory_space<vmem>>, %arg46: memref<16x16xf32, #tpu.memory_space<vmem>>, %arg47: memref<16x1xf32, #tpu.memory_space<vmem>>, %arg48: memref<16x3xf32, #tpu.memory_space<vmem>>, %arg49: memref<24x16xf32, #tpu.memory_space<vmem>>, %arg50: memref<24x1xf32, #tpu.memory_space<vmem>>, %arg51: memref<24x1xf32, #tpu.memory_space<vmem>>, %arg52: memref<32x24xf32, #tpu.memory_space<vmem>>, %arg53: memref<32x1xf32, #tpu.memory_space<vmem>>, %arg54: memref<16x32xf32, #tpu.memory_space<vmem>>, %arg55: memref<16x1xf32, #tpu.memory_space<vmem>>, %arg56: memref<16x1xf32, #tpu.memory_space<vmem>>, %arg57: memref<8x32xf32, #tpu.memory_space<vmem>>, %arg58: memref<8x1xf32, #tpu.memory_space<vmem>>, %arg59: memref<8x2xf32, #tpu.memory_space<vmem>>, %arg60: memref<1x32xf32, #tpu.memory_space<vmem>>) attributes {dimension_semantics = [], scalar_prefetch = 0 : i64, scratch_operands = 0 : i64, tpu.core_type = #tpu.core_type<tc>} {
    %c0 = arith.constant 0 : index
    %c0_0 = arith.constant 0 : index
    %0 = vector.load %arg1[%c0, %c0_0] : memref<1x32xf32, #tpu.memory_space<vmem>>, vector<1x32xf32>
    %c0_1 = arith.constant 0 : index
    %c0_2 = arith.constant 0 : index
    %1 = vector.load %arg2[%c0_1, %c0_2] : memref<1x32xf32, #tpu.memory_space<vmem>>, vector<1x32xf32>
    %c0_3 = arith.constant 0 : index
    %c0_4 = arith.constant 0 : index
    %2 = vector.load %arg0[%c0_3, %c0_4] : memref<4x32xf32, #tpu.memory_space<vmem>>, vector<4x32xf32>
    %c0_5 = arith.constant 0 : index
    %c0_6 = arith.constant 0 : index
    %3 = vector.load %arg5[%c0_5, %c0_6] : memref<4x3xf32, #tpu.memory_space<vmem>>, vector<4x3xf32>
    %c0_7 = arith.constant 0 : index
    %c0_8 = arith.constant 0 : index
    %4 = vector.load %arg6[%c0_7, %c0_8] : memref<16x4xf32, #tpu.memory_space<vmem>>, vector<16x4xf32>
    %c0_9 = arith.constant 0 : index
    %c0_10 = arith.constant 0 : index
    %5 = vector.load %arg7[%c0_9, %c0_10] : memref<16x1xf32, #tpu.memory_space<vmem>>, vector<16x1xf32>
    %6 = vector.extract_strided_slice %3 {offsets = [0, 1], sizes = [4, 1], strides = [1, 1]} : vector<4x3xf32> to vector<4x1xf32>
    %7 = vector.broadcast %6 : vector<4x1xf32> to vector<4x32xf32>
    %8 = arith.mulf %7, %2 : vector<4x32xf32>
    %9 = vector.extract_strided_slice %2 {offsets = [0, 31], sizes = [4, 1], strides = [1, 1]} : vector<4x32xf32> to vector<4x1xf32>
    %10 = vector.extract_strided_slice %2 {offsets = [0, 0], sizes = [4, 31], strides = [1, 1]} : vector<4x32xf32> to vector<4x31xf32>
    %11 = tpu.concatenate %9, %10 in 1 : vector<4x1xf32>, vector<4x31xf32> -> vector<4x32xf32>
    %12 = vector.broadcast %0 : vector<1x32xf32> to vector<4x32xf32>
    %13 = arith.mulf %11, %12 : vector<4x32xf32>
    %14 = vector.extract_strided_slice %3 {offsets = [0, 0], sizes = [4, 1], strides = [1, 1]} : vector<4x3xf32> to vector<4x1xf32>
    %15 = vector.broadcast %14 : vector<4x1xf32> to vector<4x32xf32>
    %16 = arith.mulf %15, %13 : vector<4x32xf32>
    %17 = arith.addf %8, %16 : vector<4x32xf32>
    %18 = vector.extract_strided_slice %2 {offsets = [0, 1], sizes = [4, 31], strides = [1, 1]} : vector<4x32xf32> to vector<4x31xf32>
    %19 = vector.extract_strided_slice %2 {offsets = [0, 0], sizes = [4, 1], strides = [1, 1]} : vector<4x32xf32> to vector<4x1xf32>
    %20 = tpu.concatenate %18, %19 in 1 : vector<4x31xf32>, vector<4x1xf32> -> vector<4x32xf32>
    %21 = vector.broadcast %1 : vector<1x32xf32> to vector<4x32xf32>
    %22 = arith.mulf %20, %21 : vector<4x32xf32>
    %23 = vector.extract_strided_slice %3 {offsets = [0, 2], sizes = [4, 1], strides = [1, 1]} : vector<4x3xf32> to vector<4x1xf32>
    %24 = vector.broadcast %23 : vector<4x1xf32> to vector<4x32xf32>
    %25 = arith.mulf %24, %22 : vector<4x32xf32>
    %26 = arith.addf %17, %25 : vector<4x32xf32>
    %cst = arith.constant dense<0.000000e+00> : vector<16x32xf32>
    %27 = tpu.matmul %4, %26, %cst {dimension_numbers = #tpu.dot_dimension_numbers<[1], [0], [0], [1], [0, 0, 1, 1], [], []>} : vector<16x4xf32>, vector<4x32xf32>, vector<16x32xf32> -> vector<16x32xf32>
    %28 = vector.broadcast %5 : vector<16x1xf32> to vector<16x32xf32>
    %29 = arith.addf %27, %28 : vector<16x32xf32>
    %cst_11 = arith.constant 0.000000e+00 : f32
    %30 = vector.broadcast %cst_11 : f32 to vector<16x32xf32>
    %31 = arith.maximumf %29, %30 : vector<16x32xf32>
    %c0_12 = arith.constant 0 : index
    %c0_13 = arith.constant 0 : index
    %32 = vector.load %arg8[%c0_12, %c0_13] : memref<16x16xf32, #tpu.memory_space<vmem>>, vector<16x16xf32>
    %c0_14 = arith.constant 0 : index
    %c0_15 = arith.constant 0 : index
    %33 = vector.load %arg9[%c0_14, %c0_15] : memref<16x1xf32, #tpu.memory_space<vmem>>, vector<16x1xf32>
    %cst_16 = arith.constant dense<0.000000e+00> : vector<16x32xf32>
    %34 = tpu.matmul %32, %31, %cst_16 {dimension_numbers = #tpu.dot_dimension_numbers<[1], [0], [0], [1], [0, 0, 1, 1], [], []>} : vector<16x16xf32>, vector<16x32xf32>, vector<16x32xf32> -> vector<16x32xf32>
    %35 = vector.broadcast %33 : vector<16x1xf32> to vector<16x32xf32>
    %36 = arith.addf %34, %35 : vector<16x32xf32>
    %c0_17 = arith.constant 0 : index
    %c0_18 = arith.constant 0 : index
    %37 = vector.load %arg10[%c0_17, %c0_18] : memref<16x3xf32, #tpu.memory_space<vmem>>, vector<16x3xf32>
    %c0_19 = arith.constant 0 : index
    %c0_20 = arith.constant 0 : index
    %38 = vector.load %arg11[%c0_19, %c0_20] : memref<16x16xf32, #tpu.memory_space<vmem>>, vector<16x16xf32>
    %c0_21 = arith.constant 0 : index
    %c0_22 = arith.constant 0 : index
    %39 = vector.load %arg12[%c0_21, %c0_22] : memref<16x1xf32, #tpu.memory_space<vmem>>, vector<16x1xf32>
    %40 = vector.extract_strided_slice %37 {offsets = [0, 1], sizes = [16, 1], strides = [1, 1]} : vector<16x3xf32> to vector<16x1xf32>
    %41 = vector.broadcast %40 : vector<16x1xf32> to vector<16x32xf32>
    %42 = arith.mulf %41, %31 : vector<16x32xf32>
    %43 = vector.extract_strided_slice %31 {offsets = [0, 31], sizes = [16, 1], strides = [1, 1]} : vector<16x32xf32> to vector<16x1xf32>
    %44 = vector.extract_strided_slice %31 {offsets = [0, 0], sizes = [16, 31], strides = [1, 1]} : vector<16x32xf32> to vector<16x31xf32>
    %45 = tpu.concatenate %43, %44 in 1 : vector<16x1xf32>, vector<16x31xf32> -> vector<16x32xf32>
    %46 = vector.broadcast %0 : vector<1x32xf32> to vector<16x32xf32>
    %47 = arith.mulf %45, %46 : vector<16x32xf32>
    %48 = vector.extract_strided_slice %37 {offsets = [0, 0], sizes = [16, 1], strides = [1, 1]} : vector<16x3xf32> to vector<16x1xf32>
    %49 = vector.broadcast %48 : vector<16x1xf32> to vector<16x32xf32>
    %50 = arith.mulf %49, %47 : vector<16x32xf32>
    %51 = arith.addf %42, %50 : vector<16x32xf32>
    %52 = vector.extract_strided_slice %31 {offsets = [0, 1], sizes = [16, 31], strides = [1, 1]} : vector<16x32xf32> to vector<16x31xf32>
    %53 = vector.extract_strided_slice %31 {offsets = [0, 0], sizes = [16, 1], strides = [1, 1]} : vector<16x32xf32> to vector<16x1xf32>
    %54 = tpu.concatenate %52, %53 in 1 : vector<16x31xf32>, vector<16x1xf32> -> vector<16x32xf32>
    %55 = vector.broadcast %1 : vector<1x32xf32> to vector<16x32xf32>
    %56 = arith.mulf %54, %55 : vector<16x32xf32>
    %57 = vector.extract_strided_slice %37 {offsets = [0, 2], sizes = [16, 1], strides = [1, 1]} : vector<16x3xf32> to vector<16x1xf32>
    %58 = vector.broadcast %57 : vector<16x1xf32> to vector<16x32xf32>
    %59 = arith.mulf %58, %56 : vector<16x32xf32>
    %60 = arith.addf %51, %59 : vector<16x32xf32>
    %cst_23 = arith.constant dense<0.000000e+00> : vector<16x32xf32>
    %61 = tpu.matmul %38, %60, %cst_23 {dimension_numbers = #tpu.dot_dimension_numbers<[1], [0], [0], [1], [0, 0, 1, 1], [], []>} : vector<16x16xf32>, vector<16x32xf32>, vector<16x32xf32> -> vector<16x32xf32>
    %62 = vector.broadcast %39 : vector<16x1xf32> to vector<16x32xf32>
    %63 = arith.addf %61, %62 : vector<16x32xf32>
    %cst_24 = arith.constant 0.000000e+00 : f32
    %64 = vector.broadcast %cst_24 : f32 to vector<16x32xf32>
    %65 = arith.maximumf %63, %64 : vector<16x32xf32>
    %c0_25 = arith.constant 0 : index
    %c0_26 = arith.constant 0 : index
    %66 = vector.load %arg13[%c0_25, %c0_26] : memref<16x3xf32, #tpu.memory_space<vmem>>, vector<16x3xf32>
    %c0_27 = arith.constant 0 : index
    %c0_28 = arith.constant 0 : index
    %67 = vector.load %arg14[%c0_27, %c0_28] : memref<16x16xf32, #tpu.memory_space<vmem>>, vector<16x16xf32>
    %c0_29 = arith.constant 0 : index
    %c0_30 = arith.constant 0 : index
    %68 = vector.load %arg15[%c0_29, %c0_30] : memref<16x1xf32, #tpu.memory_space<vmem>>, vector<16x1xf32>
    %69 = vector.extract_strided_slice %66 {offsets = [0, 1], sizes = [16, 1], strides = [1, 1]} : vector<16x3xf32> to vector<16x1xf32>
    %70 = vector.broadcast %69 : vector<16x1xf32> to vector<16x32xf32>
    %71 = arith.mulf %70, %65 : vector<16x32xf32>
    %72 = vector.extract_strided_slice %65 {offsets = [0, 31], sizes = [16, 1], strides = [1, 1]} : vector<16x32xf32> to vector<16x1xf32>
    %73 = vector.extract_strided_slice %65 {offsets = [0, 0], sizes = [16, 31], strides = [1, 1]} : vector<16x32xf32> to vector<16x31xf32>
    %74 = tpu.concatenate %72, %73 in 1 : vector<16x1xf32>, vector<16x31xf32> -> vector<16x32xf32>
    %75 = vector.broadcast %0 : vector<1x32xf32> to vector<16x32xf32>
    %76 = arith.mulf %74, %75 : vector<16x32xf32>
    %77 = vector.extract_strided_slice %66 {offsets = [0, 0], sizes = [16, 1], strides = [1, 1]} : vector<16x3xf32> to vector<16x1xf32>
    %78 = vector.broadcast %77 : vector<16x1xf32> to vector<16x32xf32>
    %79 = arith.mulf %78, %76 : vector<16x32xf32>
    %80 = arith.addf %71, %79 : vector<16x32xf32>
    %81 = vector.extract_strided_slice %65 {offsets = [0, 1], sizes = [16, 31], strides = [1, 1]} : vector<16x32xf32> to vector<16x31xf32>
    %82 = vector.extract_strided_slice %65 {offsets = [0, 0], sizes = [16, 1], strides = [1, 1]} : vector<16x32xf32> to vector<16x1xf32>
    %83 = tpu.concatenate %81, %82 in 1 : vector<16x31xf32>, vector<16x1xf32> -> vector<16x32xf32>
    %84 = vector.broadcast %1 : vector<1x32xf32> to vector<16x32xf32>
    %85 = arith.mulf %83, %84 : vector<16x32xf32>
    %86 = vector.extract_strided_slice %66 {offsets = [0, 2], sizes = [16, 1], strides = [1, 1]} : vector<16x3xf32> to vector<16x1xf32>
    %87 = vector.broadcast %86 : vector<16x1xf32> to vector<16x32xf32>
    %88 = arith.mulf %87, %85 : vector<16x32xf32>
    %89 = arith.addf %80, %88 : vector<16x32xf32>
    %cst_31 = arith.constant dense<0.000000e+00> : vector<16x32xf32>
    %90 = tpu.matmul %67, %89, %cst_31 {dimension_numbers = #tpu.dot_dimension_numbers<[1], [0], [0], [1], [0, 0, 1, 1], [], []>} : vector<16x16xf32>, vector<16x32xf32>, vector<16x32xf32> -> vector<16x32xf32>
    %91 = vector.broadcast %68 : vector<16x1xf32> to vector<16x32xf32>
    %92 = arith.addf %90, %91 : vector<16x32xf32>
    %93 = arith.addf %92, %36 : vector<16x32xf32>
    %cst_32 = arith.constant 0.000000e+00 : f32
    %94 = vector.broadcast %cst_32 : f32 to vector<16x32xf32>
    %95 = arith.maximumf %93, %94 : vector<16x32xf32>
    %c0_33 = arith.constant 0 : index
    %c0_34 = arith.constant 0 : index
    %96 = vector.load %arg16[%c0_33, %c0_34] : memref<16x16xf32, #tpu.memory_space<vmem>>, vector<16x16xf32>
    %c0_35 = arith.constant 0 : index
    %c0_36 = arith.constant 0 : index
    %97 = vector.load %arg17[%c0_35, %c0_36] : memref<16x1xf32, #tpu.memory_space<vmem>>, vector<16x1xf32>
    %cst_37 = arith.constant dense<0.000000e+00> : vector<16x32xf32>
    %98 = tpu.matmul %96, %95, %cst_37 {dimension_numbers = #tpu.dot_dimension_numbers<[1], [0], [0], [1], [0, 0, 1, 1], [], []>} : vector<16x16xf32>, vector<16x32xf32>, vector<16x32xf32> -> vector<16x32xf32>
    %99 = vector.broadcast %97 : vector<16x1xf32> to vector<16x32xf32>
    %100 = arith.addf %98, %99 : vector<16x32xf32>
    %c0_38 = arith.constant 0 : index
    %c0_39 = arith.constant 0 : index
    %101 = vector.load %arg18[%c0_38, %c0_39] : memref<16x3xf32, #tpu.memory_space<vmem>>, vector<16x3xf32>
    %c0_40 = arith.constant 0 : index
    %c0_41 = arith.constant 0 : index
    %102 = vector.load %arg19[%c0_40, %c0_41] : memref<16x16xf32, #tpu.memory_space<vmem>>, vector<16x16xf32>
    %c0_42 = arith.constant 0 : index
    %c0_43 = arith.constant 0 : index
    %103 = vector.load %arg20[%c0_42, %c0_43] : memref<16x1xf32, #tpu.memory_space<vmem>>, vector<16x1xf32>
    %104 = vector.extract_strided_slice %101 {offsets = [0, 1], sizes = [16, 1], strides = [1, 1]} : vector<16x3xf32> to vector<16x1xf32>
    %105 = vector.broadcast %104 : vector<16x1xf32> to vector<16x32xf32>
    %106 = arith.mulf %105, %95 : vector<16x32xf32>
    %107 = vector.extract_strided_slice %95 {offsets = [0, 31], sizes = [16, 1], strides = [1, 1]} : vector<16x32xf32> to vector<16x1xf32>
    %108 = vector.extract_strided_slice %95 {offsets = [0, 0], sizes = [16, 31], strides = [1, 1]} : vector<16x32xf32> to vector<16x31xf32>
    %109 = tpu.concatenate %107, %108 in 1 : vector<16x1xf32>, vector<16x31xf32> -> vector<16x32xf32>
    %110 = vector.broadcast %0 : vector<1x32xf32> to vector<16x32xf32>
    %111 = arith.mulf %109, %110 : vector<16x32xf32>
    %112 = vector.extract_strided_slice %101 {offsets = [0, 0], sizes = [16, 1], strides = [1, 1]} : vector<16x3xf32> to vector<16x1xf32>
    %113 = vector.broadcast %112 : vector<16x1xf32> to vector<16x32xf32>
    %114 = arith.mulf %113, %111 : vector<16x32xf32>
    %115 = arith.addf %106, %114 : vector<16x32xf32>
    %116 = vector.extract_strided_slice %95 {offsets = [0, 1], sizes = [16, 31], strides = [1, 1]} : vector<16x32xf32> to vector<16x31xf32>
    %117 = vector.extract_strided_slice %95 {offsets = [0, 0], sizes = [16, 1], strides = [1, 1]} : vector<16x32xf32> to vector<16x1xf32>
    %118 = tpu.concatenate %116, %117 in 1 : vector<16x31xf32>, vector<16x1xf32> -> vector<16x32xf32>
    %119 = vector.broadcast %1 : vector<1x32xf32> to vector<16x32xf32>
    %120 = arith.mulf %118, %119 : vector<16x32xf32>
    %121 = vector.extract_strided_slice %101 {offsets = [0, 2], sizes = [16, 1], strides = [1, 1]} : vector<16x3xf32> to vector<16x1xf32>
    %122 = vector.broadcast %121 : vector<16x1xf32> to vector<16x32xf32>
    %123 = arith.mulf %122, %120 : vector<16x32xf32>
    %124 = arith.addf %115, %123 : vector<16x32xf32>
    %cst_44 = arith.constant dense<0.000000e+00> : vector<16x32xf32>
    %125 = tpu.matmul %102, %124, %cst_44 {dimension_numbers = #tpu.dot_dimension_numbers<[1], [0], [0], [1], [0, 0, 1, 1], [], []>} : vector<16x16xf32>, vector<16x32xf32>, vector<16x32xf32> -> vector<16x32xf32>
    %126 = vector.broadcast %103 : vector<16x1xf32> to vector<16x32xf32>
    %127 = arith.addf %125, %126 : vector<16x32xf32>
    %cst_45 = arith.constant 0.000000e+00 : f32
    %128 = vector.broadcast %cst_45 : f32 to vector<16x32xf32>
    %129 = arith.maximumf %127, %128 : vector<16x32xf32>
    %c0_46 = arith.constant 0 : index
    %c0_47 = arith.constant 0 : index
    %130 = vector.load %arg21[%c0_46, %c0_47] : memref<16x3xf32, #tpu.memory_space<vmem>>, vector<16x3xf32>
    %c0_48 = arith.constant 0 : index
    %c0_49 = arith.constant 0 : index
    %131 = vector.load %arg22[%c0_48, %c0_49] : memref<16x16xf32, #tpu.memory_space<vmem>>, vector<16x16xf32>
    %c0_50 = arith.constant 0 : index
    %c0_51 = arith.constant 0 : index
    %132 = vector.load %arg23[%c0_50, %c0_51] : memref<16x1xf32, #tpu.memory_space<vmem>>, vector<16x1xf32>
    %133 = vector.extract_strided_slice %130 {offsets = [0, 1], sizes = [16, 1], strides = [1, 1]} : vector<16x3xf32> to vector<16x1xf32>
    %134 = vector.broadcast %133 : vector<16x1xf32> to vector<16x32xf32>
    %135 = arith.mulf %134, %129 : vector<16x32xf32>
    %136 = vector.extract_strided_slice %129 {offsets = [0, 31], sizes = [16, 1], strides = [1, 1]} : vector<16x32xf32> to vector<16x1xf32>
    %137 = vector.extract_strided_slice %129 {offsets = [0, 0], sizes = [16, 31], strides = [1, 1]} : vector<16x32xf32> to vector<16x31xf32>
    %138 = tpu.concatenate %136, %137 in 1 : vector<16x1xf32>, vector<16x31xf32> -> vector<16x32xf32>
    %139 = vector.broadcast %0 : vector<1x32xf32> to vector<16x32xf32>
    %140 = arith.mulf %138, %139 : vector<16x32xf32>
    %141 = vector.extract_strided_slice %130 {offsets = [0, 0], sizes = [16, 1], strides = [1, 1]} : vector<16x3xf32> to vector<16x1xf32>
    %142 = vector.broadcast %141 : vector<16x1xf32> to vector<16x32xf32>
    %143 = arith.mulf %142, %140 : vector<16x32xf32>
    %144 = arith.addf %135, %143 : vector<16x32xf32>
    %145 = vector.extract_strided_slice %129 {offsets = [0, 1], sizes = [16, 31], strides = [1, 1]} : vector<16x32xf32> to vector<16x31xf32>
    %146 = vector.extract_strided_slice %129 {offsets = [0, 0], sizes = [16, 1], strides = [1, 1]} : vector<16x32xf32> to vector<16x1xf32>
    %147 = tpu.concatenate %145, %146 in 1 : vector<16x31xf32>, vector<16x1xf32> -> vector<16x32xf32>
    %148 = vector.broadcast %1 : vector<1x32xf32> to vector<16x32xf32>
    %149 = arith.mulf %147, %148 : vector<16x32xf32>
    %150 = vector.extract_strided_slice %130 {offsets = [0, 2], sizes = [16, 1], strides = [1, 1]} : vector<16x3xf32> to vector<16x1xf32>
    %151 = vector.broadcast %150 : vector<16x1xf32> to vector<16x32xf32>
    %152 = arith.mulf %151, %149 : vector<16x32xf32>
    %153 = arith.addf %144, %152 : vector<16x32xf32>
    %cst_52 = arith.constant dense<0.000000e+00> : vector<16x32xf32>
    %154 = tpu.matmul %131, %153, %cst_52 {dimension_numbers = #tpu.dot_dimension_numbers<[1], [0], [0], [1], [0, 0, 1, 1], [], []>} : vector<16x16xf32>, vector<16x32xf32>, vector<16x32xf32> -> vector<16x32xf32>
    %155 = vector.broadcast %132 : vector<16x1xf32> to vector<16x32xf32>
    %156 = arith.addf %154, %155 : vector<16x32xf32>
    %157 = arith.addf %156, %100 : vector<16x32xf32>
    %cst_53 = arith.constant 0.000000e+00 : f32
    %158 = vector.broadcast %cst_53 : f32 to vector<16x32xf32>
    %159 = arith.maximumf %157, %158 : vector<16x32xf32>
    %c0_54 = arith.constant 0 : index
    %c0_55 = arith.constant 0 : index
    %160 = vector.load %arg24[%c0_54, %c0_55] : memref<16x16xf32, #tpu.memory_space<vmem>>, vector<16x16xf32>
    %c0_56 = arith.constant 0 : index
    %c0_57 = arith.constant 0 : index
    %161 = vector.load %arg25[%c0_56, %c0_57] : memref<16x1xf32, #tpu.memory_space<vmem>>, vector<16x1xf32>
    %cst_58 = arith.constant dense<0.000000e+00> : vector<16x32xf32>
    %162 = tpu.matmul %160, %159, %cst_58 {dimension_numbers = #tpu.dot_dimension_numbers<[1], [0], [0], [1], [0, 0, 1, 1], [], []>} : vector<16x16xf32>, vector<16x32xf32>, vector<16x32xf32> -> vector<16x32xf32>
    %163 = vector.broadcast %161 : vector<16x1xf32> to vector<16x32xf32>
    %164 = arith.addf %162, %163 : vector<16x32xf32>
    %c0_59 = arith.constant 0 : index
    %c0_60 = arith.constant 0 : index
    %165 = vector.load %arg26[%c0_59, %c0_60] : memref<16x3xf32, #tpu.memory_space<vmem>>, vector<16x3xf32>
    %c0_61 = arith.constant 0 : index
    %c0_62 = arith.constant 0 : index
    %166 = vector.load %arg27[%c0_61, %c0_62] : memref<16x16xf32, #tpu.memory_space<vmem>>, vector<16x16xf32>
    %c0_63 = arith.constant 0 : index
    %c0_64 = arith.constant 0 : index
    %167 = vector.load %arg28[%c0_63, %c0_64] : memref<16x1xf32, #tpu.memory_space<vmem>>, vector<16x1xf32>
    %168 = vector.extract_strided_slice %165 {offsets = [0, 1], sizes = [16, 1], strides = [1, 1]} : vector<16x3xf32> to vector<16x1xf32>
    %169 = vector.broadcast %168 : vector<16x1xf32> to vector<16x32xf32>
    %170 = arith.mulf %169, %159 : vector<16x32xf32>
    %171 = vector.extract_strided_slice %159 {offsets = [0, 31], sizes = [16, 1], strides = [1, 1]} : vector<16x32xf32> to vector<16x1xf32>
    %172 = vector.extract_strided_slice %159 {offsets = [0, 0], sizes = [16, 31], strides = [1, 1]} : vector<16x32xf32> to vector<16x31xf32>
    %173 = tpu.concatenate %171, %172 in 1 : vector<16x1xf32>, vector<16x31xf32> -> vector<16x32xf32>
    %174 = vector.broadcast %0 : vector<1x32xf32> to vector<16x32xf32>
    %175 = arith.mulf %173, %174 : vector<16x32xf32>
    %176 = vector.extract_strided_slice %165 {offsets = [0, 0], sizes = [16, 1], strides = [1, 1]} : vector<16x3xf32> to vector<16x1xf32>
    %177 = vector.broadcast %176 : vector<16x1xf32> to vector<16x32xf32>
    %178 = arith.mulf %177, %175 : vector<16x32xf32>
    %179 = arith.addf %170, %178 : vector<16x32xf32>
    %180 = vector.extract_strided_slice %159 {offsets = [0, 1], sizes = [16, 31], strides = [1, 1]} : vector<16x32xf32> to vector<16x31xf32>
    %181 = vector.extract_strided_slice %159 {offsets = [0, 0], sizes = [16, 1], strides = [1, 1]} : vector<16x32xf32> to vector<16x1xf32>
    %182 = tpu.concatenate %180, %181 in 1 : vector<16x31xf32>, vector<16x1xf32> -> vector<16x32xf32>
    %183 = vector.broadcast %1 : vector<1x32xf32> to vector<16x32xf32>
    %184 = arith.mulf %182, %183 : vector<16x32xf32>
    %185 = vector.extract_strided_slice %165 {offsets = [0, 2], sizes = [16, 1], strides = [1, 1]} : vector<16x3xf32> to vector<16x1xf32>
    %186 = vector.broadcast %185 : vector<16x1xf32> to vector<16x32xf32>
    %187 = arith.mulf %186, %184 : vector<16x32xf32>
    %188 = arith.addf %179, %187 : vector<16x32xf32>
    %cst_65 = arith.constant dense<0.000000e+00> : vector<16x32xf32>
    %189 = tpu.matmul %166, %188, %cst_65 {dimension_numbers = #tpu.dot_dimension_numbers<[1], [0], [0], [1], [0, 0, 1, 1], [], []>} : vector<16x16xf32>, vector<16x32xf32>, vector<16x32xf32> -> vector<16x32xf32>
    %190 = vector.broadcast %167 : vector<16x1xf32> to vector<16x32xf32>
    %191 = arith.addf %189, %190 : vector<16x32xf32>
    %cst_66 = arith.constant 0.000000e+00 : f32
    %192 = vector.broadcast %cst_66 : f32 to vector<16x32xf32>
    %193 = arith.maximumf %191, %192 : vector<16x32xf32>
    %c0_67 = arith.constant 0 : index
    %c0_68 = arith.constant 0 : index
    %194 = vector.load %arg29[%c0_67, %c0_68] : memref<16x3xf32, #tpu.memory_space<vmem>>, vector<16x3xf32>
    %c0_69 = arith.constant 0 : index
    %c0_70 = arith.constant 0 : index
    %195 = vector.load %arg30[%c0_69, %c0_70] : memref<16x16xf32, #tpu.memory_space<vmem>>, vector<16x16xf32>
    %c0_71 = arith.constant 0 : index
    %c0_72 = arith.constant 0 : index
    %196 = vector.load %arg31[%c0_71, %c0_72] : memref<16x1xf32, #tpu.memory_space<vmem>>, vector<16x1xf32>
    %197 = vector.extract_strided_slice %194 {offsets = [0, 1], sizes = [16, 1], strides = [1, 1]} : vector<16x3xf32> to vector<16x1xf32>
    %198 = vector.broadcast %197 : vector<16x1xf32> to vector<16x32xf32>
    %199 = arith.mulf %198, %193 : vector<16x32xf32>
    %200 = vector.extract_strided_slice %193 {offsets = [0, 31], sizes = [16, 1], strides = [1, 1]} : vector<16x32xf32> to vector<16x1xf32>
    %201 = vector.extract_strided_slice %193 {offsets = [0, 0], sizes = [16, 31], strides = [1, 1]} : vector<16x32xf32> to vector<16x31xf32>
    %202 = tpu.concatenate %200, %201 in 1 : vector<16x1xf32>, vector<16x31xf32> -> vector<16x32xf32>
    %203 = vector.broadcast %0 : vector<1x32xf32> to vector<16x32xf32>
    %204 = arith.mulf %202, %203 : vector<16x32xf32>
    %205 = vector.extract_strided_slice %194 {offsets = [0, 0], sizes = [16, 1], strides = [1, 1]} : vector<16x3xf32> to vector<16x1xf32>
    %206 = vector.broadcast %205 : vector<16x1xf32> to vector<16x32xf32>
    %207 = arith.mulf %206, %204 : vector<16x32xf32>
    %208 = arith.addf %199, %207 : vector<16x32xf32>
    %209 = vector.extract_strided_slice %193 {offsets = [0, 1], sizes = [16, 31], strides = [1, 1]} : vector<16x32xf32> to vector<16x31xf32>
    %210 = vector.extract_strided_slice %193 {offsets = [0, 0], sizes = [16, 1], strides = [1, 1]} : vector<16x32xf32> to vector<16x1xf32>
    %211 = tpu.concatenate %209, %210 in 1 : vector<16x31xf32>, vector<16x1xf32> -> vector<16x32xf32>
    %212 = vector.broadcast %1 : vector<1x32xf32> to vector<16x32xf32>
    %213 = arith.mulf %211, %212 : vector<16x32xf32>
    %214 = vector.extract_strided_slice %194 {offsets = [0, 2], sizes = [16, 1], strides = [1, 1]} : vector<16x3xf32> to vector<16x1xf32>
    %215 = vector.broadcast %214 : vector<16x1xf32> to vector<16x32xf32>
    %216 = arith.mulf %215, %213 : vector<16x32xf32>
    %217 = arith.addf %208, %216 : vector<16x32xf32>
    %cst_73 = arith.constant dense<0.000000e+00> : vector<16x32xf32>
    %218 = tpu.matmul %195, %217, %cst_73 {dimension_numbers = #tpu.dot_dimension_numbers<[1], [0], [0], [1], [0, 0, 1, 1], [], []>} : vector<16x16xf32>, vector<16x32xf32>, vector<16x32xf32> -> vector<16x32xf32>
    %219 = vector.broadcast %196 : vector<16x1xf32> to vector<16x32xf32>
    %220 = arith.addf %218, %219 : vector<16x32xf32>
    %221 = arith.addf %220, %164 : vector<16x32xf32>
    %cst_74 = arith.constant 0.000000e+00 : f32
    %222 = vector.broadcast %cst_74 : f32 to vector<16x32xf32>
    %223 = arith.maximumf %221, %222 : vector<16x32xf32>
    %c0_75 = arith.constant 0 : index
    %c0_76 = arith.constant 0 : index
    %224 = vector.load %arg32[%c0_75, %c0_76] : memref<16x16xf32, #tpu.memory_space<vmem>>, vector<16x16xf32>
    %c0_77 = arith.constant 0 : index
    %c0_78 = arith.constant 0 : index
    %225 = vector.load %arg33[%c0_77, %c0_78] : memref<16x1xf32, #tpu.memory_space<vmem>>, vector<16x1xf32>
    %cst_79 = arith.constant dense<0.000000e+00> : vector<16x32xf32>
    %226 = tpu.matmul %224, %223, %cst_79 {dimension_numbers = #tpu.dot_dimension_numbers<[1], [0], [0], [1], [0, 0, 1, 1], [], []>} : vector<16x16xf32>, vector<16x32xf32>, vector<16x32xf32> -> vector<16x32xf32>
    %227 = vector.broadcast %225 : vector<16x1xf32> to vector<16x32xf32>
    %228 = arith.addf %226, %227 : vector<16x32xf32>
    %c0_80 = arith.constant 0 : index
    %c0_81 = arith.constant 0 : index
    %229 = vector.load %arg34[%c0_80, %c0_81] : memref<16x3xf32, #tpu.memory_space<vmem>>, vector<16x3xf32>
    %c0_82 = arith.constant 0 : index
    %c0_83 = arith.constant 0 : index
    %230 = vector.load %arg35[%c0_82, %c0_83] : memref<16x16xf32, #tpu.memory_space<vmem>>, vector<16x16xf32>
    %c0_84 = arith.constant 0 : index
    %c0_85 = arith.constant 0 : index
    %231 = vector.load %arg36[%c0_84, %c0_85] : memref<16x1xf32, #tpu.memory_space<vmem>>, vector<16x1xf32>
    %232 = vector.extract_strided_slice %229 {offsets = [0, 1], sizes = [16, 1], strides = [1, 1]} : vector<16x3xf32> to vector<16x1xf32>
    %233 = vector.broadcast %232 : vector<16x1xf32> to vector<16x32xf32>
    %234 = arith.mulf %233, %223 : vector<16x32xf32>
    %235 = vector.extract_strided_slice %223 {offsets = [0, 31], sizes = [16, 1], strides = [1, 1]} : vector<16x32xf32> to vector<16x1xf32>
    %236 = vector.extract_strided_slice %223 {offsets = [0, 0], sizes = [16, 31], strides = [1, 1]} : vector<16x32xf32> to vector<16x31xf32>
    %237 = tpu.concatenate %235, %236 in 1 : vector<16x1xf32>, vector<16x31xf32> -> vector<16x32xf32>
    %238 = vector.broadcast %0 : vector<1x32xf32> to vector<16x32xf32>
    %239 = arith.mulf %237, %238 : vector<16x32xf32>
    %240 = vector.extract_strided_slice %229 {offsets = [0, 0], sizes = [16, 1], strides = [1, 1]} : vector<16x3xf32> to vector<16x1xf32>
    %241 = vector.broadcast %240 : vector<16x1xf32> to vector<16x32xf32>
    %242 = arith.mulf %241, %239 : vector<16x32xf32>
    %243 = arith.addf %234, %242 : vector<16x32xf32>
    %244 = vector.extract_strided_slice %223 {offsets = [0, 1], sizes = [16, 31], strides = [1, 1]} : vector<16x32xf32> to vector<16x31xf32>
    %245 = vector.extract_strided_slice %223 {offsets = [0, 0], sizes = [16, 1], strides = [1, 1]} : vector<16x32xf32> to vector<16x1xf32>
    %246 = tpu.concatenate %244, %245 in 1 : vector<16x31xf32>, vector<16x1xf32> -> vector<16x32xf32>
    %247 = vector.broadcast %1 : vector<1x32xf32> to vector<16x32xf32>
    %248 = arith.mulf %246, %247 : vector<16x32xf32>
    %249 = vector.extract_strided_slice %229 {offsets = [0, 2], sizes = [16, 1], strides = [1, 1]} : vector<16x3xf32> to vector<16x1xf32>
    %250 = vector.broadcast %249 : vector<16x1xf32> to vector<16x32xf32>
    %251 = arith.mulf %250, %248 : vector<16x32xf32>
    %252 = arith.addf %243, %251 : vector<16x32xf32>
    %cst_86 = arith.constant dense<0.000000e+00> : vector<16x32xf32>
    %253 = tpu.matmul %230, %252, %cst_86 {dimension_numbers = #tpu.dot_dimension_numbers<[1], [0], [0], [1], [0, 0, 1, 1], [], []>} : vector<16x16xf32>, vector<16x32xf32>, vector<16x32xf32> -> vector<16x32xf32>
    %254 = vector.broadcast %231 : vector<16x1xf32> to vector<16x32xf32>
    %255 = arith.addf %253, %254 : vector<16x32xf32>
    %cst_87 = arith.constant 0.000000e+00 : f32
    %256 = vector.broadcast %cst_87 : f32 to vector<16x32xf32>
    %257 = arith.maximumf %255, %256 : vector<16x32xf32>
    %c0_88 = arith.constant 0 : index
    %c0_89 = arith.constant 0 : index
    %258 = vector.load %arg37[%c0_88, %c0_89] : memref<16x3xf32, #tpu.memory_space<vmem>>, vector<16x3xf32>
    %c0_90 = arith.constant 0 : index
    %c0_91 = arith.constant 0 : index
    %259 = vector.load %arg38[%c0_90, %c0_91] : memref<16x16xf32, #tpu.memory_space<vmem>>, vector<16x16xf32>
    %c0_92 = arith.constant 0 : index
    %c0_93 = arith.constant 0 : index
    %260 = vector.load %arg39[%c0_92, %c0_93] : memref<16x1xf32, #tpu.memory_space<vmem>>, vector<16x1xf32>
    %261 = vector.extract_strided_slice %258 {offsets = [0, 1], sizes = [16, 1], strides = [1, 1]} : vector<16x3xf32> to vector<16x1xf32>
    %262 = vector.broadcast %261 : vector<16x1xf32> to vector<16x32xf32>
    %263 = arith.mulf %262, %257 : vector<16x32xf32>
    %264 = vector.extract_strided_slice %257 {offsets = [0, 31], sizes = [16, 1], strides = [1, 1]} : vector<16x32xf32> to vector<16x1xf32>
    %265 = vector.extract_strided_slice %257 {offsets = [0, 0], sizes = [16, 31], strides = [1, 1]} : vector<16x32xf32> to vector<16x31xf32>
    %266 = tpu.concatenate %264, %265 in 1 : vector<16x1xf32>, vector<16x31xf32> -> vector<16x32xf32>
    %267 = vector.broadcast %0 : vector<1x32xf32> to vector<16x32xf32>
    %268 = arith.mulf %266, %267 : vector<16x32xf32>
    %269 = vector.extract_strided_slice %258 {offsets = [0, 0], sizes = [16, 1], strides = [1, 1]} : vector<16x3xf32> to vector<16x1xf32>
    %270 = vector.broadcast %269 : vector<16x1xf32> to vector<16x32xf32>
    %271 = arith.mulf %270, %268 : vector<16x32xf32>
    %272 = arith.addf %263, %271 : vector<16x32xf32>
    %273 = vector.extract_strided_slice %257 {offsets = [0, 1], sizes = [16, 31], strides = [1, 1]} : vector<16x32xf32> to vector<16x31xf32>
    %274 = vector.extract_strided_slice %257 {offsets = [0, 0], sizes = [16, 1], strides = [1, 1]} : vector<16x32xf32> to vector<16x1xf32>
    %275 = tpu.concatenate %273, %274 in 1 : vector<16x31xf32>, vector<16x1xf32> -> vector<16x32xf32>
    %276 = vector.broadcast %1 : vector<1x32xf32> to vector<16x32xf32>
    %277 = arith.mulf %275, %276 : vector<16x32xf32>
    %278 = vector.extract_strided_slice %258 {offsets = [0, 2], sizes = [16, 1], strides = [1, 1]} : vector<16x3xf32> to vector<16x1xf32>
    %279 = vector.broadcast %278 : vector<16x1xf32> to vector<16x32xf32>
    %280 = arith.mulf %279, %277 : vector<16x32xf32>
    %281 = arith.addf %272, %280 : vector<16x32xf32>
    %cst_94 = arith.constant dense<0.000000e+00> : vector<16x32xf32>
    %282 = tpu.matmul %259, %281, %cst_94 {dimension_numbers = #tpu.dot_dimension_numbers<[1], [0], [0], [1], [0, 0, 1, 1], [], []>} : vector<16x16xf32>, vector<16x32xf32>, vector<16x32xf32> -> vector<16x32xf32>
    %283 = vector.broadcast %260 : vector<16x1xf32> to vector<16x32xf32>
    %284 = arith.addf %282, %283 : vector<16x32xf32>
    %285 = arith.addf %284, %228 : vector<16x32xf32>
    %cst_95 = arith.constant 0.000000e+00 : f32
    %286 = vector.broadcast %cst_95 : f32 to vector<16x32xf32>
    %287 = arith.maximumf %285, %286 : vector<16x32xf32>
    %c0_96 = arith.constant 0 : index
    %c0_97 = arith.constant 0 : index
    %288 = vector.load %arg40[%c0_96, %c0_97] : memref<16x16xf32, #tpu.memory_space<vmem>>, vector<16x16xf32>
    %c0_98 = arith.constant 0 : index
    %c0_99 = arith.constant 0 : index
    %289 = vector.load %arg41[%c0_98, %c0_99] : memref<16x1xf32, #tpu.memory_space<vmem>>, vector<16x1xf32>
    %cst_100 = arith.constant dense<0.000000e+00> : vector<16x32xf32>
    %290 = tpu.matmul %288, %287, %cst_100 {dimension_numbers = #tpu.dot_dimension_numbers<[1], [0], [0], [1], [0, 0, 1, 1], [], []>} : vector<16x16xf32>, vector<16x32xf32>, vector<16x32xf32> -> vector<16x32xf32>
    %291 = vector.broadcast %289 : vector<16x1xf32> to vector<16x32xf32>
    %292 = arith.addf %290, %291 : vector<16x32xf32>
    %c0_101 = arith.constant 0 : index
    %c0_102 = arith.constant 0 : index
    %293 = vector.load %arg42[%c0_101, %c0_102] : memref<16x3xf32, #tpu.memory_space<vmem>>, vector<16x3xf32>
    %c0_103 = arith.constant 0 : index
    %c0_104 = arith.constant 0 : index
    %294 = vector.load %arg43[%c0_103, %c0_104] : memref<16x16xf32, #tpu.memory_space<vmem>>, vector<16x16xf32>
    %c0_105 = arith.constant 0 : index
    %c0_106 = arith.constant 0 : index
    %295 = vector.load %arg44[%c0_105, %c0_106] : memref<16x1xf32, #tpu.memory_space<vmem>>, vector<16x1xf32>
    %296 = vector.extract_strided_slice %293 {offsets = [0, 1], sizes = [16, 1], strides = [1, 1]} : vector<16x3xf32> to vector<16x1xf32>
    %297 = vector.broadcast %296 : vector<16x1xf32> to vector<16x32xf32>
    %298 = arith.mulf %297, %287 : vector<16x32xf32>
    %299 = vector.extract_strided_slice %287 {offsets = [0, 31], sizes = [16, 1], strides = [1, 1]} : vector<16x32xf32> to vector<16x1xf32>
    %300 = vector.extract_strided_slice %287 {offsets = [0, 0], sizes = [16, 31], strides = [1, 1]} : vector<16x32xf32> to vector<16x31xf32>
    %301 = tpu.concatenate %299, %300 in 1 : vector<16x1xf32>, vector<16x31xf32> -> vector<16x32xf32>
    %302 = vector.broadcast %0 : vector<1x32xf32> to vector<16x32xf32>
    %303 = arith.mulf %301, %302 : vector<16x32xf32>
    %304 = vector.extract_strided_slice %293 {offsets = [0, 0], sizes = [16, 1], strides = [1, 1]} : vector<16x3xf32> to vector<16x1xf32>
    %305 = vector.broadcast %304 : vector<16x1xf32> to vector<16x32xf32>
    %306 = arith.mulf %305, %303 : vector<16x32xf32>
    %307 = arith.addf %298, %306 : vector<16x32xf32>
    %308 = vector.extract_strided_slice %287 {offsets = [0, 1], sizes = [16, 31], strides = [1, 1]} : vector<16x32xf32> to vector<16x31xf32>
    %309 = vector.extract_strided_slice %287 {offsets = [0, 0], sizes = [16, 1], strides = [1, 1]} : vector<16x32xf32> to vector<16x1xf32>
    %310 = tpu.concatenate %308, %309 in 1 : vector<16x31xf32>, vector<16x1xf32> -> vector<16x32xf32>
    %311 = vector.broadcast %1 : vector<1x32xf32> to vector<16x32xf32>
    %312 = arith.mulf %310, %311 : vector<16x32xf32>
    %313 = vector.extract_strided_slice %293 {offsets = [0, 2], sizes = [16, 1], strides = [1, 1]} : vector<16x3xf32> to vector<16x1xf32>
    %314 = vector.broadcast %313 : vector<16x1xf32> to vector<16x32xf32>
    %315 = arith.mulf %314, %312 : vector<16x32xf32>
    %316 = arith.addf %307, %315 : vector<16x32xf32>
    %cst_107 = arith.constant dense<0.000000e+00> : vector<16x32xf32>
    %317 = tpu.matmul %294, %316, %cst_107 {dimension_numbers = #tpu.dot_dimension_numbers<[1], [0], [0], [1], [0, 0, 1, 1], [], []>} : vector<16x16xf32>, vector<16x32xf32>, vector<16x32xf32> -> vector<16x32xf32>
    %318 = vector.broadcast %295 : vector<16x1xf32> to vector<16x32xf32>
    %319 = arith.addf %317, %318 : vector<16x32xf32>
    %cst_108 = arith.constant 0.000000e+00 : f32
    %320 = vector.broadcast %cst_108 : f32 to vector<16x32xf32>
    %321 = arith.maximumf %319, %320 : vector<16x32xf32>
    %c0_109 = arith.constant 0 : index
    %c0_110 = arith.constant 0 : index
    %322 = vector.load %arg45[%c0_109, %c0_110] : memref<16x3xf32, #tpu.memory_space<vmem>>, vector<16x3xf32>
    %c0_111 = arith.constant 0 : index
    %c0_112 = arith.constant 0 : index
    %323 = vector.load %arg46[%c0_111, %c0_112] : memref<16x16xf32, #tpu.memory_space<vmem>>, vector<16x16xf32>
    %c0_113 = arith.constant 0 : index
    %c0_114 = arith.constant 0 : index
    %324 = vector.load %arg47[%c0_113, %c0_114] : memref<16x1xf32, #tpu.memory_space<vmem>>, vector<16x1xf32>
    %325 = vector.extract_strided_slice %322 {offsets = [0, 1], sizes = [16, 1], strides = [1, 1]} : vector<16x3xf32> to vector<16x1xf32>
    %326 = vector.broadcast %325 : vector<16x1xf32> to vector<16x32xf32>
    %327 = arith.mulf %326, %321 : vector<16x32xf32>
    %328 = vector.extract_strided_slice %321 {offsets = [0, 31], sizes = [16, 1], strides = [1, 1]} : vector<16x32xf32> to vector<16x1xf32>
    %329 = vector.extract_strided_slice %321 {offsets = [0, 0], sizes = [16, 31], strides = [1, 1]} : vector<16x32xf32> to vector<16x31xf32>
    %330 = tpu.concatenate %328, %329 in 1 : vector<16x1xf32>, vector<16x31xf32> -> vector<16x32xf32>
    %331 = vector.broadcast %0 : vector<1x32xf32> to vector<16x32xf32>
    %332 = arith.mulf %330, %331 : vector<16x32xf32>
    %333 = vector.extract_strided_slice %322 {offsets = [0, 0], sizes = [16, 1], strides = [1, 1]} : vector<16x3xf32> to vector<16x1xf32>
    %334 = vector.broadcast %333 : vector<16x1xf32> to vector<16x32xf32>
    %335 = arith.mulf %334, %332 : vector<16x32xf32>
    %336 = arith.addf %327, %335 : vector<16x32xf32>
    %337 = vector.extract_strided_slice %321 {offsets = [0, 1], sizes = [16, 31], strides = [1, 1]} : vector<16x32xf32> to vector<16x31xf32>
    %338 = vector.extract_strided_slice %321 {offsets = [0, 0], sizes = [16, 1], strides = [1, 1]} : vector<16x32xf32> to vector<16x1xf32>
    %339 = tpu.concatenate %337, %338 in 1 : vector<16x31xf32>, vector<16x1xf32> -> vector<16x32xf32>
    %340 = vector.broadcast %1 : vector<1x32xf32> to vector<16x32xf32>
    %341 = arith.mulf %339, %340 : vector<16x32xf32>
    %342 = vector.extract_strided_slice %322 {offsets = [0, 2], sizes = [16, 1], strides = [1, 1]} : vector<16x3xf32> to vector<16x1xf32>
    %343 = vector.broadcast %342 : vector<16x1xf32> to vector<16x32xf32>
    %344 = arith.mulf %343, %341 : vector<16x32xf32>
    %345 = arith.addf %336, %344 : vector<16x32xf32>
    %cst_115 = arith.constant dense<0.000000e+00> : vector<16x32xf32>
    %346 = tpu.matmul %323, %345, %cst_115 {dimension_numbers = #tpu.dot_dimension_numbers<[1], [0], [0], [1], [0, 0, 1, 1], [], []>} : vector<16x16xf32>, vector<16x32xf32>, vector<16x32xf32> -> vector<16x32xf32>
    %347 = vector.broadcast %324 : vector<16x1xf32> to vector<16x32xf32>
    %348 = arith.addf %346, %347 : vector<16x32xf32>
    %349 = arith.addf %348, %292 : vector<16x32xf32>
    %cst_116 = arith.constant 0.000000e+00 : f32
    %350 = vector.broadcast %cst_116 : f32 to vector<16x32xf32>
    %351 = arith.maximumf %349, %350 : vector<16x32xf32>
    %c0_117 = arith.constant 0 : index
    %c0_118 = arith.constant 0 : index
    %352 = vector.load %arg48[%c0_117, %c0_118] : memref<16x3xf32, #tpu.memory_space<vmem>>, vector<16x3xf32>
    %c0_119 = arith.constant 0 : index
    %c0_120 = arith.constant 0 : index
    %353 = vector.load %arg49[%c0_119, %c0_120] : memref<24x16xf32, #tpu.memory_space<vmem>>, vector<24x16xf32>
    %c0_121 = arith.constant 0 : index
    %c0_122 = arith.constant 0 : index
    %354 = vector.load %arg50[%c0_121, %c0_122] : memref<24x1xf32, #tpu.memory_space<vmem>>, vector<24x1xf32>
    %355 = vector.extract_strided_slice %352 {offsets = [0, 1], sizes = [16, 1], strides = [1, 1]} : vector<16x3xf32> to vector<16x1xf32>
    %356 = vector.broadcast %355 : vector<16x1xf32> to vector<16x32xf32>
    %357 = arith.mulf %356, %351 : vector<16x32xf32>
    %358 = vector.extract_strided_slice %351 {offsets = [0, 31], sizes = [16, 1], strides = [1, 1]} : vector<16x32xf32> to vector<16x1xf32>
    %359 = vector.extract_strided_slice %351 {offsets = [0, 0], sizes = [16, 31], strides = [1, 1]} : vector<16x32xf32> to vector<16x31xf32>
    %360 = tpu.concatenate %358, %359 in 1 : vector<16x1xf32>, vector<16x31xf32> -> vector<16x32xf32>
    %361 = vector.broadcast %0 : vector<1x32xf32> to vector<16x32xf32>
    %362 = arith.mulf %360, %361 : vector<16x32xf32>
    %363 = vector.extract_strided_slice %352 {offsets = [0, 0], sizes = [16, 1], strides = [1, 1]} : vector<16x3xf32> to vector<16x1xf32>
    %364 = vector.broadcast %363 : vector<16x1xf32> to vector<16x32xf32>
    %365 = arith.mulf %364, %362 : vector<16x32xf32>
    %366 = arith.addf %357, %365 : vector<16x32xf32>
    %367 = vector.extract_strided_slice %351 {offsets = [0, 1], sizes = [16, 31], strides = [1, 1]} : vector<16x32xf32> to vector<16x31xf32>
    %368 = vector.extract_strided_slice %351 {offsets = [0, 0], sizes = [16, 1], strides = [1, 1]} : vector<16x32xf32> to vector<16x1xf32>
    %369 = tpu.concatenate %367, %368 in 1 : vector<16x31xf32>, vector<16x1xf32> -> vector<16x32xf32>
    %370 = vector.broadcast %1 : vector<1x32xf32> to vector<16x32xf32>
    %371 = arith.mulf %369, %370 : vector<16x32xf32>
    %372 = vector.extract_strided_slice %352 {offsets = [0, 2], sizes = [16, 1], strides = [1, 1]} : vector<16x3xf32> to vector<16x1xf32>
    %373 = vector.broadcast %372 : vector<16x1xf32> to vector<16x32xf32>
    %374 = arith.mulf %373, %371 : vector<16x32xf32>
    %375 = arith.addf %366, %374 : vector<16x32xf32>
    %cst_123 = arith.constant dense<0.000000e+00> : vector<24x32xf32>
    %376 = tpu.matmul %353, %375, %cst_123 {dimension_numbers = #tpu.dot_dimension_numbers<[1], [0], [0], [1], [0, 0, 1, 1], [], []>} : vector<24x16xf32>, vector<16x32xf32>, vector<24x32xf32> -> vector<24x32xf32>
    %377 = vector.broadcast %354 : vector<24x1xf32> to vector<24x32xf32>
    %378 = arith.addf %376, %377 : vector<24x32xf32>
    %cst_124 = arith.constant 0.000000e+00 : f32
    %379 = vector.broadcast %cst_124 : f32 to vector<24x32xf32>
    %380 = arith.maximumf %378, %379 : vector<24x32xf32>
    %c0_125 = arith.constant 0 : index
    %c0_126 = arith.constant 0 : index
    %381 = vector.load %arg51[%c0_125, %c0_126] : memref<24x1xf32, #tpu.memory_space<vmem>>, vector<24x1xf32>
    %c0_127 = arith.constant 0 : index
    %c0_128 = arith.constant 0 : index
    %382 = vector.load %arg52[%c0_127, %c0_128] : memref<32x24xf32, #tpu.memory_space<vmem>>, vector<32x24xf32>
    %c0_129 = arith.constant 0 : index
    %c0_130 = arith.constant 0 : index
    %383 = vector.load %arg53[%c0_129, %c0_130] : memref<32x1xf32, #tpu.memory_space<vmem>>, vector<32x1xf32>
    %384 = vector.broadcast %381 : vector<24x1xf32> to vector<24x32xf32>
    %385 = arith.mulf %384, %380 : vector<24x32xf32>
    %cst_131 = arith.constant dense<0.000000e+00> : vector<32x32xf32>
    %386 = tpu.matmul %382, %385, %cst_131 {dimension_numbers = #tpu.dot_dimension_numbers<[1], [0], [0], [1], [0, 0, 1, 1], [], []>} : vector<32x24xf32>, vector<24x32xf32>, vector<32x32xf32> -> vector<32x32xf32>
    %387 = vector.broadcast %383 : vector<32x1xf32> to vector<32x32xf32>
    %388 = arith.addf %386, %387 : vector<32x32xf32>
    %cst_132 = arith.constant 0.000000e+00 : f32
    %389 = vector.broadcast %cst_132 : f32 to vector<32x32xf32>
    %390 = arith.maximumf %388, %389 : vector<32x32xf32>
    %c0_133 = arith.constant 0 : index
    %c0_134 = arith.constant 0 : index
    %391 = vector.load %arg54[%c0_133, %c0_134] : memref<16x32xf32, #tpu.memory_space<vmem>>, vector<16x32xf32>
    %c0_135 = arith.constant 0 : index
    %c0_136 = arith.constant 0 : index
    %392 = vector.load %arg55[%c0_135, %c0_136] : memref<16x1xf32, #tpu.memory_space<vmem>>, vector<16x1xf32>
    %c0_137 = arith.constant 0 : index
    %c0_138 = arith.constant 0 : index
    %393 = vector.load %arg56[%c0_137, %c0_138] : memref<16x1xf32, #tpu.memory_space<vmem>>, vector<16x1xf32>
    %c0_139 = arith.constant 0 : index
    %c0_140 = arith.constant 0 : index
    %394 = vector.load %arg57[%c0_139, %c0_140] : memref<8x32xf32, #tpu.memory_space<vmem>>, vector<8x32xf32>
    %c0_141 = arith.constant 0 : index
    %c0_142 = arith.constant 0 : index
    %395 = vector.load %arg58[%c0_141, %c0_142] : memref<8x1xf32, #tpu.memory_space<vmem>>, vector<8x1xf32>
    %c0_143 = arith.constant 0 : index
    %c0_144 = arith.constant 0 : index
    %396 = vector.load %arg3[%c0_143, %c0_144] : memref<32x2xf32, #tpu.memory_space<vmem>>, vector<32x2xf32>
    %c0_145 = arith.constant 0 : index
    %c0_146 = arith.constant 0 : index
    %397 = vector.load %arg4[%c0_145, %c0_146] : memref<2x32xf32, #tpu.memory_space<vmem>>, vector<2x32xf32>
    %cst_147 = arith.constant dense<0.000000e+00> : vector<16x32xf32>
    %398 = tpu.matmul %391, %390, %cst_147 {dimension_numbers = #tpu.dot_dimension_numbers<[1], [0], [0], [1], [0, 0, 1, 1], [], []>} : vector<16x32xf32>, vector<32x32xf32>, vector<16x32xf32> -> vector<16x32xf32>
    %399 = vector.broadcast %392 : vector<16x1xf32> to vector<16x32xf32>
    %400 = arith.addf %398, %399 : vector<16x32xf32>
    %401 = math.tanh %400 : vector<16x32xf32>
    %402 = vector.broadcast %393 : vector<16x1xf32> to vector<16x32xf32>
    %403 = arith.mulf %402, %401 : vector<16x32xf32>
    %cst_148 = arith.constant dense<0.000000e+00> : vector<32xf32>
    %404 = vector.multi_reduction <add>, %403, %cst_148 [0] : vector<16x32xf32> to vector<32xf32>
    %405 = vector.shape_cast %404 : vector<32xf32> to vector<1x32xf32>
    %cst_149 = arith.constant dense<0xFF800000> : vector<1xf32>
    %406 = vector.multi_reduction <maximumf>, %405, %cst_149 [1] : vector<1x32xf32> to vector<1xf32>
    %407 = vector.shape_cast %406 : vector<1xf32> to vector<1x1xf32>
    %408 = vector.broadcast %407 : vector<1x1xf32> to vector<1x32xf32>
    %409 = arith.subf %405, %408 : vector<1x32xf32>
    %410 = math.exp %409 : vector<1x32xf32>
    %cst_150 = arith.constant dense<0.000000e+00> : vector<1x2xf32>
    %411 = tpu.matmul %410, %396, %cst_150 {dimension_numbers = #tpu.dot_dimension_numbers<[1], [0], [0], [1], [0, 0, 1, 1], [], []>} : vector<1x32xf32>, vector<32x2xf32>, vector<1x2xf32> -> vector<1x2xf32>
    %cst_151 = arith.constant dense<0.000000e+00> : vector<1x32xf32>
    %412 = tpu.matmul %411, %397, %cst_151 {dimension_numbers = #tpu.dot_dimension_numbers<[1], [0], [0], [1], [0, 0, 1, 1], [], []>} : vector<1x2xf32>, vector<2x32xf32>, vector<1x32xf32> -> vector<1x32xf32>
    %413 = arith.divf %410, %412 : vector<1x32xf32>
    %c0_152 = arith.constant 0 : index
    %c0_153 = arith.constant 0 : index
    %414 = vector.load %arg60[%c0_152, %c0_153] : memref<1x32xf32, #tpu.memory_space<vmem>>, vector<1x32xf32>
    tpu.vector_store %arg60[%c0_152, %c0_153], %413 {strides = array<i32>} : memref<1x32xf32, #tpu.memory_space<vmem>>, vector<1x32xf32>,
    %415 = vector.broadcast %413 : vector<1x32xf32> to vector<32x32xf32>
    %416 = arith.mulf %390, %415 : vector<32x32xf32>
    %cst_154 = arith.constant dense<0.000000e+00> : vector<32x2xf32>
    %417 = tpu.matmul %416, %396, %cst_154 {dimension_numbers = #tpu.dot_dimension_numbers<[1], [0], [0], [1], [0, 0, 1, 1], [], []>} : vector<32x32xf32>, vector<32x2xf32>, vector<32x2xf32> -> vector<32x2xf32>
    %cst_155 = arith.constant dense<0.000000e+00> : vector<8x2xf32>
    %418 = tpu.matmul %394, %417, %cst_155 {dimension_numbers = #tpu.dot_dimension_numbers<[1], [0], [0], [1], [0, 0, 1, 1], [], []>} : vector<8x32xf32>, vector<32x2xf32>, vector<8x2xf32> -> vector<8x2xf32>
    %419 = vector.broadcast %395 : vector<8x1xf32> to vector<8x2xf32>
    %420 = arith.addf %418, %419 : vector<8x2xf32>
    %c0_156 = arith.constant 0 : index
    %c0_157 = arith.constant 0 : index
    %421 = vector.load %arg59[%c0_156, %c0_157] : memref<8x2xf32, #tpu.memory_space<vmem>>, vector<8x2xf32>
    tpu.vector_store %arg59[%c0_156, %c0_157], %420 {strides = array<i32>} : memref<8x2xf32, #tpu.memory_space<vmem>>, vector<8x2xf32>,
    return
  }
}

</mosaic_0001>

<llo_original>
// kernel: forward.1
$region0: #{forward.1}
  #allocation0 [shape = 'u32[]', space=smem, size = 0x4, offset = 0x4, fixed_abs, tag = 'smem constant byte address 0x4 - core index']
  #allocation1 [shape = 'u32[144,128]{1,0:T(1,128)}', space=vmem, size = 0x12000, scoped, tag = 'internal scratch']
  %s0 = inlined_call_operand.smem [shape: u32[61], index: -1, kind: input, shape index: {}]
  %s1 = sld [smem:[%s0]]
  %s2 = scalar_lea.smem %s0, 1
  %s3 = sld [smem:[%s2]]
  %s4 = scalar_lea.smem %s0, 2
  %s5 = sld [smem:[%s4]]
  %s6 = scalar_lea.smem %s0, 3
  %s7 = sld [smem:[%s6]]
  %s8 = scalar_lea.smem %s0, 4
  %s9 = sld [smem:[%s8]]
  %s10 = scalar_lea.smem %s0, 5
  %s11 = sld [smem:[%s10]]
  %s12 = scalar_lea.smem %s0, 6
  %s13 = sld [smem:[%s12]]
  %s14 = scalar_lea.smem %s0, 7
  %s15 = sld [smem:[%s14]]
  %s16 = scalar_lea.smem %s0, 8
  %s17 = sld [smem:[%s16]]
  %s18 = scalar_lea.smem %s0, 9
  %s19 = sld [smem:[%s18]]
  %s20 = scalar_lea.smem %s0, 10
  %s21 = sld [smem:[%s20]]
  %s22 = scalar_lea.smem %s0, 11
  %s23 = sld [smem:[%s22]]
  %s24 = scalar_lea.smem %s0, 12
  %s25 = sld [smem:[%s24]]
  %s26 = scalar_lea.smem %s0, 13
  %s27 = sld [smem:[%s26]]
  %s28 = scalar_lea.smem %s0, 14
  %s29 = sld [smem:[%s28]]
  %s30 = scalar_lea.smem %s0, 15
  %s31 = sld [smem:[%s30]]
  %s32 = scalar_lea.smem %s0, 16
  %s33 = sld [smem:[%s32]]
  %s34 = scalar_lea.smem %s0, 17
  %s35 = sld [smem:[%s34]]
  %s36 = scalar_lea.smem %s0, 18
  %s37 = sld [smem:[%s36]]
  %s38 = scalar_lea.smem %s0, 19
  %s39 = sld [smem:[%s38]]
  %s40 = scalar_lea.smem %s0, 20
  %s41 = sld [smem:[%s40]]
  %s42 = scalar_lea.smem %s0, 21
  %s43 = sld [smem:[%s42]]
  %s44 = scalar_lea.smem %s0, 22
  %s45 = sld [smem:[%s44]]
  %s46 = scalar_lea.smem %s0, 23
  %s47 = sld [smem:[%s46]]
  %s48 = scalar_lea.smem %s0, 24
  %s49 = sld [smem:[%s48]]
  %s50 = scalar_lea.smem %s0, 25
  %s51 = sld [smem:[%s50]]
  %s52 = scalar_lea.smem %s0, 26
  %s53 = sld [smem:[%s52]]
  %s54 = scalar_lea.smem %s0, 27
  %s55 = sld [smem:[%s54]]
  %s56 = scalar_lea.smem %s0, 28
  %s57 = sld [smem:[%s56]]
  %s58 = scalar_lea.smem %s0, 29
  %s59 = sld [smem:[%s58]]
  %s60 = scalar_lea.smem %s0, 30
  %s61 = sld [smem:[%s60]]
  %s62 = scalar_lea.smem %s0, 31
  %s63 = sld [smem:[%s62]]
  %s64 = scalar_lea.smem %s0, 32
  %s65 = sld [smem:[%s64]]
  %s66 = scalar_lea.smem %s0, 33
  %s67 = sld [smem:[%s66]]
  %s68 = scalar_lea.smem %s0, 34
  %s69 = sld [smem:[%s68]]
  %s70 = scalar_lea.smem %s0, 35
  %s71 = sld [smem:[%s70]]
  %s72 = scalar_lea.smem %s0, 36
  %s73 = sld [smem:[%s72]]
  %s74 = scalar_lea.smem %s0, 37
  %s75 = sld [smem:[%s74]]
  %s76 = scalar_lea.smem %s0, 38
  %s77 = sld [smem:[%s76]]
  %s78 = scalar_lea.smem %s0, 39
  %s79 = sld [smem:[%s78]]
  %s80 = scalar_lea.smem %s0, 40
  %s81 = sld [smem:[%s80]]
  %s82 = scalar_lea.smem %s0, 41
  %s83 = sld [smem:[%s82]]
  %s84 = scalar_lea.smem %s0, 42
  %s85 = sld [smem:[%s84]]
  %s86 = scalar_lea.smem %s0, 43
  %s87 = sld [smem:[%s86]]
  %s88 = scalar_lea.smem %s0, 44
  %s89 = sld [smem:[%s88]]
  %s90 = scalar_lea.smem %s0, 45
  %s91 = sld [smem:[%s90]]
  %s92 = scalar_lea.smem %s0, 46
  %s93 = sld [smem:[%s92]]
  %s94 = scalar_lea.smem %s0, 47
  %s95 = sld [smem:[%s94]]
  %s96 = scalar_lea.smem %s0, 48
  %s97 = sld [smem:[%s96]]
  %s98 = scalar_lea.smem %s0, 49
  %s99 = sld [smem:[%s98]]
  %s100 = scalar_lea.smem %s0, 50
  %s101 = sld [smem:[%s100]]
  %s102 = scalar_lea.smem %s0, 51
  %s103 = sld [smem:[%s102]]
  %s104 = scalar_lea.smem %s0, 52
  %s105 = sld [smem:[%s104]]
  %s106 = scalar_lea.smem %s0, 53
  %s107 = sld [smem:[%s106]]
  %s108 = scalar_lea.smem %s0, 54
  %s109 = sld [smem:[%s108]]
  %s110 = scalar_lea.smem %s0, 55
  %s111 = sld [smem:[%s110]]
  %s112 = scalar_lea.smem %s0, 56
  %s113 = sld [smem:[%s112]]
  %s114 = scalar_lea.smem %s0, 57
  %s115 = sld [smem:[%s114]]
  %s116 = scalar_lea.smem %s0, 58
  %s117 = sld [smem:[%s116]]
  %s118 = scalar_lea.smem %s0, 59
  %s119 = sld [smem:[%s118]]
  %s120 = scalar_lea.smem %s0, 60
  %s121 = sld [smem:[%s120]]
  %122 = xla_tuple %s119, %s121
  %s123 = sld [smem:[#allocation0]]
  $region446: #{forward.1} parent=0
    _
  %s125 = ssub.s32 1, %s123
  %s126 = scalar_select 0, %s125, %s123
  $region1: #{forward.1} parent=0
    #allocation2 [shape = 'u8[512]{0}', space=vmem, size = 0x400, scoped, tag = 'input window, operand 1, single buffered']
    #allocation3 [shape = 's32[1]{0}', space=sflag, size = 0x4, scoped, tag = 'scoped memory for forward.1']
    #allocation4 [shape = 'u8[512]{0}', space=vmem, size = 0x400, scoped, tag = 'input window, operand 2, single buffered']
    #allocation5 [shape = 's32[1]{0}', space=sflag, size = 0x4, scoped, tag = 'scoped memory for forward.1']
    #allocation6 [shape = 'u8[1024]{0}', space=vmem, size = 0x400, scoped, tag = 'input window, operand 4, single buffered']
    #allocation7 [shape = 'u8[2048]{0}', space=vmem, size = 0x800, scoped, tag = 'input window, operand 5, single buffered']
    #allocation8 [shape = 's32[1]{0}', space=sflag, size = 0x4, scoped, tag = 'scoped memory for forward.1']
    #allocation9 [shape = 'u8[8192]{0}', space=vmem, size = 0x2000, scoped, tag = 'input window, operand 6, single buffered']
    #allocation10 [shape = 'u8[8192]{0}', space=vmem, size = 0x2000, scoped, tag = 'input window, operand 7, single buffered']
    #allocation11 [shape = 's32[1]{0}', space=sflag, size = 0x4, scoped, tag = 'scoped memory for forward.1']
    #allocation12 [shape = 'u8[8192]{0}', space=vmem, size = 0x2000, scoped, tag = 'input window, operand 8, single buffered']
    #allocation13 [shape = 'u8[8192]{0}', space=vmem, size = 0x2000, scoped, tag = 'input window, operand 9, single buffered']
    #allocation14 [shape = 's32[1]{0}', space=sflag, size = 0x4, scoped, tag = 'scoped memory for forward.1']
    #allocation15 [shape = 'u8[8192]{0}', space=vmem, size = 0x2000, scoped, tag = 'input window, operand 10, single buffered']
    #allocation16 [shape = 'u8[8192]{0}', space=vmem, size = 0x2000, scoped, tag = 'input window, operand 11, single buffered']
    #allocation17 [shape = 's32[1]{0}', space=sflag, size = 0x4, scoped, tag = 'scoped memory for forward.1']
    #allocation18 [shape = 'u8[8192]{0}', space=vmem, size = 0x2000, scoped, tag = 'input window, operand 12, single buffered']
    #allocation19 [shape = 'u8[8192]{0}', space=vmem, size = 0x2000, scoped, tag = 'input window, operand 13, single buffered']
    #allocation20 [shape = 's32[1]{0}', space=sflag, size = 0x4, scoped, tag = 'scoped memory for forward.1']
    #allocation21 [shape = 'u8[8192]{0}', space=vmem, size = 0x2000, scoped, tag = 'input window, operand 14, single buffered']
    #allocation22 [shape = 'u8[8192]{0}', space=vmem, size = 0x2000, scoped, tag = 'input window, operand 15, single buffered']
    #allocation23 [shape = 's32[1]{0}', space=sflag, size = 0x4, scoped, tag = 'scoped memory for forward.1']
    #allocation24 [shape = 'u8[8192]{0}', space=vmem, size = 0x2000, scoped, tag = 'input window, operand 16, single buffered']
    #allocation25 [shape = 'u8[8192]{0}', space=vmem, size = 0x2000, scoped, tag = 'input window, operand 17, single buffered']
    #allocation26 [shape = 's32[1]{0}', space=sflag, size = 0x4, scoped, tag = 'scoped memory for forward.1']
    #allocation27 [shape = 'u8[8192]{0}', space=vmem, size = 0x2000, scoped, tag = 'input window, operand 18, single buffered']
    #allocation28 [shape = 'u8[8192]{0}', space=vmem, size = 0x2000, scoped, tag = 'input window, operand 19, single buffered']
    #allocation29 [shape = 's32[1]{0}', space=sflag, size = 0x4, scoped, tag = 'scoped memory for forward.1']
    #allocation30 [shape = 'u8[8192]{0}', space=vmem, size = 0x2000, scoped, tag = 'input window, operand 20, single buffered']
    #allocation31 [shape = 'u8[8192]{0}', space=vmem, size = 0x2000, scoped, tag = 'input window, operand 21, single buffered']
    #allocation32 [shape = 's32[1]{0}', space=sflag, size = 0x4, scoped, tag = 'scoped memory for forward.1']
    #allocation33 [shape = 'u8[8192]{0}', space=vmem, size = 0x2000, scoped, tag = 'input window, operand 22, single buffered']
    #allocation34 [shape = 'u8[8192]{0}', space=vmem, size = 0x2000, scoped, tag = 'input window, operand 23, single buffered']
    #allocation35 [shape = 's32[1]{0}', space=sflag, size = 0x4, scoped, tag = 'scoped memory for forward.1']
    #allocation36 [shape = 'u8[8192]{0}', space=vmem, size = 0x2000, scoped, tag = 'input window, operand 24, single buffered']
    #allocation37 [shape = 'u8[8192]{0}', space=vmem, size = 0x2000, scoped, tag = 'input window, operand 25, single buffered']
    #allocation38 [shape = 's32[1]{0}', space=sflag, size = 0x4, scoped, tag = 'scoped memory for forward.1']
    #allocation39 [shape = 'u8[8192]{0}', space=vmem, size = 0x2000, scoped, tag = 'input window, operand 26, single buffered']
    #allocation40 [shape = 'u8[8192]{0}', space=vmem, size = 0x2000, scoped, tag = 'input window, operand 27, single buffered']
    #allocation41 [shape = 's32[1]{0}', space=sflag, size = 0x4, scoped, tag = 'scoped memory for forward.1']
    #allocation42 [shape = 'u8[8192]{0}', space=vmem, size = 0x2000, scoped, tag = 'input window, operand 28, single buffered']
    #allocation43 [shape = 'u8[8192]{0}', space=vmem, size = 0x2000, scoped, tag = 'input window, operand 29, single buffered']
    #allocation44 [shape = 's32[1]{0}', space=sflag, size = 0x4, scoped, tag = 'scoped memory for forward.1']
    #allocation45 [shape = 'u8[8192]{0}', space=vmem, size = 0x2000, scoped, tag = 'input window, operand 30, single buffered']
    #allocation46 [shape = 'u8[8192]{0}', space=vmem, size = 0x2000, scoped, tag = 'input window, operand 31, single buffered']
    #allocation47 [shape = 's32[1]{0}', space=sflag, size = 0x4, scoped, tag = 'scoped memory for forward.1']
    #allocation48 [shape = 'u8[8192]{0}', space=vmem, size = 0x2000, scoped, tag = 'input window, operand 32, single buffered']
    #allocation49 [shape = 'u8[8192]{0}', space=vmem, size = 0x2000, scoped, tag = 'input window, operand 33, single buffered']
    #allocation50 [shape = 's32[1]{0}', space=sflag, size = 0x4, scoped, tag = 'scoped memory for forward.1']
    #allocation51 [shape = 'u8[8192]{0}', space=vmem, size = 0x2000, scoped, tag = 'input window, operand 34, single buffered']
    #allocation52 [shape = 'u8[8192]{0}', space=vmem, size = 0x2000, scoped, tag = 'input window, operand 35, single buffered']
    #allocation53 [shape = 's32[1]{0}', space=sflag, size = 0x4, scoped, tag = 'scoped memory for forward.1']
    #allocation54 [shape = 'u8[8192]{0}', space=vmem, size = 0x2000, scoped, tag = 'input window, operand 36, single buffered']
    #allocation55 [shape = 'u8[8192]{0}', space=vmem, size = 0x2000, scoped, tag = 'input window, operand 37, single buffered']
    #allocation56 [shape = 's32[1]{0}', space=sflag, size = 0x4, scoped, tag = 'scoped memory for forward.1']
    #allocation57 [shape = 'u8[8192]{0}', space=vmem, size = 0x2000, scoped, tag = 'input window, operand 38, single buffered']
    #allocation58 [shape = 'u8[8192]{0}', space=vmem, size = 0x2000, scoped, tag = 'input window, operand 39, single buffered']
    #allocation59 [shape = 's32[1]{0}', space=sflag, size = 0x4, scoped, tag = 'scoped memory for forward.1']
    #allocation60 [shape = 'u8[8192]{0}', space=vmem, size = 0x2000, scoped, tag = 'input window, operand 40, single buffered']
    #allocation61 [shape = 'u8[8192]{0}', space=vmem, size = 0x2000, scoped, tag = 'input window, operand 41, single buffered']
    #allocation62 [shape = 's32[1]{0}', space=sflag, size = 0x4, scoped, tag = 'scoped memory for forward.1']
    #allocation63 [shape = 'u8[8192]{0}', space=vmem, size = 0x2000, scoped, tag = 'input window, operand 42, single buffered']
    #allocation64 [shape = 'u8[8192]{0}', space=vmem, size = 0x2000, scoped, tag = 'input window, operand 47, single buffered']
    #allocation65 [shape = 's32[1]{0}', space=sflag, size = 0x4, scoped, tag = 'scoped memory for forward.1']
    #allocation66 [shape = 'u8[8192]{0}', space=vmem, size = 0x2000, scoped, tag = 'input window, operand 48, single buffered']
    #allocation67 [shape = 'u8[8192]{0}', space=vmem, size = 0x2000, scoped, tag = 'input window, operand 54, single buffered']
    #allocation68 [shape = 's32[1]{0}', space=sflag, size = 0x4, scoped, tag = 'scoped memory for forward.1']
    #allocation69 [shape = 'u8[8192]{0}', space=vmem, size = 0x2000, scoped, tag = 'input window, operand 55, single buffered']
    #allocation70 [shape = 'u8[8192]{0}', space=vmem, size = 0x2000, scoped, tag = 'input window, operand 56, single buffered']
    #allocation71 [shape = 's32[1]{0}', space=sflag, size = 0x4, scoped, tag = 'scoped memory for forward.1']
    #allocation72 [shape = 'u8[4096]{0}', space=vmem, size = 0x1000, scoped, tag = 'input window, operand 57, single buffered']
    #allocation73 [shape = 'u8[4096]{0}', space=vmem, size = 0x1000, scoped, tag = 'input window, operand 58, single buffered']
    #allocation74 [shape = 's32[1]{0}', space=sflag, size = 0x4, scoped, tag = 'scoped memory for forward.1']
    %127 = vsyncpa [#allocation3], 0
    %128 = vsyncpa [#allocation5], 0
    %129 = vsyncpa [#allocation8], 0
    %130 = vsyncpa [#allocation11], 0
    %131 = vsyncpa [#allocation14], 0
    %132 = vsyncpa [#allocation17], 0
    %133 = vsyncpa [#allocation20], 0
    %134 = vsyncpa [#allocation23], 0
    %135 = vsyncpa [#allocation26], 0
    %136 = vsyncpa [#allocation29], 0
    %137 = vsyncpa [#allocation32], 0
    %138 = vsyncpa [#allocation35], 0
    %139 = vsyncpa [#allocation38], 0
    %140 = vsyncpa [#allocation41], 0
    %141 = vsyncpa [#allocation44], 0
    %142 = vsyncpa [#allocation47], 0
    %143 = vsyncpa [#allocation50], 0
    %144 = vsyncpa [#allocation53], 0
    %145 = vsyncpa [#allocation56], 0
    %146 = vsyncpa [#allocation59], 0
    %147 = vsyncpa [#allocation62], 0
    %148 = vsyncpa [#allocation65], 0
    %149 = vsyncpa [#allocation68], 0
    %150 = vsyncpa [#allocation71], 0
    %151 = vsyncpa [#allocation74], 0
    // Predicated region
    $region2: #{forward.1} parent=1 // pred_check
      _
    $region3: #{forward.1} parent=1 // pred_check_branch
      %153 = sbr.rel (0) target = $region5
    $region4: #{forward.1} parent=1 // pred_region
      _
    $region5: #{forward.1} parent=1 // pred_fallthru
      _
    // Predicated region
    $region6: #{forward.1} parent=1 // pred_check
      _
    $region7: #{forward.1} parent=1 // pred_check_branch
      %155 = sbr.rel (0) target = $region9
    $region8: #{forward.1} parent=1 // pred_region
      %s157 = ssub.s32 16, 16
      %158 = vsyncadd [#allocation3], %s157
      %s160 = sshll.u32 [#allocation2], 4
      %s161 = int_to_ptr.vmem [resolvable:$true] %s160
      %163 = dma.hbm_to_vmem [thread:$0]  %s3, 16, %s161, [#allocation3]
    $region9: #{forward.1} parent=1 // pred_fallthru
      _
    // Predicated region
    $region10: #{forward.1} parent=1 // pred_check
      _
    $region11: #{forward.1} parent=1 // pred_check_branch
      %165 = sbr.rel (0) target = $region13
    $region12: #{forward.1} parent=1 // pred_region
      %s167 = ssub.s32 16, 16
      %168 = vsyncadd [#allocation5], %s167
      %s170 = sshll.u32 [#allocation4], 4
      %s171 = int_to_ptr.vmem [resolvable:$true] %s170
      %173 = dma.hbm_to_vmem [thread:$0]  %s5, 16, %s171, [#allocation5]
    $region13: #{forward.1} parent=1 // pred_fallthru
      _
    // Predicated region
    $region14: #{forward.1} parent=1 // pred_check
      _
    $region15: #{forward.1} parent=1 // pred_check_branch
      %175 = sbr.rel (0) target = $region17
    $region16: #{forward.1} parent=1 // pred_region
      _
    $region17: #{forward.1} parent=1 // pred_fallthru
      _
    // Predicated region
    $region18: #{forward.1} parent=1 // pred_check
      _
    $region19: #{forward.1} parent=1 // pred_check_branch
      %177 = sbr.rel (0) target = $region21
    $region20: #{forward.1} parent=1 // pred_region
      %s179 = ssub.s32 32, 32
      %180 = vsyncadd [#allocation5], %s179
      %s182 = sshll.u32 [#allocation6], 4
      %s183 = int_to_ptr.vmem [resolvable:$true] %s182
      %185 = dma.hbm_to_vmem [thread:$0]  %s9, 32, %s183, [#allocation5]
    $region21: #{forward.1} parent=1 // pred_fallthru
      _
    // Predicated region
    $region22: #{forward.1} parent=1 // pred_check
      _
    $region23: #{forward.1} parent=1 // pred_check_branch
      %187 = sbr.rel (0) target = $region25
    $region24: #{forward.1} parent=1 // pred_region
      %s189 = ssub.s32 64, 64
      %190 = vsyncadd [#allocation8], %s189
      %s192 = sshll.u32 [#allocation7], 4
      %s193 = int_to_ptr.vmem [resolvable:$true] %s192
      %195 = dma.hbm_to_vmem [thread:$0]  %s11, 64, %s193, [#allocation8]
    $region25: #{forward.1} parent=1 // pred_fallthru
      _
    // Predicated region
    $region26: #{forward.1} parent=1 // pred_check
      _
    $region27: #{forward.1} parent=1 // pred_check_branch
      %197 = sbr.rel (0) target = $region29
    $region28: #{forward.1} parent=1 // pred_region
      %s199 = ssub.s32 256, 256
      %200 = vsyncadd [#allocation8], %s199
      %s201 = sshll.u32 [#allocation9], 4
      %s202 = int_to_ptr.vmem [resolvable:$true] %s201
      %207 = dma.hbm_to_vmem [thread:$0]  %s13, 256, %s202, [#allocation8], 128, 128, 8
    $region29: #{forward.1} parent=1 // pred_fallthru
      _
    // Predicated region
    $region30: #{forward.1} parent=1 // pred_check
      _
    $region31: #{forward.1} parent=1 // pred_check_branch
      %209 = sbr.rel (0) target = $region33
    $region32: #{forward.1} parent=1 // pred_region
      %s211 = ssub.s32 256, 256
      %212 = vsyncadd [#allocation11], %s211
      %s213 = sshll.u32 [#allocation10], 4
      %s214 = int_to_ptr.vmem [resolvable:$true] %s213
      %219 = dma.hbm_to_vmem [thread:$0]  %s15, 256, %s214, [#allocation11], 128, 128, 8
    $region33: #{forward.1} parent=1 // pred_fallthru
      _
    // Predicated region
    $region34: #{forward.1} parent=1 // pred_check
      _
    $region35: #{forward.1} parent=1 // pred_check_branch
      %221 = sbr.rel (0) target = $region37
    $region36: #{forward.1} parent=1 // pred_region
      %s223 = ssub.s32 256, 256
      %224 = vsyncadd [#allocation11], %s223
      %s225 = sshll.u32 [#allocation12], 4
      %s226 = int_to_ptr.vmem [resolvable:$true] %s225
      %231 = dma.hbm_to_vmem [thread:$0]  %s17, 256, %s226, [#allocation11], 128, 128, 8
    $region37: #{forward.1} parent=1 // pred_fallthru
      _
    // Predicated region
    $region38: #{forward.1} parent=1 // pred_check
      _
    $region39: #{forward.1} parent=1 // pred_check_branch
      %233 = sbr.rel (0) target = $region41
    $region40: #{forward.1} parent=1 // pred_region
      %s235 = ssub.s32 256, 256
      %236 = vsyncadd [#allocation14], %s235
      %s237 = sshll.u32 [#allocation13], 4
      %s238 = int_to_ptr.vmem [resolvable:$true] %s237
      %243 = dma.hbm_to_vmem [thread:$0]  %s19, 256, %s238, [#allocation14], 128, 128, 8
    $region41: #{forward.1} parent=1 // pred_fallthru
      _
    // Predicated region
    $region42: #{forward.1} parent=1 // pred_check
      _
    $region43: #{forward.1} parent=1 // pred_check_branch
      %245 = sbr.rel (0) target = $region45
    $region44: #{forward.1} parent=1 // pred_region
      %s247 = ssub.s32 256, 256
      %248 = vsyncadd [#allocation14], %s247
      %s249 = sshll.u32 [#allocation15], 4
      %s250 = int_to_ptr.vmem [resolvable:$true] %s249
      %255 = dma.hbm_to_vmem [thread:$0]  %s21, 256, %s250, [#allocation14], 128, 128, 8
    $region45: #{forward.1} parent=1 // pred_fallthru
      _
    // Predicated region
    $region46: #{forward.1} parent=1 // pred_check
      _
    $region47: #{forward.1} parent=1 // pred_check_branch
      %257 = sbr.rel (0) target = $region49
    $region48: #{forward.1} parent=1 // pred_region
      %s259 = ssub.s32 256, 256
      %260 = vsyncadd [#allocation17], %s259
      %s261 = sshll.u32 [#allocation16], 4
      %s262 = int_to_ptr.vmem [resolvable:$true] %s261
      %267 = dma.hbm_to_vmem [thread:$0]  %s23, 256, %s262, [#allocation17], 128, 128, 8
    $region49: #{forward.1} parent=1 // pred_fallthru
      _
    // Predicated region
    $region50: #{forward.1} parent=1 // pred_check
      _
    $region51: #{forward.1} parent=1 // pred_check_branch
      %269 = sbr.rel (0) target = $region53
    $region52: #{forward.1} parent=1 // pred_region
      %s271 = ssub.s32 256, 256
      %272 = vsyncadd [#allocation17], %s271
      %s273 = sshll.u32 [#allocation18], 4
      %s274 = int_to_ptr.vmem [resolvable:$true] %s273
      %279 = dma.hbm_to_vmem [thread:$0]  %s25, 256, %s274, [#allocation17], 128, 128, 8
    $region53: #{forward.1} parent=1 // pred_fallthru
      _
    // Predicated region
    $region54: #{forward.1} parent=1 // pred_check
      _
    $region55: #{forward.1} parent=1 // pred_check_branch
      %281 = sbr.rel (0) target = $region57
    $region56: #{forward.1} parent=1 // pred_region
      %s283 = ssub.s32 256, 256
      %284 = vsyncadd [#allocation20], %s283
      %s285 = sshll.u32 [#allocation19], 4
      %s286 = int_to_ptr.vmem [resolvable:$true] %s285
      %291 = dma.hbm_to_vmem [thread:$0]  %s27, 256, %s286, [#allocation20], 128, 128, 8
    $region57: #{forward.1} parent=1 // pred_fallthru
      _
    // Predicated region
    $region58: #{forward.1} parent=1 // pred_check
      _
    $region59: #{forward.1} parent=1 // pred_check_branch
      %293 = sbr.rel (0) target = $region61
    $region60: #{forward.1} parent=1 // pred_region
      %s295 = ssub.s32 256, 256
      %296 = vsyncadd [#allocation20], %s295
      %s297 = sshll.u32 [#allocation21], 4
      %s298 = int_to_ptr.vmem [resolvable:$true] %s297
      %303 = dma.hbm_to_vmem [thread:$0]  %s29, 256, %s298, [#allocation20], 128, 128, 8
    $region61: #{forward.1} parent=1 // pred_fallthru
      _
    // Predicated region
    $region62: #{forward.1} parent=1 // pred_check
      _
    $region63: #{forward.1} parent=1 // pred_check_branch
      %305 = sbr.rel (0) target = $region65
    $region64: #{forward.1} parent=1 // pred_region
      %s307 = ssub.s32 256, 256
      %308 = vsyncadd [#allocation23], %s307
      %s309 = sshll.u32 [#allocation22], 4
      %s310 = int_to_ptr.vmem [resolvable:$true] %s309
      %315 = dma.hbm_to_vmem [thread:$0]  %s31, 256, %s310, [#allocation23], 128, 128, 8
    $region65: #{forward.1} parent=1 // pred_fallthru
      _
    // Predicated region
    $region66: #{forward.1} parent=1 // pred_check
      _
    $region67: #{forward.1} parent=1 // pred_check_branch
      %317 = sbr.rel (0) target = $region69
    $region68: #{forward.1} parent=1 // pred_region
      %s319 = ssub.s32 256, 256
      %320 = vsyncadd [#allocation23], %s319
      %s321 = sshll.u32 [#allocation24], 4
      %s322 = int_to_ptr.vmem [resolvable:$true] %s321
      %327 = dma.hbm_to_vmem [thread:$0]  %s33, 256, %s322, [#allocation23], 128, 128, 8
    $region69: #{forward.1} parent=1 // pred_fallthru
      _
    // Predicated region
    $region70: #{forward.1} parent=1 // pred_check
      _
    $region71: #{forward.1} parent=1 // pred_check_branch
      %329 = sbr.rel (0) target = $region73
    $region72: #{forward.1} parent=1 // pred_region
      %s331 = ssub.s32 256, 256
      %332 = vsyncadd [#allocation26], %s331
      %s333 = sshll.u32 [#allocation25], 4
      %s334 = int_to_ptr.vmem [resolvable:$true] %s333
      %339 = dma.hbm_to_vmem [thread:$0]  %s35, 256, %s334, [#allocation26], 128, 128, 8
    $region73: #{forward.1} parent=1 // pred_fallthru
      _
    // Predicated region
    $region74: #{forward.1} parent=1 // pred_check
      _
    $region75: #{forward.1} parent=1 // pred_check_branch
      %341 = sbr.rel (0) target = $region77
    $region76: #{forward.1} parent=1 // pred_region
      %s343 = ssub.s32 256, 256
      %344 = vsyncadd [#allocation26], %s343
      %s345 = sshll.u32 [#allocation27], 4
      %s346 = int_to_ptr.vmem [resolvable:$true] %s345
      %351 = dma.hbm_to_vmem [thread:$0]  %s37, 256, %s346, [#allocation26], 128, 128, 8
    $region77: #{forward.1} parent=1 // pred_fallthru
      _
    // Predicated region
    $region78: #{forward.1} parent=1 // pred_check
      _
    $region79: #{forward.1} parent=1 // pred_check_branch
      %353 = sbr.rel (0) target = $region81
    $region80: #{forward.1} parent=1 // pred_region
      %s355 = ssub.s32 256, 256
      %356 = vsyncadd [#allocation29], %s355
      %s357 = sshll.u32 [#allocation28], 4
      %s358 = int_to_ptr.vmem [resolvable:$true] %s357
      %363 = dma.hbm_to_vmem [thread:$0]  %s39, 256, %s358, [#allocation29], 128, 128, 8
    $region81: #{forward.1} parent=1 // pred_fallthru
      _
    // Predicated region
    $region82: #{forward.1} parent=1 // pred_check
      _
    $region83: #{forward.1} parent=1 // pred_check_branch
      %365 = sbr.rel (0) target = $region85
    $region84: #{forward.1} parent=1 // pred_region
      %s367 = ssub.s32 256, 256
      %368 = vsyncadd [#allocation29], %s367
      %s369 = sshll.u32 [#allocation30], 4
      %s370 = int_to_ptr.vmem [resolvable:$true] %s369
      %375 = dma.hbm_to_vmem [thread:$0]  %s41, 256, %s370, [#allocation29], 128, 128, 8
    $region85: #{forward.1} parent=1 // pred_fallthru
      _
    // Predicated region
    $region86: #{forward.1} parent=1 // pred_check
      _
    $region87: #{forward.1} parent=1 // pred_check_branch
      %377 = sbr.rel (0) target = $region89
    $region88: #{forward.1} parent=1 // pred_region
      %s379 = ssub.s32 256, 256
      %380 = vsyncadd [#allocation32], %s379
      %s381 = sshll.u32 [#allocation31], 4
      %s382 = int_to_ptr.vmem [resolvable:$true] %s381
      %387 = dma.hbm_to_vmem [thread:$0]  %s43, 256, %s382, [#allocation32], 128, 128, 8
    $region89: #{forward.1} parent=1 // pred_fallthru
      _
    // Predicated region
    $region90: #{forward.1} parent=1 // pred_check
      _
    $region91: #{forward.1} parent=1 // pred_check_branch
      %389 = sbr.rel (0) target = $region93
    $region92: #{forward.1} parent=1 // pred_region
      %s391 = ssub.s32 256, 256
      %392 = vsyncadd [#allocation32], %s391
      %s393 = sshll.u32 [#allocation33], 4
      %s394 = int_to_ptr.vmem [resolvable:$true] %s393
      %399 = dma.hbm_to_vmem [thread:$0]  %s45, 256, %s394, [#allocation32], 128, 128, 8
    $region93: #{forward.1} parent=1 // pred_fallthru
      _
    // Predicated region
    $region94: #{forward.1} parent=1 // pred_check
      _
    $region95: #{forward.1} parent=1 // pred_check_branch
      %401 = sbr.rel (0) target = $region97
    $region96: #{forward.1} parent=1 // pred_region
      %s403 = ssub.s32 256, 256
      %404 = vsyncadd [#allocation35], %s403
      %s405 = sshll.u32 [#allocation34], 4
      %s406 = int_to_ptr.vmem [resolvable:$true] %s405
      %411 = dma.hbm_to_vmem [thread:$0]  %s47, 256, %s406, [#allocation35], 128, 128, 8
    $region97: #{forward.1} parent=1 // pred_fallthru
      _
    // Predicated region
    $region98: #{forward.1} parent=1 // pred_check
      _
    $region99: #{forward.1} parent=1 // pred_check_branch
      %413 = sbr.rel (0) target = $region101
    $region100: #{forward.1} parent=1 // pred_region
      %s415 = ssub.s32 256, 256
      %416 = vsyncadd [#allocation35], %s415
      %s417 = sshll.u32 [#allocation36], 4
      %s418 = int_to_ptr.vmem [resolvable:$true] %s417
      %423 = dma.hbm_to_vmem [thread:$0]  %s49, 256, %s418, [#allocation35], 128, 128, 8
    $region101: #{forward.1} parent=1 // pred_fallthru
      _
    // Predicated region
    $region102: #{forward.1} parent=1 // pred_check
      _
    $region103: #{forward.1} parent=1 // pred_check_branch
      %425 = sbr.rel (0) target = $region105
    $region104: #{forward.1} parent=1 // pred_region
      %s427 = ssub.s32 256, 256
      %428 = vsyncadd [#allocation38], %s427
      %s429 = sshll.u32 [#allocation37], 4
      %s430 = int_to_ptr.vmem [resolvable:$true] %s429
      %435 = dma.hbm_to_vmem [thread:$0]  %s51, 256, %s430, [#allocation38], 128, 128, 8
    $region105: #{forward.1} parent=1 // pred_fallthru
      _
    // Predicated region
    $region106: #{forward.1} parent=1 // pred_check
      _
    $region107: #{forward.1} parent=1 // pred_check_branch
      %437 = sbr.rel (0) target = $region109
    $region108: #{forward.1} parent=1 // pred_region
      %s439 = ssub.s32 256, 256
      %440 = vsyncadd [#allocation38], %s439
      %s441 = sshll.u32 [#allocation39], 4
      %s442 = int_to_ptr.vmem [resolvable:$true] %s441
      %447 = dma.hbm_to_vmem [thread:$0]  %s53, 256, %s442, [#allocation38], 128, 128, 8
    $region109: #{forward.1} parent=1 // pred_fallthru
      _
    // Predicated region
    $region110: #{forward.1} parent=1 // pred_check
      _
    $region111: #{forward.1} parent=1 // pred_check_branch
      %449 = sbr.rel (0) target = $region113
    $region112: #{forward.1} parent=1 // pred_region
      %s451 = ssub.s32 256, 256
      %452 = vsyncadd [#allocation41], %s451
      %s453 = sshll.u32 [#allocation40], 4
      %s454 = int_to_ptr.vmem [resolvable:$true] %s453
      %459 = dma.hbm_to_vmem [thread:$0]  %s55, 256, %s454, [#allocation41], 128, 128, 8
    $region113: #{forward.1} parent=1 // pred_fallthru
      _
    // Predicated region
    $region114: #{forward.1} parent=1 // pred_check
      _
    $region115: #{forward.1} parent=1 // pred_check_branch
      %461 = sbr.rel (0) target = $region117
    $region116: #{forward.1} parent=1 // pred_region
      %s463 = ssub.s32 256, 256
      %464 = vsyncadd [#allocation41], %s463
      %s465 = sshll.u32 [#allocation42], 4
      %s466 = int_to_ptr.vmem [resolvable:$true] %s465
      %471 = dma.hbm_to_vmem [thread:$0]  %s57, 256, %s466, [#allocation41], 128, 128, 8
    $region117: #{forward.1} parent=1 // pred_fallthru
      _
    // Predicated region
    $region118: #{forward.1} parent=1 // pred_check
      _
    $region119: #{forward.1} parent=1 // pred_check_branch
      %473 = sbr.rel (0) target = $region121
    $region120: #{forward.1} parent=1 // pred_region
      %s475 = ssub.s32 256, 256
      %476 = vsyncadd [#allocation44], %s475
      %s477 = sshll.u32 [#allocation43], 4
      %s478 = int_to_ptr.vmem [resolvable:$true] %s477
      %483 = dma.hbm_to_vmem [thread:$0]  %s59, 256, %s478, [#allocation44], 128, 128, 8
    $region121: #{forward.1} parent=1 // pred_fallthru
      _
    // Predicated region
    $region122: #{forward.1} parent=1 // pred_check
      _
    $region123: #{forward.1} parent=1 // pred_check_branch
      %485 = sbr.rel (0) target = $region125
    $region124: #{forward.1} parent=1 // pred_region
      %s487 = ssub.s32 256, 256
      %488 = vsyncadd [#allocation44], %s487
      %s489 = sshll.u32 [#allocation45], 4
      %s490 = int_to_ptr.vmem [resolvable:$true] %s489
      %495 = dma.hbm_to_vmem [thread:$0]  %s61, 256, %s490, [#allocation44], 128, 128, 8
    $region125: #{forward.1} parent=1 // pred_fallthru
      _
    // Predicated region
    $region126: #{forward.1} parent=1 // pred_check
      _
    $region127: #{forward.1} parent=1 // pred_check_branch
      %497 = sbr.rel (0) target = $region129
    $region128: #{forward.1} parent=1 // pred_region
      %s499 = ssub.s32 256, 256
      %500 = vsyncadd [#allocation47], %s499
      %s501 = sshll.u32 [#allocation46], 4
      %s502 = int_to_ptr.vmem [resolvable:$true] %s501
      %507 = dma.hbm_to_vmem [thread:$0]  %s63, 256, %s502, [#allocation47], 128, 128, 8
    $region129: #{forward.1} parent=1 // pred_fallthru
      _
    // Predicated region
    $region130: #{forward.1} parent=1 // pred_check
      _
    $region131: #{forward.1} parent=1 // pred_check_branch
      %509 = sbr.rel (0) target = $region133
    $region132: #{forward.1} parent=1 // pred_region
      %s511 = ssub.s32 256, 256
      %512 = vsyncadd [#allocation47], %s511
      %s513 = sshll.u32 [#allocation48], 4
      %s514 = int_to_ptr.vmem [resolvable:$true] %s513
      %519 = dma.hbm_to_vmem [thread:$0]  %s65, 256, %s514, [#allocation47], 128, 128, 8
    $region133: #{forward.1} parent=1 // pred_fallthru
      _
    // Predicated region
    $region134: #{forward.1} parent=1 // pred_check
      _
    $region135: #{forward.1} parent=1 // pred_check_branch
      %521 = sbr.rel (0) target = $region137
    $region136: #{forward.1} parent=1 // pred_region
      %s523 = ssub.s32 256, 256
      %524 = vsyncadd [#allocation50], %s523
      %s525 = sshll.u32 [#allocation49], 4
      %s526 = int_to_ptr.vmem [resolvable:$true] %s525
      %531 = dma.hbm_to_vmem [thread:$0]  %s67, 256, %s526, [#allocation50], 128, 128, 8
    $region137: #{forward.1} parent=1 // pred_fallthru
      _
    // Predicated region
    $region138: #{forward.1} parent=1 // pred_check
      _
    $region139: #{forward.1} parent=1 // pred_check_branch
      %533 = sbr.rel (0) target = $region141
    $region140: #{forward.1} parent=1 // pred_region
      %s535 = ssub.s32 256, 256
      %536 = vsyncadd [#allocation50], %s535
      %s537 = sshll.u32 [#allocation51], 4
      %s538 = int_to_ptr.vmem [resolvable:$true] %s537
      %543 = dma.hbm_to_vmem [thread:$0]  %s69, 256, %s538, [#allocation50], 128, 128, 8
    $region141: #{forward.1} parent=1 // pred_fallthru
      _
    // Predicated region
    $region142: #{forward.1} parent=1 // pred_check
      _
    $region143: #{forward.1} parent=1 // pred_check_branch
      %545 = sbr.rel (0) target = $region145
    $region144: #{forward.1} parent=1 // pred_region
      %s547 = ssub.s32 256, 256
      %548 = vsyncadd [#allocation53], %s547
      %s549 = sshll.u32 [#allocation52], 4
      %s550 = int_to_ptr.vmem [resolvable:$true] %s549
      %555 = dma.hbm_to_vmem [thread:$0]  %s71, 256, %s550, [#allocation53], 128, 128, 8
    $region145: #{forward.1} parent=1 // pred_fallthru
      _
    // Predicated region
    $region146: #{forward.1} parent=1 // pred_check
      _
    $region147: #{forward.1} parent=1 // pred_check_branch
      %557 = sbr.rel (0) target = $region149
    $region148: #{forward.1} parent=1 // pred_region
      %s559 = ssub.s32 256, 256
      %560 = vsyncadd [#allocation53], %s559
      %s561 = sshll.u32 [#allocation54], 4
      %s562 = int_to_ptr.vmem [resolvable:$true] %s561
      %567 = dma.hbm_to_vmem [thread:$0]  %s73, 256, %s562, [#allocation53], 128, 128, 8
    $region149: #{forward.1} parent=1 // pred_fallthru
      _
    // Predicated region
    $region150: #{forward.1} parent=1 // pred_check
      _
    $region151: #{forward.1} parent=1 // pred_check_branch
      %569 = sbr.rel (0) target = $region153
    $region152: #{forward.1} parent=1 // pred_region
      %s571 = ssub.s32 256, 256
      %572 = vsyncadd [#allocation56], %s571
      %s573 = sshll.u32 [#allocation55], 4
      %s574 = int_to_ptr.vmem [resolvable:$true] %s573
      %579 = dma.hbm_to_vmem [thread:$0]  %s75, 256, %s574, [#allocation56], 128, 128, 8
    $region153: #{forward.1} parent=1 // pred_fallthru
      _
    // Predicated region
    $region154: #{forward.1} parent=1 // pred_check
      _
    $region155: #{forward.1} parent=1 // pred_check_branch
      %581 = sbr.rel (0) target = $region157
    $region156: #{forward.1} parent=1 // pred_region
      %s583 = ssub.s32 256, 256
      %584 = vsyncadd [#allocation56], %s583
      %s585 = sshll.u32 [#allocation57], 4
      %s586 = int_to_ptr.vmem [resolvable:$true] %s585
      %591 = dma.hbm_to_vmem [thread:$0]  %s77, 256, %s586, [#allocation56], 128, 128, 8
    $region157: #{forward.1} parent=1 // pred_fallthru
      _
    // Predicated region
    $region158: #{forward.1} parent=1 // pred_check
      _
    $region159: #{forward.1} parent=1 // pred_check_branch
      %593 = sbr.rel (0) target = $region161
    $region160: #{forward.1} parent=1 // pred_region
      %s595 = ssub.s32 256, 256
      %596 = vsyncadd [#allocation59], %s595
      %s597 = sshll.u32 [#allocation58], 4
      %s598 = int_to_ptr.vmem [resolvable:$true] %s597
      %603 = dma.hbm_to_vmem [thread:$0]  %s79, 256, %s598, [#allocation59], 128, 128, 8
    $region161: #{forward.1} parent=1 // pred_fallthru
      _
    // Predicated region
    $region162: #{forward.1} parent=1 // pred_check
      _
    $region163: #{forward.1} parent=1 // pred_check_branch
      %605 = sbr.rel (0) target = $region165
    $region164: #{forward.1} parent=1 // pred_region
      %s607 = ssub.s32 256, 256
      %608 = vsyncadd [#allocation59], %s607
      %s609 = sshll.u32 [#allocation60], 4
      %s610 = int_to_ptr.vmem [resolvable:$true] %s609
      %615 = dma.hbm_to_vmem [thread:$0]  %s81, 256, %s610, [#allocation59], 128, 128, 8
    $region165: #{forward.1} parent=1 // pred_fallthru
      _
    // Predicated region
    $region166: #{forward.1} parent=1 // pred_check
      _
    $region167: #{forward.1} parent=1 // pred_check_branch
      %617 = sbr.rel (0) target = $region169
    $region168: #{forward.1} parent=1 // pred_region
      %s619 = ssub.s32 256, 256
      %620 = vsyncadd [#allocation62], %s619
      %s621 = sshll.u32 [#allocation61], 4
      %s622 = int_to_ptr.vmem [resolvable:$true] %s621
      %627 = dma.hbm_to_vmem [thread:$0]  %s83, 256, %s622, [#allocation62], 128, 128, 8
    $region169: #{forward.1} parent=1 // pred_fallthru
      _
    // Predicated region
    $region170: #{forward.1} parent=1 // pred_check
      _
    $region171: #{forward.1} parent=1 // pred_check_branch
      %629 = sbr.rel (0) target = $region173
    $region172: #{forward.1} parent=1 // pred_region
      %s631 = ssub.s32 256, 256
      %632 = vsyncadd [#allocation62], %s631
      %s633 = sshll.u32 [#allocation63], 4
      %s634 = int_to_ptr.vmem [resolvable:$true] %s633
      %639 = dma.hbm_to_vmem [thread:$0]  %s85, 256, %s634, [#allocation62], 128, 128, 8
    $region173: #{forward.1} parent=1 // pred_fallthru
      _
    // Predicated region
    $region174: #{forward.1} parent=1 // pred_check
      _
    $region175: #{forward.1} parent=1 // pred_check_branch
      %641 = sbr.rel (0) target = $region177
    $region176: #{forward.1} parent=1 // pred_region
      _
    $region177: #{forward.1} parent=1 // pred_fallthru
      _
    // Predicated region
    $region178: #{forward.1} parent=1 // pred_check
      _
    $region179: #{forward.1} parent=1 // pred_check_branch
      %643 = sbr.rel (0) target = $region181
    $region180: #{forward.1} parent=1 // pred_region
      _
    $region181: #{forward.1} parent=1 // pred_fallthru
      _
    // Predicated region
    $region182: #{forward.1} parent=1 // pred_check
      _
    $region183: #{forward.1} parent=1 // pred_check_branch
      %645 = sbr.rel (0) target = $region185
    $region184: #{forward.1} parent=1 // pred_region
      _
    $region185: #{forward.1} parent=1 // pred_fallthru
      _
    // Predicated region
    $region186: #{forward.1} parent=1 // pred_check
      _
    $region187: #{forward.1} parent=1 // pred_check_branch
      %647 = sbr.rel (0) target = $region189
    $region188: #{forward.1} parent=1 // pred_region
      _
    $region189: #{forward.1} parent=1 // pred_fallthru
      _
    // Predicated region
    $region190: #{forward.1} parent=1 // pred_check
      _
    $region191: #{forward.1} parent=1 // pred_check_branch
      %649 = sbr.rel (0) target = $region193
    $region192: #{forward.1} parent=1 // pred_region
      %s651 = ssub.s32 256, 256
      %652 = vsyncadd [#allocation65], %s651
      %s653 = sshll.u32 [#allocation64], 4
      %s654 = int_to_ptr.vmem [resolvable:$true] %s653
      %659 = dma.hbm_to_vmem [thread:$0]  %s95, 256, %s654, [#allocation65], 128, 128, 8
    $region193: #{forward.1} parent=1 // pred_fallthru
      _
    // Predicated region
    $region194: #{forward.1} parent=1 // pred_check
      _
    $region195: #{forward.1} parent=1 // pred_check_branch
      %661 = sbr.rel (0) target = $region197
    $region196: #{forward.1} parent=1 // pred_region
      %s663 = ssub.s32 256, 256
      %664 = vsyncadd [#allocation65], %s663
      %s665 = sshll.u32 [#allocation66], 4
      %s666 = int_to_ptr.vmem [resolvable:$true] %s665
      %671 = dma.hbm_to_vmem [thread:$0]  %s97, 256, %s666, [#allocation65], 128, 128, 8
    $region197: #{forward.1} parent=1 // pred_fallthru
      _
    // Predicated region
    $region198: #{forward.1} parent=1 // pred_check
      _
    $region199: #{forward.1} parent=1 // pred_check_branch
      %673 = sbr.rel (0) target = $region201
    $region200: #{forward.1} parent=1 // pred_region
      _
    $region201: #{forward.1} parent=1 // pred_fallthru
      _
    // Predicated region
    $region202: #{forward.1} parent=1 // pred_check
      _
    $region203: #{forward.1} parent=1 // pred_check_branch
      %675 = sbr.rel (0) target = $region205
    $region204: #{forward.1} parent=1 // pred_region
      _
    $region205: #{forward.1} parent=1 // pred_fallthru
      _
    // Predicated region
    $region206: #{forward.1} parent=1 // pred_check
      _
    $region207: #{forward.1} parent=1 // pred_check_branch
      %677 = sbr.rel (0) target = $region209
    $region208: #{forward.1} parent=1 // pred_region
      _
    $region209: #{forward.1} parent=1 // pred_fallthru
      _
    // Predicated region
    $region210: #{forward.1} parent=1 // pred_check
      _
    $region211: #{forward.1} parent=1 // pred_check_branch
      %679 = sbr.rel (0) target = $region213
    $region212: #{forward.1} parent=1 // pred_region
      _
    $region213: #{forward.1} parent=1 // pred_fallthru
      _
    // Predicated region
    $region214: #{forward.1} parent=1 // pred_check
      _
    $region215: #{forward.1} parent=1 // pred_check_branch
      %681 = sbr.rel (0) target = $region217
    $region216: #{forward.1} parent=1 // pred_region
      _
    $region217: #{forward.1} parent=1 // pred_fallthru
      _
    // Predicated region
    $region218: #{forward.1} parent=1 // pred_check
      _
    $region219: #{forward.1} parent=1 // pred_check_branch
      %683 = sbr.rel (0) target = $region221
    $region220: #{forward.1} parent=1 // pred_region
      %s685 = ssub.s32 256, 256
      %686 = vsyncadd [#allocation68], %s685
      %s687 = sshll.u32 [#allocation67], 4
      %s688 = int_to_ptr.vmem [resolvable:$true] %s687
      %693 = dma.hbm_to_vmem [thread:$0]  %s109, 256, %s688, [#allocation68], 128, 128, 8
    $region221: #{forward.1} parent=1 // pred_fallthru
      _
    // Predicated region
    $region222: #{forward.1} parent=1 // pred_check
      _
    $region223: #{forward.1} parent=1 // pred_check_branch
      %695 = sbr.rel (0) target = $region225
    $region224: #{forward.1} parent=1 // pred_region
      %s697 = ssub.s32 256, 256
      %698 = vsyncadd [#allocation68], %s697
      %s699 = sshll.u32 [#allocation69], 4
      %s700 = int_to_ptr.vmem [resolvable:$true] %s699
      %705 = dma.hbm_to_vmem [thread:$0]  %s111, 256, %s700, [#allocation68], 128, 128, 8
    $region225: #{forward.1} parent=1 // pred_fallthru
      _
    // Predicated region
    $region226: #{forward.1} parent=1 // pred_check
      _
    $region227: #{forward.1} parent=1 // pred_check_branch
      %707 = sbr.rel (0) target = $region229
    $region228: #{forward.1} parent=1 // pred_region
      %s709 = ssub.s32 256, 256
      %710 = vsyncadd [#allocation71], %s709
      %s711 = sshll.u32 [#allocation70], 4
      %s712 = int_to_ptr.vmem [resolvable:$true] %s711
      %717 = dma.hbm_to_vmem [thread:$0]  %s113, 256, %s712, [#allocation71], 128, 128, 8
    $region229: #{forward.1} parent=1 // pred_fallthru
      _
    // Predicated region
    $region230: #{forward.1} parent=1 // pred_check
      _
    $region231: #{forward.1} parent=1 // pred_check_branch
      %719 = sbr.rel (0) target = $region233
    $region232: #{forward.1} parent=1 // pred_region
      %s721 = ssub.s32 128, 128
      %722 = vsyncadd [#allocation71], %s721
      %s724 = sshll.u32 [#allocation72], 4
      %s725 = int_to_ptr.vmem [resolvable:$true] %s724
      %727 = dma.hbm_to_vmem [thread:$0]  %s115, 128, %s725, [#allocation71]
    $region233: #{forward.1} parent=1 // pred_fallthru
      _
    // Predicated region
    $region234: #{forward.1} parent=1 // pred_check
      _
    $region235: #{forward.1} parent=1 // pred_check_branch
      %729 = sbr.rel (0) target = $region237
    $region236: #{forward.1} parent=1 // pred_region
      %s731 = ssub.s32 128, 128
      %732 = vsyncadd [#allocation74], %s731
      %s734 = sshll.u32 [#allocation73], 4
      %s735 = int_to_ptr.vmem [resolvable:$true] %s734
      %737 = dma.hbm_to_vmem [thread:$0]  %s117, 128, %s735, [#allocation74]
    $region237: #{forward.1} parent=1 // pred_fallthru
      _
    // Predicated region
    $region238: #{forward.1} parent=1 // pred_check
      _
    $region239: #{forward.1} parent=1 // pred_check_branch
      %739 = sbr.rel (0) target = $region241
    $region240: #{forward.1} parent=1 // pred_region
      %740 = dma.done [#allocation3], 16
    $region241: #{forward.1} parent=1 // pred_fallthru
      _
    // Predicated region
    $region242: #{forward.1} parent=1 // pred_check
      _
    $region243: #{forward.1} parent=1 // pred_check_branch
      %742 = sbr.rel (0) target = $region245
    $region244: #{forward.1} parent=1 // pred_region
      %743 = dma.done [#allocation5], 16
    $region245: #{forward.1} parent=1 // pred_fallthru
      _
    // Predicated region
    $region246: #{forward.1} parent=1 // pred_check
      _
    $region247: #{forward.1} parent=1 // pred_check_branch
      %745 = sbr.rel (0) target = $region249
    $region248: #{forward.1} parent=1 // pred_region
      %746 = dma.done [#allocation5], 32
    $region249: #{forward.1} parent=1 // pred_fallthru
      _
    // Predicated region
    $region250: #{forward.1} parent=1 // pred_check
      _
    $region251: #{forward.1} parent=1 // pred_check_branch
      %748 = sbr.rel (0) target = $region253
    $region252: #{forward.1} parent=1 // pred_region
      %749 = dma.done [#allocation8], 64
    $region253: #{forward.1} parent=1 // pred_fallthru
      _
    // Predicated region
    $region254: #{forward.1} parent=1 // pred_check
      _
    $region255: #{forward.1} parent=1 // pred_check_branch
      %751 = sbr.rel (0) target = $region257
    $region256: #{forward.1} parent=1 // pred_region
      %752 = dma.done [#allocation8], 256
    $region257: #{forward.1} parent=1 // pred_fallthru
      _
    // Predicated region
    $region258: #{forward.1} parent=1 // pred_check
      _
    $region259: #{forward.1} parent=1 // pred_check_branch
      %754 = sbr.rel (0) target = $region261
    $region260: #{forward.1} parent=1 // pred_region
      %755 = dma.done [#allocation11], 256
    $region261: #{forward.1} parent=1 // pred_fallthru
      _
    // Predicated region
    $region262: #{forward.1} parent=1 // pred_check
      _
    $region263: #{forward.1} parent=1 // pred_check_branch
      %757 = sbr.rel (0) target = $region265
    $region264: #{forward.1} parent=1 // pred_region
      %758 = dma.done [#allocation11], 256
    $region265: #{forward.1} parent=1 // pred_fallthru
      _
    // Predicated region
    $region266: #{forward.1} parent=1 // pred_check
      _
    $region267: #{forward.1} parent=1 // pred_check_branch
      %760 = sbr.rel (0) target = $region269
    $region268: #{forward.1} parent=1 // pred_region
      %761 = dma.done [#allocation14], 256
    $region269: #{forward.1} parent=1 // pred_fallthru
      _
    // Predicated region
    $region270: #{forward.1} parent=1 // pred_check
      _
    $region271: #{forward.1} parent=1 // pred_check_branch
      %763 = sbr.rel (0) target = $region273
    $region272: #{forward.1} parent=1 // pred_region
      %764 = dma.done [#allocation14], 256
    $region273: #{forward.1} parent=1 // pred_fallthru
      _
    // Predicated region
    $region274: #{forward.1} parent=1 // pred_check
      _
    $region275: #{forward.1} parent=1 // pred_check_branch
      %766 = sbr.rel (0) target = $region277
    $region276: #{forward.1} parent=1 // pred_region
      %767 = dma.done [#allocation17], 256
    $region277: #{forward.1} parent=1 // pred_fallthru
      _
    // Predicated region
    $region278: #{forward.1} parent=1 // pred_check
      _
    $region279: #{forward.1} parent=1 // pred_check_branch
      %769 = sbr.rel (0) target = $region281
    $region280: #{forward.1} parent=1 // pred_region
      %770 = dma.done [#allocation17], 256
    $region281: #{forward.1} parent=1 // pred_fallthru
      _
    // Predicated region
    $region282: #{forward.1} parent=1 // pred_check
      _
    $region283: #{forward.1} parent=1 // pred_check_branch
      %772 = sbr.rel (0) target = $region285
    $region284: #{forward.1} parent=1 // pred_region
      %773 = dma.done [#allocation20], 256
    $region285: #{forward.1} parent=1 // pred_fallthru
      _
    // Predicated region
    $region286: #{forward.1} parent=1 // pred_check
      _
    $region287: #{forward.1} parent=1 // pred_check_branch
      %775 = sbr.rel (0) target = $region289
    $region288: #{forward.1} parent=1 // pred_region
      %776 = dma.done [#allocation20], 256
    $region289: #{forward.1} parent=1 // pred_fallthru
      _
    // Predicated region
    $region290: #{forward.1} parent=1 // pred_check
      _
    $region291: #{forward.1} parent=1 // pred_check_branch
      %778 = sbr.rel (0) target = $region293
    $region292: #{forward.1} parent=1 // pred_region
      %779 = dma.done [#allocation23], 256
    $region293: #{forward.1} parent=1 // pred_fallthru
      _
    // Predicated region
    $region294: #{forward.1} parent=1 // pred_check
      _
    $region295: #{forward.1} parent=1 // pred_check_branch
      %781 = sbr.rel (0) target = $region297
    $region296: #{forward.1} parent=1 // pred_region
      %782 = dma.done [#allocation23], 256
    $region297: #{forward.1} parent=1 // pred_fallthru
      _
    // Predicated region
    $region298: #{forward.1} parent=1 // pred_check
      _
    $region299: #{forward.1} parent=1 // pred_check_branch
      %784 = sbr.rel (0) target = $region301
    $region300: #{forward.1} parent=1 // pred_region
      %785 = dma.done [#allocation26], 256
    $region301: #{forward.1} parent=1 // pred_fallthru
      _
    // Predicated region
    $region302: #{forward.1} parent=1 // pred_check
      _
    $region303: #{forward.1} parent=1 // pred_check_branch
      %787 = sbr.rel (0) target = $region305
    $region304: #{forward.1} parent=1 // pred_region
      %788 = dma.done [#allocation26], 256
    $region305: #{forward.1} parent=1 // pred_fallthru
      _
    // Predicated region
    $region306: #{forward.1} parent=1 // pred_check
      _
    $region307: #{forward.1} parent=1 // pred_check_branch
      %790 = sbr.rel (0) target = $region309
    $region308: #{forward.1} parent=1 // pred_region
      %791 = dma.done [#allocation29], 256
    $region309: #{forward.1} parent=1 // pred_fallthru
      _
    // Predicated region
    $region310: #{forward.1} parent=1 // pred_check
      _
    $region311: #{forward.1} parent=1 // pred_check_branch
      %793 = sbr.rel (0) target = $region313
    $region312: #{forward.1} parent=1 // pred_region
      %794 = dma.done [#allocation29], 256
    $region313: #{forward.1} parent=1 // pred_fallthru
      _
    // Predicated region
    $region314: #{forward.1} parent=1 // pred_check
      _
    $region315: #{forward.1} parent=1 // pred_check_branch
      %796 = sbr.rel (0) target = $region317
    $region316: #{forward.1} parent=1 // pred_region
      %797 = dma.done [#allocation32], 256
    $region317: #{forward.1} parent=1 // pred_fallthru
      _
    // Predicated region
    $region318: #{forward.1} parent=1 // pred_check
      _
    $region319: #{forward.1} parent=1 // pred_check_branch
      %799 = sbr.rel (0) target = $region321
    $region320: #{forward.1} parent=1 // pred_region
      %800 = dma.done [#allocation32], 256
    $region321: #{forward.1} parent=1 // pred_fallthru
      _
    // Predicated region
    $region322: #{forward.1} parent=1 // pred_check
      _
    $region323: #{forward.1} parent=1 // pred_check_branch
      %802 = sbr.rel (0) target = $region325
    $region324: #{forward.1} parent=1 // pred_region
      %803 = dma.done [#allocation35], 256
    $region325: #{forward.1} parent=1 // pred_fallthru
      _
    // Predicated region
    $region326: #{forward.1} parent=1 // pred_check
      _
    $region327: #{forward.1} parent=1 // pred_check_branch
      %805 = sbr.rel (0) target = $region329
    $region328: #{forward.1} parent=1 // pred_region
      %806 = dma.done [#allocation35], 256
    $region329: #{forward.1} parent=1 // pred_fallthru
      _
    // Predicated region
    $region330: #{forward.1} parent=1 // pred_check
      _
    $region331: #{forward.1} parent=1 // pred_check_branch
      %808 = sbr.rel (0) target = $region333
    $region332: #{forward.1} parent=1 // pred_region
      %809 = dma.done [#allocation38], 256
    $region333: #{forward.1} parent=1 // pred_fallthru
      _
    // Predicated region
    $region334: #{forward.1} parent=1 // pred_check
      _
    $region335: #{forward.1} parent=1 // pred_check_branch
      %811 = sbr.rel (0) target = $region337
    $region336: #{forward.1} parent=1 // pred_region
      %812 = dma.done [#allocation38], 256
    $region337: #{forward.1} parent=1 // pred_fallthru
      _
    // Predicated region
    $region338: #{forward.1} parent=1 // pred_check
      _
    $region339: #{forward.1} parent=1 // pred_check_branch
      %814 = sbr.rel (0) target = $region341
    $region340: #{forward.1} parent=1 // pred_region
      %815 = dma.done [#allocation41], 256
    $region341: #{forward.1} parent=1 // pred_fallthru
      _
    // Predicated region
    $region342: #{forward.1} parent=1 // pred_check
      _
    $region343: #{forward.1} parent=1 // pred_check_branch
      %817 = sbr.rel (0) target = $region345
    $region344: #{forward.1} parent=1 // pred_region
      %818 = dma.done [#allocation41], 256
    $region345: #{forward.1} parent=1 // pred_fallthru
      _
    // Predicated region
    $region346: #{forward.1} parent=1 // pred_check
      _
    $region347: #{forward.1} parent=1 // pred_check_branch
      %820 = sbr.rel (0) target = $region349
    $region348: #{forward.1} parent=1 // pred_region
      %821 = dma.done [#allocation44], 256
    $region349: #{forward.1} parent=1 // pred_fallthru
      _
    // Predicated region
    $region350: #{forward.1} parent=1 // pred_check
      _
    $region351: #{forward.1} parent=1 // pred_check_branch
      %823 = sbr.rel (0) target = $region353
    $region352: #{forward.1} parent=1 // pred_region
      %824 = dma.done [#allocation44], 256
    $region353: #{forward.1} parent=1 // pred_fallthru
      _
    // Predicated region
    $region354: #{forward.1} parent=1 // pred_check
      _
    $region355: #{forward.1} parent=1 // pred_check_branch
      %826 = sbr.rel (0) target = $region357
    $region356: #{forward.1} parent=1 // pred_region
      %827 = dma.done [#allocation47], 256
    $region357: #{forward.1} parent=1 // pred_fallthru
      _
    // Predicated region
    $region358: #{forward.1} parent=1 // pred_check
      _
    $region359: #{forward.1} parent=1 // pred_check_branch
      %829 = sbr.rel (0) target = $region361
    $region360: #{forward.1} parent=1 // pred_region
      %830 = dma.done [#allocation47], 256
    $region361: #{forward.1} parent=1 // pred_fallthru
      _
    // Predicated region
    $region362: #{forward.1} parent=1 // pred_check
      _
    $region363: #{forward.1} parent=1 // pred_check_branch
      %832 = sbr.rel (0) target = $region365
    $region364: #{forward.1} parent=1 // pred_region
      %833 = dma.done [#allocation50], 256
    $region365: #{forward.1} parent=1 // pred_fallthru
      _
    // Predicated region
    $region366: #{forward.1} parent=1 // pred_check
      _
    $region367: #{forward.1} parent=1 // pred_check_branch
      %835 = sbr.rel (0) target = $region369
    $region368: #{forward.1} parent=1 // pred_region
      %836 = dma.done [#allocation50], 256
    $region369: #{forward.1} parent=1 // pred_fallthru
      _
    // Predicated region
    $region370: #{forward.1} parent=1 // pred_check
      _
    $region371: #{forward.1} parent=1 // pred_check_branch
      %838 = sbr.rel (0) target = $region373
    $region372: #{forward.1} parent=1 // pred_region
      %839 = dma.done [#allocation53], 256
    $region373: #{forward.1} parent=1 // pred_fallthru
      _
    // Predicated region
    $region374: #{forward.1} parent=1 // pred_check
      _
    $region375: #{forward.1} parent=1 // pred_check_branch
      %841 = sbr.rel (0) target = $region377
    $region376: #{forward.1} parent=1 // pred_region
      %842 = dma.done [#allocation53], 256
    $region377: #{forward.1} parent=1 // pred_fallthru
      _
    // Predicated region
    $region378: #{forward.1} parent=1 // pred_check
      _
    $region379: #{forward.1} parent=1 // pred_check_branch
      %844 = sbr.rel (0) target = $region381
    $region380: #{forward.1} parent=1 // pred_region
      %845 = dma.done [#allocation56], 256
    $region381: #{forward.1} parent=1 // pred_fallthru
      _
    // Predicated region
    $region382: #{forward.1} parent=1 // pred_check
      _
    $region383: #{forward.1} parent=1 // pred_check_branch
      %847 = sbr.rel (0) target = $region385
    $region384: #{forward.1} parent=1 // pred_region
      %848 = dma.done [#allocation56], 256
    $region385: #{forward.1} parent=1 // pred_fallthru
      _
    // Predicated region
    $region386: #{forward.1} parent=1 // pred_check
      _
    $region387: #{forward.1} parent=1 // pred_check_branch
      %850 = sbr.rel (0) target = $region389
    $region388: #{forward.1} parent=1 // pred_region
      %851 = dma.done [#allocation59], 256
    $region389: #{forward.1} parent=1 // pred_fallthru
      _
    // Predicated region
    $region390: #{forward.1} parent=1 // pred_check
      _
    $region391: #{forward.1} parent=1 // pred_check_branch
      %853 = sbr.rel (0) target = $region393
    $region392: #{forward.1} parent=1 // pred_region
      %854 = dma.done [#allocation59], 256
    $region393: #{forward.1} parent=1 // pred_fallthru
      _
    // Predicated region
    $region394: #{forward.1} parent=1 // pred_check
      _
    $region395: #{forward.1} parent=1 // pred_check_branch
      %856 = sbr.rel (0) target = $region397
    $region396: #{forward.1} parent=1 // pred_region
      %857 = dma.done [#allocation62], 256
    $region397: #{forward.1} parent=1 // pred_fallthru
      _
    // Predicated region
    $region398: #{forward.1} parent=1 // pred_check
      _
    $region399: #{forward.1} parent=1 // pred_check_branch
      %859 = sbr.rel (0) target = $region401
    $region400: #{forward.1} parent=1 // pred_region
      %860 = dma.done [#allocation62], 256
    $region401: #{forward.1} parent=1 // pred_fallthru
      _
    // Predicated region
    $region402: #{forward.1} parent=1 // pred_check
      _
    $region403: #{forward.1} parent=1 // pred_check_branch
      %862 = sbr.rel (0) target = $region405
    $region404: #{forward.1} parent=1 // pred_region
      %863 = dma.done [#allocation65], 256
    $region405: #{forward.1} parent=1 // pred_fallthru
      _
    // Predicated region
    $region406: #{forward.1} parent=1 // pred_check
      _
    $region407: #{forward.1} parent=1 // pred_check_branch
      %865 = sbr.rel (0) target = $region409
    $region408: #{forward.1} parent=1 // pred_region
      %866 = dma.done [#allocation65], 256
    $region409: #{forward.1} parent=1 // pred_fallthru
      _
    // Predicated region
    $region410: #{forward.1} parent=1 // pred_check
      _
    $region411: #{forward.1} parent=1 // pred_check_branch
      %868 = sbr.rel (0) target = $region413
    $region412: #{forward.1} parent=1 // pred_region
      %869 = dma.done [#allocation68], 256
    $region413: #{forward.1} parent=1 // pred_fallthru
      _
    // Predicated region
    $region414: #{forward.1} parent=1 // pred_check
      _
    $region415: #{forward.1} parent=1 // pred_check_branch
      %871 = sbr.rel (0) target = $region417
    $region416: #{forward.1} parent=1 // pred_region
      %872 = dma.done [#allocation68], 256
    $region417: #{forward.1} parent=1 // pred_fallthru
      _
    // Predicated region
    $region418: #{forward.1} parent=1 // pred_check
      _
    $region419: #{forward.1} parent=1 // pred_check_branch
      %874 = sbr.rel (0) target = $region421
    $region420: #{forward.1} parent=1 // pred_region
      %875 = dma.done [#allocation71], 256
    $region421: #{forward.1} parent=1 // pred_fallthru
      _
    // Predicated region
    $region422: #{forward.1} parent=1 // pred_check
      _
    $region423: #{forward.1} parent=1 // pred_check_branch
      %877 = sbr.rel (0) target = $region425
    $region424: #{forward.1} parent=1 // pred_region
      %878 = dma.done [#allocation71], 128
    $region425: #{forward.1} parent=1 // pred_fallthru
      _
    // Predicated region
    $region426: #{forward.1} parent=1 // pred_check
      _
    $region427: #{forward.1} parent=1 // pred_check_branch
      %880 = sbr.rel (0) target = $region429
    $region428: #{forward.1} parent=1 // pred_region
      %881 = dma.done [#allocation74], 128
    $region429: #{forward.1} parent=1 // pred_fallthru
      _
    %v882 = vld [vmem:[#allocation2] sm:$0x1]
    %v883 = vld [vmem:[#allocation4] sm:$0x1]
    %v884 = vld [vmem:[%s1] sm:$0xf]
    %v885 = vld [vmem:[#allocation7] sm:$0xf]
    %v886 = vld [vmem:[#allocation9] sm:$0xff]
    %v887 = vld [vmem:[#allocation9 + $0x8] sm:$0xff]
    %v888 = vld [vmem:[#allocation10] sm:$0xff]
    %v889 = vld [vmem:[#allocation10 + $0x8] sm:$0xff]
    %891 = vset.pattern.permute.xlu0 1
    %892 = vperm.xlu0 %891, %v885
    %v893 = vpop.permute.xlu0 %892
    %v895 = vmul.f32 %v893, %v884
    %897 = vrot.lane.b32.xlu0 %v884, 97
    %v898 = vpop.permute.xlu0 %897
    %900 = vrot.lane.b32.xlu0 %v884, 1
    %v901 = vpop.permute.xlu0 %900
    %vm903 = vcmask 7168
    %v904 = vsel %vm903, %v898, %v901
    %v906 = vlaneseq
    %v907 = vshrl.u32 %v906, 7
    %v908 = vsub.s32 0, %v907
    %v909 = vrot.slane %v882, %v908
    %v911 = vmul.f32 %v904, %v909
    %912 = vset.pattern.permute.xlu0 0
    %913 = vperm.xlu0 %912, %v885
    %v914 = vpop.permute.xlu0 %913
    %v916 = vmul.f32 %v914, %v911
    %v917 = vadd.f32 %v895, %v916
    %918 = vrot.lane.b32.xlu0 %v884, 127
    %v919 = vpop.permute.xlu0 %918
    %921 = vrot.lane.b32.xlu0 %v884, 31
    %v922 = vpop.permute.xlu0 %921
    %vm924 = vcmask 252928
    %v925 = vsel %vm924, %v919, %v922
    %v927 = vlaneseq
    %v928 = vshrl.u32 %v927, 7
    %v929 = vsub.s32 0, %v928
    %v930 = vrot.slane %v883, %v929
    %v932 = vmul.f32 %v925, %v930
    %933 = vset.pattern.permute.xlu0 2
    %934 = vperm.xlu0 %933, %v885
    %v935 = vpop.permute.xlu0 %934
    %v937 = vmul.f32 %v935, %v932
    %v938 = vadd.f32 %v917, %v937
    %940 = vset.pattern.permute.xlu0 0
    %941 = vperm.xlu0 %940, %v888
    %v942 = vpop.permute.xlu0 %941
    %945 = vset.pattern.permute.xlu0 0
    %946 = vperm.xlu0 %945, %v889
    %v947 = vpop.permute.xlu0 %946
    %vm949 = vcmask 31744
    %v951 = vsel %vm949, %v886, 0
    %v954 = vsel %vm949, %v887, 0
    %vm956 = vcmask 1043456
    %v958 = vsel %vm956, %v938, 0
    %960 = vmatprep.subr.mxu0 0.0
    %961 = vmatpush1.msra.mxu0 %v958
    %962 = vmatprep.subr.mxu0 0.0
    %963 = vmatpush1.msra.mxu0 0.0
    %964 = vmatprep.subr.mxu0 0.0
    %965 = vmatpush1.msra.mxu0 0.0
    %966 = vmatprep.subr.mxu0 0.0
    %967 = vmatpush1.msra.mxu0 0.0
    %968 = vmatprep.subr.mxu0 0.0
    %969 = vmatpush1.msra.mxu0 0.0
    %970 = vmatprep.subr.mxu0 0.0
    %971 = vmatpush1.msra.mxu0 0.0
    %972 = vmatprep.subr.mxu0 0.0
    %973 = vmatpush1.msra.mxu0 0.0
    %974 = vmatprep.subr.mxu0 0.0
    %975 = vmatpush1.msra.mxu0 0.0
    %976 = vmatprep.subr.mxu0 0.0
    %977 = vmatpush1.msra.mxu0 0.0
    %978 = vmatprep.subr.mxu0 0.0
    %979 = vmatpush1.msra.mxu0 0.0
    %980 = vmatprep.subr.mxu0 0.0
    %981 = vmatpush1.msra.mxu0 0.0
    %982 = vmatprep.subr.mxu0 0.0
    %983 = vmatpush1.msra.mxu0 0.0
    %984 = vmatprep.subr.mxu0 0.0
    %985 = vmatpush1.msra.mxu0 0.0
    %986 = vmatprep.subr.mxu0 0.0
    %987 = vmatpush1.msra.mxu0 0.0
    %988 = vmatprep.subr.mxu0 0.0
    %989 = vmatpush1.msra.mxu0 0.0
    %990 = vmatprep.subr.mxu0 0.0
    %991 = vmatpush1.msra.mxu0 0.0
    %992 = vmatprep.subr.mxu0 0.0
    %993 = vmatpush1.msra.mxu0 0.0
    %994 = vmatprep.subr.mxu0 0.0
    %995 = vmatpush1.msra.mxu0 0.0
    %996 = vmatprep.subr.mxu0 0.0
    %997 = vmatpush1.msra.mxu0 0.0
    %998 = vmatprep.subr.mxu0 0.0
    %999 = vmatpush1.msra.mxu0 0.0
    %1000 = vmatprep.subr.mxu0 0.0
    %1001 = vmatpush1.msra.mxu0 0.0
    %1002 = vmatprep.subr.mxu0 0.0
    %1003 = vmatpush1.msra.mxu0 0.0
    %1004 = vmatprep.subr.mxu0 0.0
    %1005 = vmatpush1.msra.mxu0 0.0
    %1006 = vmatprep.subr.mxu0 0.0
    %1007 = vmatpush1.msra.mxu0 0.0
    %1008 = vmatprep.subr.mxu0 0.0
    %1009 = vmatpush1.msra.mxu0 0.0
    %1010 = vmatprep.subr.mxu0 0.0
    %1011 = vmatpush1.msra.mxu0 0.0
    %1012 = vmatprep.subr.mxu0 0.0
    %1013 = vmatpush1.msra.mxu0 0.0
    %1014 = vmatprep.subr.mxu0 0.0
    %1015 = vmatpush1.msra.mxu0 0.0
    %1016 = vmatprep.subr.mxu0 0.0
    %1017 = vmatpush1.msra.mxu0 0.0
    %1018 = vmatprep.subr.mxu0 0.0
    %1019 = vmatpush1.msra.mxu0 0.0
    %1020 = vmatprep.subr.mxu0 0.0
    %1021 = vmatpush1.msra.mxu0 0.0
    %1022 = vmatprep.subr.mxu0 0.0
    %1023 = vmatpush1.msra.mxu0 0.0
    %1024 = vmatprep.mubr.f32.mxu0 0.0
    %1025 = vmatmul.mubr.f32.gmra.mrb[0].mxu0 %v951
    %v1026 = vpop.f32.mrb[0].mxu0
    %v1027 = vadd.f32 %v942, %v1026
    %v1028 = vpop.f32.mrb[0].mxu0
    %1029 = vmatprep.mubr.f32.mxu0 0.0
    %1030 = vmatmul.mubr.f32.gmra.mrb[0].mxu0 %v954
    %v1031 = vpop.f32.mrb[0].mxu0
    %v1032 = vadd.f32 %v947, %v1031
    %v1033 = vpop.f32.mrb[0].mxu0
    %1034 = vdwg.mxu0
    %v1035 = vmax.f32 %v1027, 0.0
    %v1036 = vmax.f32 %v1032, 0.0
    %v1037 = vld [vmem:[#allocation12] sm:$0xff]
    %v1038 = vld [vmem:[#allocation12 + $0x8] sm:$0xff]
    %v1039 = vld [vmem:[#allocation13] sm:$0xff]
    %v1040 = vld [vmem:[#allocation13 + $0x8] sm:$0xff]
    %1042 = vset.pattern.permute.xlu0 0
    %1043 = vperm.xlu0 %1042, %v1039
    %v1044 = vpop.permute.xlu0 %1043
    %1047 = vset.pattern.permute.xlu0 0
    %1048 = vperm.xlu0 %1047, %v1040
    %v1049 = vpop.permute.xlu0 %1048
    %vm1051 = vcmask 130048
    %v1053 = vsel %vm1051, %v1037, 0
    %v1056 = vsel %vm1051, %v1038, 0
    %1058 = vmatprep.subr.mxu0 0.0
    %1059 = vmatpush1.msra.mxu0 %v1035
    %1060 = vmatprep.subr.mxu0 0.0
    %1061 = vmatpush1.msra.mxu0 %v1036
    %1062 = vmatprep.subr.mxu0 0.0
    %1063 = vmatpush1.msra.mxu0 0.0
    %1064 = vmatprep.subr.mxu0 0.0
    %1065 = vmatpush1.msra.mxu0 0.0
    %1066 = vmatprep.subr.mxu0 0.0
    %1067 = vmatpush1.msra.mxu0 0.0
    %1068 = vmatprep.subr.mxu0 0.0
    %1069 = vmatpush1.msra.mxu0 0.0
    %1070 = vmatprep.subr.mxu0 0.0
    %1071 = vmatpush1.msra.mxu0 0.0
    %1072 = vmatprep.subr.mxu0 0.0
    %1073 = vmatpush1.msra.mxu0 0.0
    %1074 = vmatprep.subr.mxu0 0.0
    %1075 = vmatpush1.msra.mxu0 0.0
    %1076 = vmatprep.subr.mxu0 0.0
    %1077 = vmatpush1.msra.mxu0 0.0
    %1078 = vmatprep.subr.mxu0 0.0
    %1079 = vmatpush1.msra.mxu0 0.0
    %1080 = vmatprep.subr.mxu0 0.0
    %1081 = vmatpush1.msra.mxu0 0.0
    %1082 = vmatprep.subr.mxu0 0.0
    %1083 = vmatpush1.msra.mxu0 0.0
    %1084 = vmatprep.subr.mxu0 0.0
    %1085 = vmatpush1.msra.mxu0 0.0
    %1086 = vmatprep.subr.mxu0 0.0
    %1087 = vmatpush1.msra.mxu0 0.0
    %1088 = vmatprep.subr.mxu0 0.0
    %1089 = vmatpush1.msra.mxu0 0.0
    %1090 = vmatprep.subr.mxu0 0.0
    %1091 = vmatpush1.msra.mxu0 0.0
    %1092 = vmatprep.subr.mxu0 0.0
    %1093 = vmatpush1.msra.mxu0 0.0
    %1094 = vmatprep.subr.mxu0 0.0
    %1095 = vmatpush1.msra.mxu0 0.0
    %1096 = vmatprep.subr.mxu0 0.0
    %1097 = vmatpush1.msra.mxu0 0.0
    %1098 = vmatprep.subr.mxu0 0.0
    %1099 = vmatpush1.msra.mxu0 0.0
    %1100 = vmatprep.subr.mxu0 0.0
    %1101 = vmatpush1.msra.mxu0 0.0
    %1102 = vmatprep.subr.mxu0 0.0
    %1103 = vmatpush1.msra.mxu0 0.0
    %1104 = vmatprep.subr.mxu0 0.0
    %1105 = vmatpush1.msra.mxu0 0.0
    %1106 = vmatprep.subr.mxu0 0.0
    %1107 = vmatpush1.msra.mxu0 0.0
    %1108 = vmatprep.subr.mxu0 0.0
    %1109 = vmatpush1.msra.mxu0 0.0
    %1110 = vmatprep.subr.mxu0 0.0
    %1111 = vmatpush1.msra.mxu0 0.0
    %1112 = vmatprep.subr.mxu0 0.0
    %1113 = vmatpush1.msra.mxu0 0.0
    %1114 = vmatprep.subr.mxu0 0.0
    %1115 = vmatpush1.msra.mxu0 0.0
    %1116 = vmatprep.subr.mxu0 0.0
    %1117 = vmatpush1.msra.mxu0 0.0
    %1118 = vmatprep.subr.mxu0 0.0
    %1119 = vmatpush1.msra.mxu0 0.0
    %1120 = vmatprep.subr.mxu0 0.0
    %1121 = vmatpush1.msra.mxu0 0.0
    %1122 = vmatprep.mubr.f32.mxu0 0.0
    %1123 = vmatmul.mubr.f32.gmra.mrb[0].mxu0 %v1053
    %v1124 = vpop.f32.mrb[0].mxu0
    %v1125 = vadd.f32 %v1044, %v1124
    %v1126 = vpop.f32.mrb[0].mxu0
    %1127 = vmatprep.mubr.f32.mxu0 0.0
    %1128 = vmatmul.mubr.f32.gmra.mrb[0].mxu0 %v1056
    %v1129 = vpop.f32.mrb[0].mxu0
    %v1130 = vadd.f32 %v1049, %v1129
    %v1131 = vpop.f32.mrb[0].mxu0
    %1132 = vdwg.mxu0
    %v1133 = vld [vmem:[#allocation15] sm:$0xff]
    %v1134 = vld [vmem:[#allocation15 + $0x8] sm:$0xff]
    %v1135 = vld [vmem:[#allocation16] sm:$0xff]
    %v1136 = vld [vmem:[#allocation16 + $0x8] sm:$0xff]
    %v1137 = vld [vmem:[#allocation18] sm:$0xff]
    %v1138 = vld [vmem:[#allocation18 + $0x8] sm:$0xff]
    %1140 = vset.pattern.permute.xlu0 1
    %1141 = vperm.xlu0 %1140, %v1133
    %v1142 = vpop.permute.xlu0 %1141
    %1145 = vset.pattern.permute.xlu0 1
    %1146 = vperm.xlu0 %1145, %v1134
    %v1147 = vpop.permute.xlu0 %1146
    %v1149 = vmul.f32 %v1142, %v1035
    %v1150 = vmul.f32 %v1147, %v1036
    %1153 = vrot.lane.b32.xlu0 %v1035, 97
    %v1154 = vpop.permute.xlu0 %1153
    %1155 = vrot.lane.b32.xlu0 %v1036, 97
    %v1156 = vpop.permute.xlu0 %1155
    %1159 = vrot.lane.b32.xlu0 %v1035, 1
    %v1160 = vpop.permute.xlu0 %1159
    %1161 = vrot.lane.b32.xlu0 %v1036, 1
    %v1162 = vpop.permute.xlu0 %1161
    %v1165 = vsel %vm903, %v1154, %v1160
    %v1166 = vsel %vm903, %v1156, %v1162
    %v1167 = vmul.f32 %v1165, %v909
    %v1168 = vmul.f32 %v1166, %v909
    %1169 = vset.pattern.permute.xlu0 0
    %1170 = vperm.xlu0 %1169, %v1133
    %v1171 = vpop.permute.xlu0 %1170
    %1173 = vset.pattern.permute.xlu0 0
    %1174 = vperm.xlu0 %1173, %v1134
    %v1175 = vpop.permute.xlu0 %1174
    %v1177 = vmul.f32 %v1171, %v1167
    %v1178 = vmul.f32 %v1175, %v1168
    %v1179 = vadd.f32 %v1149, %v1177
    %v1180 = vadd.f32 %v1150, %v1178
    %1181 = vrot.lane.b32.xlu0 %v1035, 127
    %v1182 = vpop.permute.xlu0 %1181
    %1183 = vrot.lane.b32.xlu0 %v1036, 127
    %v1184 = vpop.permute.xlu0 %1183
    %1187 = vrot.lane.b32.xlu0 %v1035, 31
    %v1188 = vpop.permute.xlu0 %1187
    %1189 = vrot.lane.b32.xlu0 %v1036, 31
    %v1190 = vpop.permute.xlu0 %1189
    %v1193 = vsel %vm924, %v1182, %v1188
    %v1194 = vsel %vm924, %v1184, %v1190
    %v1195 = vmul.f32 %v1193, %v930
    %v1196 = vmul.f32 %v1194, %v930
    %1197 = vset.pattern.permute.xlu0 2
    %1198 = vperm.xlu0 %1197, %v1133
    %v1199 = vpop.permute.xlu0 %1198
    %1201 = vset.pattern.permute.xlu0 2
    %1202 = vperm.xlu0 %1201, %v1134
    %v1203 = vpop.permute.xlu0 %1202
    %v1205 = vmul.f32 %v1199, %v1195
    %v1206 = vmul.f32 %v1203, %v1196
    %v1207 = vadd.f32 %v1179, %v1205
    %v1208 = vadd.f32 %v1180, %v1206
    %1210 = vset.pattern.permute.xlu0 0
    %1211 = vperm.xlu0 %1210, %v1137
    %v1212 = vpop.permute.xlu0 %1211
    %1215 = vset.pattern.permute.xlu0 0
    %1216 = vperm.xlu0 %1215, %v1138
    %v1217 = vpop.permute.xlu0 %1216
    %v1220 = vsel %vm1051, %v1135, 0
    %v1223 = vsel %vm1051, %v1136, 0
    %1225 = vmatprep.subr.mxu0 0.0
    %1226 = vmatpush1.msra.mxu0 %v1207
    %1227 = vmatprep.subr.mxu0 0.0
    %1228 = vmatpush1.msra.mxu0 %v1208
    %1229 = vmatprep.subr.mxu0 0.0
    %1230 = vmatpush1.msra.mxu0 0.0
    %1231 = vmatprep.subr.mxu0 0.0
    %1232 = vmatpush1.msra.mxu0 0.0
    %1233 = vmatprep.subr.mxu0 0.0
    %1234 = vmatpush1.msra.mxu0 0.0
    %1235 = vmatprep.subr.mxu0 0.0
    %1236 = vmatpush1.msra.mxu0 0.0
    %1237 = vmatprep.subr.mxu0 0.0
    %1238 = vmatpush1.msra.mxu0 0.0
    %1239 = vmatprep.subr.mxu0 0.0
    %1240 = vmatpush1.msra.mxu0 0.0
    %1241 = vmatprep.subr.mxu0 0.0
    %1242 = vmatpush1.msra.mxu0 0.0
    %1243 = vmatprep.subr.mxu0 0.0
    %1244 = vmatpush1.msra.mxu0 0.0
    %1245 = vmatprep.subr.mxu0 0.0
    %1246 = vmatpush1.msra.mxu0 0.0
    %1247 = vmatprep.subr.mxu0 0.0
    %1248 = vmatpush1.msra.mxu0 0.0
    %1249 = vmatprep.subr.mxu0 0.0
    %1250 = vmatpush1.msra.mxu0 0.0
    %1251 = vmatprep.subr.mxu0 0.0
    %1252 = vmatpush1.msra.mxu0 0.0
    %1253 = vmatprep.subr.mxu0 0.0
    %1254 = vmatpush1.msra.mxu0 0.0
    %1255 = vmatprep.subr.mxu0 0.0
    %1256 = vmatpush1.msra.mxu0 0.0
    %1257 = vmatprep.subr.mxu0 0.0
    %1258 = vmatpush1.msra.mxu0 0.0
    %1259 = vmatprep.subr.mxu0 0.0
    %1260 = vmatpush1.msra.mxu0 0.0
    %1261 = vmatprep.subr.mxu0 0.0
    %1262 = vmatpush1.msra.mxu0 0.0
    %1263 = vmatprep.subr.mxu0 0.0
    %1264 = vmatpush1.msra.mxu0 0.0
    %1265 = vmatprep.subr.mxu0 0.0
    %1266 = vmatpush1.msra.mxu0 0.0
    %1267 = vmatprep.subr.mxu0 0.0
    %1268 = vmatpush1.msra.mxu0 0.0
    %1269 = vmatprep.subr.mxu0 0.0
    %1270 = vmatpush1.msra.mxu0 0.0
    %1271 = vmatprep.subr.mxu0 0.0
    %1272 = vmatpush1.msra.mxu0 0.0
    %1273 = vmatprep.subr.mxu0 0.0
    %1274 = vmatpush1.msra.mxu0 0.0
    %1275 = vmatprep.subr.mxu0 0.0
    %1276 = vmatpush1.msra.mxu0 0.0
    %1277 = vmatprep.subr.mxu0 0.0
    %1278 = vmatpush1.msra.mxu0 0.0
    %1279 = vmatprep.subr.mxu0 0.0
    %1280 = vmatpush1.msra.mxu0 0.0
    %1281 = vmatprep.subr.mxu0 0.0
    %1282 = vmatpush1.msra.mxu0 0.0
    %1283 = vmatprep.subr.mxu0 0.0
    %1284 = vmatpush1.msra.mxu0 0.0
    %1285 = vmatprep.subr.mxu0 0.0
    %1286 = vmatpush1.msra.mxu0 0.0
    %1287 = vmatprep.subr.mxu0 0.0
    %1288 = vmatpush1.msra.mxu0 0.0
    %1289 = vmatprep.mubr.f32.mxu0 0.0
    %1290 = vmatmul.mubr.f32.gmra.mrb[0].mxu0 %v1220
    %v1291 = vpop.f32.mrb[0].mxu0
    %v1292 = vadd.f32 %v1212, %v1291
    %v1293 = vpop.f32.mrb[0].mxu0
    %1294 = vmatprep.mubr.f32.mxu0 0.0
    %1295 = vmatmul.mubr.f32.gmra.mrb[0].mxu0 %v1223
    %v1296 = vpop.f32.mrb[0].mxu0
    %v1297 = vadd.f32 %v1217, %v1296
    %v1298 = vpop.f32.mrb[0].mxu0
    %1299 = vdwg.mxu0
    %v1300 = vmax.f32 %v1292, 0.0
    %v1301 = vmax.f32 %v1297, 0.0
    %v1302 = vld [vmem:[#allocation19] sm:$0xff]
    %v1303 = vld [vmem:[#allocation19 + $0x8] sm:$0xff]
    %v1304 = vld [vmem:[#allocation21] sm:$0xff]
    %v1305 = vld [vmem:[#allocation21 + $0x8] sm:$0xff]
    %v1306 = vld [vmem:[#allocation22] sm:$0xff]
    %v1307 = vld [vmem:[#allocation22 + $0x8] sm:$0xff]
    %1309 = vset.pattern.permute.xlu0 1
    %1310 = vperm.xlu0 %1309, %v1302
    %v1311 = vpop.permute.xlu0 %1310
    %1314 = vset.pattern.permute.xlu0 1
    %1315 = vperm.xlu0 %1314, %v1303
    %v1316 = vpop.permute.xlu0 %1315
    %v1318 = vmul.f32 %v1311, %v1300
    %v1319 = vmul.f32 %v1316, %v1301
    %1322 = vrot.lane.b32.xlu0 %v1300, 97
    %v1323 = vpop.permute.xlu0 %1322
    %1324 = vrot.lane.b32.xlu0 %v1301, 97
    %v1325 = vpop.permute.xlu0 %1324
    %1328 = vrot.lane.b32.xlu0 %v1300, 1
    %v1329 = vpop.permute.xlu0 %1328
    %1330 = vrot.lane.b32.xlu0 %v1301, 1
    %v1331 = vpop.permute.xlu0 %1330
    %v1334 = vsel %vm903, %v1323, %v1329
    %v1335 = vsel %vm903, %v1325, %v1331
    %v1336 = vmul.f32 %v1334, %v909
    %v1337 = vmul.f32 %v1335, %v909
    %1338 = vset.pattern.permute.xlu0 0
    %1339 = vperm.xlu0 %1338, %v1302
    %v1340 = vpop.permute.xlu0 %1339
    %1342 = vset.pattern.permute.xlu0 0
    %1343 = vperm.xlu0 %1342, %v1303
    %v1344 = vpop.permute.xlu0 %1343
    %v1346 = vmul.f32 %v1340, %v1336
    %v1347 = vmul.f32 %v1344, %v1337
    %v1348 = vadd.f32 %v1318, %v1346
    %v1349 = vadd.f32 %v1319, %v1347
    %1350 = vrot.lane.b32.xlu0 %v1300, 127
    %v1351 = vpop.permute.xlu0 %1350
    %1352 = vrot.lane.b32.xlu0 %v1301, 127
    %v1353 = vpop.permute.xlu0 %1352
    %1356 = vrot.lane.b32.xlu0 %v1300, 31
    %v1357 = vpop.permute.xlu0 %1356
    %1358 = vrot.lane.b32.xlu0 %v1301, 31
    %v1359 = vpop.permute.xlu0 %1358
    %v1362 = vsel %vm924, %v1351, %v1357
    %v1363 = vsel %vm924, %v1353, %v1359
    %v1364 = vmul.f32 %v1362, %v930
    %v1365 = vmul.f32 %v1363, %v930
    %1366 = vset.pattern.permute.xlu0 2
    %1367 = vperm.xlu0 %1366, %v1302
    %v1368 = vpop.permute.xlu0 %1367
    %1370 = vset.pattern.permute.xlu0 2
    %1371 = vperm.xlu0 %1370, %v1303
    %v1372 = vpop.permute.xlu0 %1371
    %v1374 = vmul.f32 %v1368, %v1364
    %v1375 = vmul.f32 %v1372, %v1365
    %v1376 = vadd.f32 %v1348, %v1374
    %v1377 = vadd.f32 %v1349, %v1375
    %1379 = vset.pattern.permute.xlu0 0
    %1380 = vperm.xlu0 %1379, %v1306
    %v1381 = vpop.permute.xlu0 %1380
    %1384 = vset.pattern.permute.xlu0 0
    %1385 = vperm.xlu0 %1384, %v1307
    %v1386 = vpop.permute.xlu0 %1385
    %v1389 = vsel %vm1051, %v1304, 0
    %v1392 = vsel %vm1051, %v1305, 0
    %1394 = vmatprep.subr.mxu0 0.0
    %1395 = vmatpush1.msra.mxu0 %v1376
    %1396 = vmatprep.subr.mxu0 0.0
    %1397 = vmatpush1.msra.mxu0 %v1377
    %1398 = vmatprep.subr.mxu0 0.0
    %1399 = vmatpush1.msra.mxu0 0.0
    %1400 = vmatprep.subr.mxu0 0.0
    %1401 = vmatpush1.msra.mxu0 0.0
    %1402 = vmatprep.subr.mxu0 0.0
    %1403 = vmatpush1.msra.mxu0 0.0
    %1404 = vmatprep.subr.mxu0 0.0
    %1405 = vmatpush1.msra.mxu0 0.0
    %1406 = vmatprep.subr.mxu0 0.0
    %1407 = vmatpush1.msra.mxu0 0.0
    %1408 = vmatprep.subr.mxu0 0.0
    %1409 = vmatpush1.msra.mxu0 0.0
    %1410 = vmatprep.subr.mxu0 0.0
    %1411 = vmatpush1.msra.mxu0 0.0
    %1412 = vmatprep.subr.mxu0 0.0
    %1413 = vmatpush1.msra.mxu0 0.0
    %1414 = vmatprep.subr.mxu0 0.0
    %1415 = vmatpush1.msra.mxu0 0.0
    %1416 = vmatprep.subr.mxu0 0.0
    %1417 = vmatpush1.msra.mxu0 0.0
    %1418 = vmatprep.subr.mxu0 0.0
    %1419 = vmatpush1.msra.mxu0 0.0
    %1420 = vmatprep.subr.mxu0 0.0
    %1421 = vmatpush1.msra.mxu0 0.0
    %1422 = vmatprep.subr.mxu0 0.0
    %1423 = vmatpush1.msra.mxu0 0.0
    %1424 = vmatprep.subr.mxu0 0.0
    %1425 = vmatpush1.msra.mxu0 0.0
    %1426 = vmatprep.subr.mxu0 0.0
    %1427 = vmatpush1.msra.mxu0 0.0
    %1428 = vmatprep.subr.mxu0 0.0
    %1429 = vmatpush1.msra.mxu0 0.0
    %1430 = vmatprep.subr.mxu0 0.0
    %1431 = vmatpush1.msra.mxu0 0.0
    %1432 = vmatprep.subr.mxu0 0.0
    %1433 = vmatpush1.msra.mxu0 0.0
    %1434 = vmatprep.subr.mxu0 0.0
    %1435 = vmatpush1.msra.mxu0 0.0
    %1436 = vmatprep.subr.mxu0 0.0
    %1437 = vmatpush1.msra.mxu0 0.0
    %1438 = vmatprep.subr.mxu0 0.0
    %1439 = vmatpush1.msra.mxu0 0.0
    %1440 = vmatprep.subr.mxu0 0.0
    %1441 = vmatpush1.msra.mxu0 0.0
    %1442 = vmatprep.subr.mxu0 0.0
    %1443 = vmatpush1.msra.mxu0 0.0
    %1444 = vmatprep.subr.mxu0 0.0
    %1445 = vmatpush1.msra.mxu0 0.0
    %1446 = vmatprep.subr.mxu0 0.0
    %1447 = vmatpush1.msra.mxu0 0.0
    %1448 = vmatprep.subr.mxu0 0.0
    %1449 = vmatpush1.msra.mxu0 0.0
    %1450 = vmatprep.subr.mxu0 0.0
    %1451 = vmatpush1.msra.mxu0 0.0
    %1452 = vmatprep.subr.mxu0 0.0
    %1453 = vmatpush1.msra.mxu0 0.0
    %1454 = vmatprep.subr.mxu0 0.0
    %1455 = vmatpush1.msra.mxu0 0.0
    %1456 = vmatprep.subr.mxu0 0.0
    %1457 = vmatpush1.msra.mxu0 0.0
    %1458 = vmatprep.mubr.f32.mxu0 0.0
    %1459 = vmatmul.mubr.f32.gmra.mrb[0].mxu0 %v1389
    %v1460 = vpop.f32.mrb[0].mxu0
    %v1461 = vadd.f32 %v1381, %v1460
    %v1462 = vpop.f32.mrb[0].mxu0
    %1463 = vmatprep.mubr.f32.mxu0 0.0
    %1464 = vmatmul.mubr.f32.gmra.mrb[0].mxu0 %v1392
    %v1465 = vpop.f32.mrb[0].mxu0
    %v1466 = vadd.f32 %v1386, %v1465
    %v1467 = vpop.f32.mrb[0].mxu0
    %1468 = vdwg.mxu0
    %v1469 = vadd.f32 %v1461, %v1125
    %v1470 = vadd.f32 %v1466, %v1130
    %v1471 = vmax.f32 %v1469, 0.0
    %v1472 = vmax.f32 %v1470, 0.0
    %v1473 = vld [vmem:[#allocation24] sm:$0xff]
    %v1474 = vld [vmem:[#allocation24 + $0x8] sm:$0xff]
    %v1475 = vld [vmem:[#allocation25] sm:$0xff]
    %v1476 = vld [vmem:[#allocation25 + $0x8] sm:$0xff]
    %1478 = vset.pattern.permute.xlu0 0
    %1479 = vperm.xlu0 %1478, %v1475
    %v1480 = vpop.permute.xlu0 %1479
    %1483 = vset.pattern.permute.xlu0 0
    %1484 = vperm.xlu0 %1483, %v1476
    %v1485 = vpop.permute.xlu0 %1484
    %v1488 = vsel %vm1051, %v1473, 0
    %v1491 = vsel %vm1051, %v1474, 0
    %1493 = vmatprep.subr.mxu0 0.0
    %1494 = vmatpush1.msra.mxu0 %v1471
    %1495 = vmatprep.subr.mxu0 0.0
    %1496 = vmatpush1.msra.mxu0 %v1472
    %1497 = vmatprep.subr.mxu0 0.0
    %1498 = vmatpush1.msra.mxu0 0.0
    %1499 = vmatprep.subr.mxu0 0.0
    %1500 = vmatpush1.msra.mxu0 0.0
    %1501 = vmatprep.subr.mxu0 0.0
    %1502 = vmatpush1.msra.mxu0 0.0
    %1503 = vmatprep.subr.mxu0 0.0
    %1504 = vmatpush1.msra.mxu0 0.0
    %1505 = vmatprep.subr.mxu0 0.0
    %1506 = vmatpush1.msra.mxu0 0.0
    %1507 = vmatprep.subr.mxu0 0.0
    %1508 = vmatpush1.msra.mxu0 0.0
    %1509 = vmatprep.subr.mxu0 0.0
    %1510 = vmatpush1.msra.mxu0 0.0
    %1511 = vmatprep.subr.mxu0 0.0
    %1512 = vmatpush1.msra.mxu0 0.0
    %1513 = vmatprep.subr.mxu0 0.0
    %1514 = vmatpush1.msra.mxu0 0.0
    %1515 = vmatprep.subr.mxu0 0.0
    %1516 = vmatpush1.msra.mxu0 0.0
    %1517 = vmatprep.subr.mxu0 0.0
    %1518 = vmatpush1.msra.mxu0 0.0
    %1519 = vmatprep.subr.mxu0 0.0
    %1520 = vmatpush1.msra.mxu0 0.0
    %1521 = vmatprep.subr.mxu0 0.0
    %1522 = vmatpush1.msra.mxu0 0.0
    %1523 = vmatprep.subr.mxu0 0.0
    %1524 = vmatpush1.msra.mxu0 0.0
    %1525 = vmatprep.subr.mxu0 0.0
    %1526 = vmatpush1.msra.mxu0 0.0
    %1527 = vmatprep.subr.mxu0 0.0
    %1528 = vmatpush1.msra.mxu0 0.0
    %1529 = vmatprep.subr.mxu0 0.0
    %1530 = vmatpush1.msra.mxu0 0.0
    %1531 = vmatprep.subr.mxu0 0.0
    %1532 = vmatpush1.msra.mxu0 0.0
    %1533 = vmatprep.subr.mxu0 0.0
    %1534 = vmatpush1.msra.mxu0 0.0
    %1535 = vmatprep.subr.mxu0 0.0
    %1536 = vmatpush1.msra.mxu0 0.0
    %1537 = vmatprep.subr.mxu0 0.0
    %1538 = vmatpush1.msra.mxu0 0.0
    %1539 = vmatprep.subr.mxu0 0.0
    %1540 = vmatpush1.msra.mxu0 0.0
    %1541 = vmatprep.subr.mxu0 0.0
    %1542 = vmatpush1.msra.mxu0 0.0
    %1543 = vmatprep.subr.mxu0 0.0
    %1544 = vmatpush1.msra.mxu0 0.0
    %1545 = vmatprep.subr.mxu0 0.0
    %1546 = vmatpush1.msra.mxu0 0.0
    %1547 = vmatprep.subr.mxu0 0.0
    %1548 = vmatpush1.msra.mxu0 0.0
    %1549 = vmatprep.subr.mxu0 0.0
    %1550 = vmatpush1.msra.mxu0 0.0
    %1551 = vmatprep.subr.mxu0 0.0
    %1552 = vmatpush1.msra.mxu0 0.0
    %1553 = vmatprep.subr.mxu0 0.0
    %1554 = vmatpush1.msra.mxu0 0.0
    %1555 = vmatprep.subr.mxu0 0.0
    %1556 = vmatpush1.msra.mxu0 0.0
    %1557 = vmatprep.mubr.f32.mxu0 0.0
    %1558 = vmatmul.mubr.f32.gmra.mrb[0].mxu0 %v1488
    %v1559 = vpop.f32.mrb[0].mxu0
    %v1560 = vadd.f32 %v1480, %v1559
    %v1561 = vpop.f32.mrb[0].mxu0
    %1562 = vmatprep.mubr.f32.mxu0 0.0
    %1563 = vmatmul.mubr.f32.gmra.mrb[0].mxu0 %v1491
    %v1564 = vpop.f32.mrb[0].mxu0
    %v1565 = vadd.f32 %v1485, %v1564
    %v1566 = vpop.f32.mrb[0].mxu0
    %1567 = vdwg.mxu0
    %v1568 = vld [vmem:[#allocation27] sm:$0xff]
    %v1569 = vld [vmem:[#allocation27 + $0x8] sm:$0xff]
    %v1570 = vld [vmem:[#allocation28] sm:$0xff]
    %v1571 = vld [vmem:[#allocation28 + $0x8] sm:$0xff]
    %v1572 = vld [vmem:[#allocation30] sm:$0xff]
    %v1573 = vld [vmem:[#allocation30 + $0x8] sm:$0xff]
    %1575 = vset.pattern.permute.xlu0 1
    %1576 = vperm.xlu0 %1575, %v1568
    %v1577 = vpop.permute.xlu0 %1576
    %1580 = vset.pattern.permute.xlu0 1
    %1581 = vperm.xlu0 %1580, %v1569
    %v1582 = vpop.permute.xlu0 %1581
    %v1584 = vmul.f32 %v1577, %v1471
    %v1585 = vmul.f32 %v1582, %v1472
    %1588 = vrot.lane.b32.xlu0 %v1471, 97
    %v1589 = vpop.permute.xlu0 %1588
    %1590 = vrot.lane.b32.xlu0 %v1472, 97
    %v1591 = vpop.permute.xlu0 %1590
    %1594 = vrot.lane.b32.xlu0 %v1471, 1
    %v1595 = vpop.permute.xlu0 %1594
    %1596 = vrot.lane.b32.xlu0 %v1472, 1
    %v1597 = vpop.permute.xlu0 %1596
    %v1600 = vsel %vm903, %v1589, %v1595
    %v1601 = vsel %vm903, %v1591, %v1597
    %v1602 = vmul.f32 %v1600, %v909
    %v1603 = vmul.f32 %v1601, %v909
    %1604 = vset.pattern.permute.xlu0 0
    %1605 = vperm.xlu0 %1604, %v1568
    %v1606 = vpop.permute.xlu0 %1605
    %1608 = vset.pattern.permute.xlu0 0
    %1609 = vperm.xlu0 %1608, %v1569
    %v1610 = vpop.permute.xlu0 %1609
    %v1612 = vmul.f32 %v1606, %v1602
    %v1613 = vmul.f32 %v1610, %v1603
    %v1614 = vadd.f32 %v1584, %v1612
    %v1615 = vadd.f32 %v1585, %v1613
    %1616 = vrot.lane.b32.xlu0 %v1471, 127
    %v1617 = vpop.permute.xlu0 %1616
    %1618 = vrot.lane.b32.xlu0 %v1472, 127
    %v1619 = vpop.permute.xlu0 %1618
    %1622 = vrot.lane.b32.xlu0 %v1471, 31
    %v1623 = vpop.permute.xlu0 %1622
    %1624 = vrot.lane.b32.xlu0 %v1472, 31
    %v1625 = vpop.permute.xlu0 %1624
    %v1628 = vsel %vm924, %v1617, %v1623
    %v1629 = vsel %vm924, %v1619, %v1625
    %v1630 = vmul.f32 %v1628, %v930
    %v1631 = vmul.f32 %v1629, %v930
    %1632 = vset.pattern.permute.xlu0 2
    %1633 = vperm.xlu0 %1632, %v1568
    %v1634 = vpop.permute.xlu0 %1633
    %1636 = vset.pattern.permute.xlu0 2
    %1637 = vperm.xlu0 %1636, %v1569
    %v1638 = vpop.permute.xlu0 %1637
    %v1640 = vmul.f32 %v1634, %v1630
    %v1641 = vmul.f32 %v1638, %v1631
    %v1642 = vadd.f32 %v1614, %v1640
    %v1643 = vadd.f32 %v1615, %v1641
    %1645 = vset.pattern.permute.xlu0 0
    %1646 = vperm.xlu0 %1645, %v1572
    %v1647 = vpop.permute.xlu0 %1646
    %1650 = vset.pattern.permute.xlu0 0
    %1651 = vperm.xlu0 %1650, %v1573
    %v1652 = vpop.permute.xlu0 %1651
    %v1655 = vsel %vm1051, %v1570, 0
    %v1658 = vsel %vm1051, %v1571, 0
    %1660 = vmatprep.subr.mxu0 0.0
    %1661 = vmatpush1.msra.mxu0 %v1642
    %1662 = vmatprep.subr.mxu0 0.0
    %1663 = vmatpush1.msra.mxu0 %v1643
    %1664 = vmatprep.subr.mxu0 0.0
    %1665 = vmatpush1.msra.mxu0 0.0
    %1666 = vmatprep.subr.mxu0 0.0
    %1667 = vmatpush1.msra.mxu0 0.0
    %1668 = vmatprep.subr.mxu0 0.0
    %1669 = vmatpush1.msra.mxu0 0.0
    %1670 = vmatprep.subr.mxu0 0.0
    %1671 = vmatpush1.msra.mxu0 0.0
    %1672 = vmatprep.subr.mxu0 0.0
    %1673 = vmatpush1.msra.mxu0 0.0
    %1674 = vmatprep.subr.mxu0 0.0
    %1675 = vmatpush1.msra.mxu0 0.0
    %1676 = vmatprep.subr.mxu0 0.0
    %1677 = vmatpush1.msra.mxu0 0.0
    %1678 = vmatprep.subr.mxu0 0.0
    %1679 = vmatpush1.msra.mxu0 0.0
    %1680 = vmatprep.subr.mxu0 0.0
    %1681 = vmatpush1.msra.mxu0 0.0
    %1682 = vmatprep.subr.mxu0 0.0
    %1683 = vmatpush1.msra.mxu0 0.0
    %1684 = vmatprep.subr.mxu0 0.0
    %1685 = vmatpush1.msra.mxu0 0.0
    %1686 = vmatprep.subr.mxu0 0.0
    %1687 = vmatpush1.msra.mxu0 0.0
    %1688 = vmatprep.subr.mxu0 0.0
    %1689 = vmatpush1.msra.mxu0 0.0
    %1690 = vmatprep.subr.mxu0 0.0
    %1691 = vmatpush1.msra.mxu0 0.0
    %1692 = vmatprep.subr.mxu0 0.0
    %1693 = vmatpush1.msra.mxu0 0.0
    %1694 = vmatprep.subr.mxu0 0.0
    %1695 = vmatpush1.msra.mxu0 0.0
    %1696 = vmatprep.subr.mxu0 0.0
    %1697 = vmatpush1.msra.mxu0 0.0
    %1698 = vmatprep.subr.mxu0 0.0
    %1699 = vmatpush1.msra.mxu0 0.0
    %1700 = vmatprep.subr.mxu0 0.0
    %1701 = vmatpush1.msra.mxu0 0.0
    %1702 = vmatprep.subr.mxu0 0.0
    %1703 = vmatpush1.msra.mxu0 0.0
    %1704 = vmatprep.subr.mxu0 0.0
    %1705 = vmatpush1.msra.mxu0 0.0
    %1706 = vmatprep.subr.mxu0 0.0
    %1707 = vmatpush1.msra.mxu0 0.0
    %1708 = vmatprep.subr.mxu0 0.0
    %1709 = vmatpush1.msra.mxu0 0.0
    %1710 = vmatprep.subr.mxu0 0.0
    %1711 = vmatpush1.msra.mxu0 0.0
    %1712 = vmatprep.subr.mxu0 0.0
    %1713 = vmatpush1.msra.mxu0 0.0
    %1714 = vmatprep.subr.mxu0 0.0
    %1715 = vmatpush1.msra.mxu0 0.0
    %1716 = vmatprep.subr.mxu0 0.0
    %1717 = vmatpush1.msra.mxu0 0.0
    %1718 = vmatprep.subr.mxu0 0.0
    %1719 = vmatpush1.msra.mxu0 0.0
    %1720 = vmatprep.subr.mxu0 0.0
    %1721 = vmatpush1.msra.mxu0 0.0
    %1722 = vmatprep.subr.mxu0 0.0
    %1723 = vmatpush1.msra.mxu0 0.0
    %1724 = vmatprep.mubr.f32.mxu0 0.0
    %1725 = vmatmul.mubr.f32.gmra.mrb[0].mxu0 %v1655
    %v1726 = vpop.f32.mrb[0].mxu0
    %v1727 = vadd.f32 %v1647, %v1726
    %v1728 = vpop.f32.mrb[0].mxu0
    %1729 = vmatprep.mubr.f32.mxu0 0.0
    %1730 = vmatmul.mubr.f32.gmra.mrb[0].mxu0 %v1658
    %v1731 = vpop.f32.mrb[0].mxu0
    %v1732 = vadd.f32 %v1652, %v1731
    %v1733 = vpop.f32.mrb[0].mxu0
    %1734 = vdwg.mxu0
    %v1735 = vmax.f32 %v1727, 0.0
    %v1736 = vmax.f32 %v1732, 0.0
    %v1737 = vld [vmem:[#allocation31] sm:$0xff]
    %v1738 = vld [vmem:[#allocation31 + $0x8] sm:$0xff]
    %v1739 = vld [vmem:[#allocation33] sm:$0xff]
    %v1740 = vld [vmem:[#allocation33 + $0x8] sm:$0xff]
    %v1741 = vld [vmem:[#allocation34] sm:$0xff]
    %v1742 = vld [vmem:[#allocation34 + $0x8] sm:$0xff]
    %1744 = vset.pattern.permute.xlu0 1
    %1745 = vperm.xlu0 %1744, %v1737
    %v1746 = vpop.permute.xlu0 %1745
    %1749 = vset.pattern.permute.xlu0 1
    %1750 = vperm.xlu0 %1749, %v1738
    %v1751 = vpop.permute.xlu0 %1750
    %v1753 = vmul.f32 %v1746, %v1735
    %v1754 = vmul.f32 %v1751, %v1736
    %1757 = vrot.lane.b32.xlu0 %v1735, 97
    %v1758 = vpop.permute.xlu0 %1757
    %1759 = vrot.lane.b32.xlu0 %v1736, 97
    %v1760 = vpop.permute.xlu0 %1759
    %1763 = vrot.lane.b32.xlu0 %v1735, 1
    %v1764 = vpop.permute.xlu0 %1763
    %1765 = vrot.lane.b32.xlu0 %v1736, 1
    %v1766 = vpop.permute.xlu0 %1765
    %v1769 = vsel %vm903, %v1758, %v1764
    %v1770 = vsel %vm903, %v1760, %v1766
    %v1771 = vmul.f32 %v1769, %v909
    %v1772 = vmul.f32 %v1770, %v909
    %1773 = vset.pattern.permute.xlu0 0
    %1774 = vperm.xlu0 %1773, %v1737
    %v1775 = vpop.permute.xlu0 %1774
    %1777 = vset.pattern.permute.xlu0 0
    %1778 = vperm.xlu0 %1777, %v1738
    %v1779 = vpop.permute.xlu0 %1778
    %v1781 = vmul.f32 %v1775, %v1771
    %v1782 = vmul.f32 %v1779, %v1772
    %v1783 = vadd.f32 %v1753, %v1781
    %v1784 = vadd.f32 %v1754, %v1782
    %1785 = vrot.lane.b32.xlu0 %v1735, 127
    %v1786 = vpop.permute.xlu0 %1785
    %1787 = vrot.lane.b32.xlu0 %v1736, 127
    %v1788 = vpop.permute.xlu0 %1787
    %1791 = vrot.lane.b32.xlu0 %v1735, 31
    %v1792 = vpop.permute.xlu0 %1791
    %1793 = vrot.lane.b32.xlu0 %v1736, 31
    %v1794 = vpop.permute.xlu0 %1793
    %v1797 = vsel %vm924, %v1786, %v1792
    %v1798 = vsel %vm924, %v1788, %v1794
    %v1799 = vmul.f32 %v1797, %v930
    %v1800 = vmul.f32 %v1798, %v930
    %1801 = vset.pattern.permute.xlu0 2
    %1802 = vperm.xlu0 %1801, %v1737
    %v1803 = vpop.permute.xlu0 %1802
    %1805 = vset.pattern.permute.xlu0 2
    %1806 = vperm.xlu0 %1805, %v1738
    %v1807 = vpop.permute.xlu0 %1806
    %v1809 = vmul.f32 %v1803, %v1799
    %v1810 = vmul.f32 %v1807, %v1800
    %v1811 = vadd.f32 %v1783, %v1809
    %v1812 = vadd.f32 %v1784, %v1810
    %1814 = vset.pattern.permute.xlu0 0
    %1815 = vperm.xlu0 %1814, %v1741
    %v1816 = vpop.permute.xlu0 %1815
    %1819 = vset.pattern.permute.xlu0 0
    %1820 = vperm.xlu0 %1819, %v1742
    %v1821 = vpop.permute.xlu0 %1820
    %v1824 = vsel %vm1051, %v1739, 0
    %v1827 = vsel %vm1051, %v1740, 0
    %1829 = vmatprep.subr.mxu0 0.0
    %1830 = vmatpush1.msra.mxu0 %v1811
    %1831 = vmatprep.subr.mxu0 0.0
    %1832 = vmatpush1.msra.mxu0 %v1812
    %1833 = vmatprep.subr.mxu0 0.0
    %1834 = vmatpush1.msra.mxu0 0.0
    %1835 = vmatprep.subr.mxu0 0.0
    %1836 = vmatpush1.msra.mxu0 0.0
    %1837 = vmatprep.subr.mxu0 0.0
    %1838 = vmatpush1.msra.mxu0 0.0
    %1839 = vmatprep.subr.mxu0 0.0
    %1840 = vmatpush1.msra.mxu0 0.0
    %1841 = vmatprep.subr.mxu0 0.0
    %1842 = vmatpush1.msra.mxu0 0.0
    %1843 = vmatprep.subr.mxu0 0.0
    %1844 = vmatpush1.msra.mxu0 0.0
    %1845 = vmatprep.subr.mxu0 0.0
    %1846 = vmatpush1.msra.mxu0 0.0
    %1847 = vmatprep.subr.mxu0 0.0
    %1848 = vmatpush1.msra.mxu0 0.0
    %1849 = vmatprep.subr.mxu0 0.0
    %1850 = vmatpush1.msra.mxu0 0.0
    %1851 = vmatprep.subr.mxu0 0.0
    %1852 = vmatpush1.msra.mxu0 0.0
    %1853 = vmatprep.subr.mxu0 0.0
    %1854 = vmatpush1.msra.mxu0 0.0
    %1855 = vmatprep.subr.mxu0 0.0
    %1856 = vmatpush1.msra.mxu0 0.0
    %1857 = vmatprep.subr.mxu0 0.0
    %1858 = vmatpush1.msra.mxu0 0.0
    %1859 = vmatprep.subr.mxu0 0.0
    %1860 = vmatpush1.msra.mxu0 0.0
    %1861 = vmatprep.subr.mxu0 0.0
    %1862 = vmatpush1.msra.mxu0 0.0
    %1863 = vmatprep.subr.mxu0 0.0
    %1864 = vmatpush1.msra.mxu0 0.0
    %1865 = vmatprep.subr.mxu0 0.0
    %1866 = vmatpush1.msra.mxu0 0.0
    %1867 = vmatprep.subr.mxu0 0.0
    %1868 = vmatpush1.msra.mxu0 0.0
    %1869 = vmatprep.subr.mxu0 0.0
    %1870 = vmatpush1.msra.mxu0 0.0
    %1871 = vmatprep.subr.mxu0 0.0
    %1872 = vmatpush1.msra.mxu0 0.0
    %1873 = vmatprep.subr.mxu0 0.0
    %1874 = vmatpush1.msra.mxu0 0.0
    %1875 = vmatprep.subr.mxu0 0.0
    %1876 = vmatpush1.msra.mxu0 0.0
    %1877 = vmatprep.subr.mxu0 0.0
    %1878 = vmatpush1.msra.mxu0 0.0
    %1879 = vmatprep.subr.mxu0 0.0
    %1880 = vmatpush1.msra.mxu0 0.0
    %1881 = vmatprep.subr.mxu0 0.0
    %1882 = vmatpush1.msra.mxu0 0.0
    %1883 = vmatprep.subr.mxu0 0.0
    %1884 = vmatpush1.msra.mxu0 0.0
    %1885 = vmatprep.subr.mxu0 0.0
    %1886 = vmatpush1.msra.mxu0 0.0
    %1887 = vmatprep.subr.mxu0 0.0
    %1888 = vmatpush1.msra.mxu0 0.0
    %1889 = vmatprep.subr.mxu0 0.0
    %1890 = vmatpush1.msra.mxu0 0.0
    %1891 = vmatprep.subr.mxu0 0.0
    %1892 = vmatpush1.msra.mxu0 0.0
    %1893 = vmatprep.mubr.f32.mxu0 0.0
    %1894 = vmatmul.mubr.f32.gmra.mrb[0].mxu0 %v1824
    %v1895 = vpop.f32.mrb[0].mxu0
    %v1896 = vadd.f32 %v1816, %v1895
    %v1897 = vpop.f32.mrb[0].mxu0
    %1898 = vmatprep.mubr.f32.mxu0 0.0
    %1899 = vmatmul.mubr.f32.gmra.mrb[0].mxu0 %v1827
    %v1900 = vpop.f32.mrb[0].mxu0
    %v1901 = vadd.f32 %v1821, %v1900
    %v1902 = vpop.f32.mrb[0].mxu0
    %1903 = vdwg.mxu0
    %v1904 = vadd.f32 %v1896, %v1560
    %v1905 = vadd.f32 %v1901, %v1565
    %v1906 = vmax.f32 %v1904, 0.0
    %v1907 = vmax.f32 %v1905, 0.0
    %v1908 = vld [vmem:[#allocation36] sm:$0xff]
    %v1909 = vld [vmem:[#allocation36 + $0x8] sm:$0xff]
    %v1910 = vld [vmem:[#allocation37] sm:$0xff]
    %v1911 = vld [vmem:[#allocation37 + $0x8] sm:$0xff]
    %1913 = vset.pattern.permute.xlu0 0
    %1914 = vperm.xlu0 %1913, %v1910
    %v1915 = vpop.permute.xlu0 %1914
    %1918 = vset.pattern.permute.xlu0 0
    %1919 = vperm.xlu0 %1918, %v1911
    %v1920 = vpop.permute.xlu0 %1919
    %v1923 = vsel %vm1051, %v1908, 0
    %v1926 = vsel %vm1051, %v1909, 0
    %1928 = vmatprep.subr.mxu0 0.0
    %1929 = vmatpush1.msra.mxu0 %v1906
    %1930 = vmatprep.subr.mxu0 0.0
    %1931 = vmatpush1.msra.mxu0 %v1907
    %1932 = vmatprep.subr.mxu0 0.0
    %1933 = vmatpush1.msra.mxu0 0.0
    %1934 = vmatprep.subr.mxu0 0.0
    %1935 = vmatpush1.msra.mxu0 0.0
    %1936 = vmatprep.subr.mxu0 0.0
    %1937 = vmatpush1.msra.mxu0 0.0
    %1938 = vmatprep.subr.mxu0 0.0
    %1939 = vmatpush1.msra.mxu0 0.0
    %1940 = vmatprep.subr.mxu0 0.0
    %1941 = vmatpush1.msra.mxu0 0.0
    %1942 = vmatprep.subr.mxu0 0.0
    %1943 = vmatpush1.msra.mxu0 0.0
    %1944 = vmatprep.subr.mxu0 0.0
    %1945 = vmatpush1.msra.mxu0 0.0
    %1946 = vmatprep.subr.mxu0 0.0
    %1947 = vmatpush1.msra.mxu0 0.0
    %1948 = vmatprep.subr.mxu0 0.0
    %1949 = vmatpush1.msra.mxu0 0.0
    %1950 = vmatprep.subr.mxu0 0.0
    %1951 = vmatpush1.msra.mxu0 0.0
    %1952 = vmatprep.subr.mxu0 0.0
    %1953 = vmatpush1.msra.mxu0 0.0
    %1954 = vmatprep.subr.mxu0 0.0
    %1955 = vmatpush1.msra.mxu0 0.0
    %1956 = vmatprep.subr.mxu0 0.0
    %1957 = vmatpush1.msra.mxu0 0.0
    %1958 = vmatprep.subr.mxu0 0.0
    %1959 = vmatpush1.msra.mxu0 0.0
    %1960 = vmatprep.subr.mxu0 0.0
    %1961 = vmatpush1.msra.mxu0 0.0
    %1962 = vmatprep.subr.mxu0 0.0
    %1963 = vmatpush1.msra.mxu0 0.0
    %1964 = vmatprep.subr.mxu0 0.0
    %1965 = vmatpush1.msra.mxu0 0.0
    %1966 = vmatprep.subr.mxu0 0.0
    %1967 = vmatpush1.msra.mxu0 0.0
    %1968 = vmatprep.subr.mxu0 0.0
    %1969 = vmatpush1.msra.mxu0 0.0
    %1970 = vmatprep.subr.mxu0 0.0
    %1971 = vmatpush1.msra.mxu0 0.0
    %1972 = vmatprep.subr.mxu0 0.0
    %1973 = vmatpush1.msra.mxu0 0.0
    %1974 = vmatprep.subr.mxu0 0.0
    %1975 = vmatpush1.msra.mxu0 0.0
    %1976 = vmatprep.subr.mxu0 0.0
    %1977 = vmatpush1.msra.mxu0 0.0
    %1978 = vmatprep.subr.mxu0 0.0
    %1979 = vmatpush1.msra.mxu0 0.0
    %1980 = vmatprep.subr.mxu0 0.0
    %1981 = vmatpush1.msra.mxu0 0.0
    %1982 = vmatprep.subr.mxu0 0.0
    %1983 = vmatpush1.msra.mxu0 0.0
    %1984 = vmatprep.subr.mxu0 0.0
    %1985 = vmatpush1.msra.mxu0 0.0
    %1986 = vmatprep.subr.mxu0 0.0
    %1987 = vmatpush1.msra.mxu0 0.0
    %1988 = vmatprep.subr.mxu0 0.0
    %1989 = vmatpush1.msra.mxu0 0.0
    %1990 = vmatprep.subr.mxu0 0.0
    %1991 = vmatpush1.msra.mxu0 0.0
    %1992 = vmatprep.mubr.f32.mxu0 0.0
    %1993 = vmatmul.mubr.f32.gmra.mrb[0].mxu0 %v1923
    %v1994 = vpop.f32.mrb[0].mxu0
    %v1995 = vadd.f32 %v1915, %v1994
    %v1996 = vpop.f32.mrb[0].mxu0
    %1997 = vmatprep.mubr.f32.mxu0 0.0
    %1998 = vmatmul.mubr.f32.gmra.mrb[0].mxu0 %v1926
    %v1999 = vpop.f32.mrb[0].mxu0
    %v2000 = vadd.f32 %v1920, %v1999
    %v2001 = vpop.f32.mrb[0].mxu0
    %2002 = vdwg.mxu0
    %v2003 = vld [vmem:[#allocation39] sm:$0xff]
    %v2004 = vld [vmem:[#allocation39 + $0x8] sm:$0xff]
    %v2005 = vld [vmem:[#allocation40] sm:$0xff]
    %v2006 = vld [vmem:[#allocation40 + $0x8] sm:$0xff]
    %v2007 = vld [vmem:[#allocation42] sm:$0xff]
    %v2008 = vld [vmem:[#allocation42 + $0x8] sm:$0xff]
    %2010 = vset.pattern.permute.xlu0 1
    %2011 = vperm.xlu0 %2010, %v2003
    %v2012 = vpop.permute.xlu0 %2011
    %2015 = vset.pattern.permute.xlu0 1
    %2016 = vperm.xlu0 %2015, %v2004
    %v2017 = vpop.permute.xlu0 %2016
    %v2019 = vmul.f32 %v2012, %v1906
    %v2020 = vmul.f32 %v2017, %v1907
    %2023 = vrot.lane.b32.xlu0 %v1906, 97
    %v2024 = vpop.permute.xlu0 %2023
    %2025 = vrot.lane.b32.xlu0 %v1907, 97
    %v2026 = vpop.permute.xlu0 %2025
    %2029 = vrot.lane.b32.xlu0 %v1906, 1
    %v2030 = vpop.permute.xlu0 %2029
    %2031 = vrot.lane.b32.xlu0 %v1907, 1
    %v2032 = vpop.permute.xlu0 %2031
    %v2035 = vsel %vm903, %v2024, %v2030
    %v2036 = vsel %vm903, %v2026, %v2032
    %v2037 = vmul.f32 %v2035, %v909
    %v2038 = vmul.f32 %v2036, %v909
    %2039 = vset.pattern.permute.xlu0 0
    %2040 = vperm.xlu0 %2039, %v2003
    %v2041 = vpop.permute.xlu0 %2040
    %2043 = vset.pattern.permute.xlu0 0
    %2044 = vperm.xlu0 %2043, %v2004
    %v2045 = vpop.permute.xlu0 %2044
    %v2047 = vmul.f32 %v2041, %v2037
    %v2048 = vmul.f32 %v2045, %v2038
    %v2049 = vadd.f32 %v2019, %v2047
    %v2050 = vadd.f32 %v2020, %v2048
    %2051 = vrot.lane.b32.xlu0 %v1906, 127
    %v2052 = vpop.permute.xlu0 %2051
    %2053 = vrot.lane.b32.xlu0 %v1907, 127
    %v2054 = vpop.permute.xlu0 %2053
    %2057 = vrot.lane.b32.xlu0 %v1906, 31
    %v2058 = vpop.permute.xlu0 %2057
    %2059 = vrot.lane.b32.xlu0 %v1907, 31
    %v2060 = vpop.permute.xlu0 %2059
    %v2063 = vsel %vm924, %v2052, %v2058
    %v2064 = vsel %vm924, %v2054, %v2060
    %v2065 = vmul.f32 %v2063, %v930
    %v2066 = vmul.f32 %v2064, %v930
    %2067 = vset.pattern.permute.xlu0 2
    %2068 = vperm.xlu0 %2067, %v2003
    %v2069 = vpop.permute.xlu0 %2068
    %2071 = vset.pattern.permute.xlu0 2
    %2072 = vperm.xlu0 %2071, %v2004
    %v2073 = vpop.permute.xlu0 %2072
    %v2075 = vmul.f32 %v2069, %v2065
    %v2076 = vmul.f32 %v2073, %v2066
    %v2077 = vadd.f32 %v2049, %v2075
    %v2078 = vadd.f32 %v2050, %v2076
    %2080 = vset.pattern.permute.xlu0 0
    %2081 = vperm.xlu0 %2080, %v2007
    %v2082 = vpop.permute.xlu0 %2081
    %2085 = vset.pattern.permute.xlu0 0
    %2086 = vperm.xlu0 %2085, %v2008
    %v2087 = vpop.permute.xlu0 %2086
    %v2090 = vsel %vm1051, %v2005, 0
    %v2093 = vsel %vm1051, %v2006, 0
    %2095 = vmatprep.subr.mxu0 0.0
    %2096 = vmatpush1.msra.mxu0 %v2077
    %2097 = vmatprep.subr.mxu0 0.0
    %2098 = vmatpush1.msra.mxu0 %v2078
    %2099 = vmatprep.subr.mxu0 0.0
    %2100 = vmatpush1.msra.mxu0 0.0
    %2101 = vmatprep.subr.mxu0 0.0
    %2102 = vmatpush1.msra.mxu0 0.0
    %2103 = vmatprep.subr.mxu0 0.0
    %2104 = vmatpush1.msra.mxu0 0.0
    %2105 = vmatprep.subr.mxu0 0.0
    %2106 = vmatpush1.msra.mxu0 0.0
    %2107 = vmatprep.subr.mxu0 0.0
    %2108 = vmatpush1.msra.mxu0 0.0
    %2109 = vmatprep.subr.mxu0 0.0
    %2110 = vmatpush1.msra.mxu0 0.0
    %2111 = vmatprep.subr.mxu0 0.0
    %2112 = vmatpush1.msra.mxu0 0.0
    %2113 = vmatprep.subr.mxu0 0.0
    %2114 = vmatpush1.msra.mxu0 0.0
    %2115 = vmatprep.subr.mxu0 0.0
    %2116 = vmatpush1.msra.mxu0 0.0
    %2117 = vmatprep.subr.mxu0 0.0
    %2118 = vmatpush1.msra.mxu0 0.0
    %2119 = vmatprep.subr.mxu0 0.0
    %2120 = vmatpush1.msra.mxu0 0.0
    %2121 = vmatprep.subr.mxu0 0.0
    %2122 = vmatpush1.msra.mxu0 0.0
    %2123 = vmatprep.subr.mxu0 0.0
    %2124 = vmatpush1.msra.mxu0 0.0
    %2125 = vmatprep.subr.mxu0 0.0
    %2126 = vmatpush1.msra.mxu0 0.0
    %2127 = vmatprep.subr.mxu0 0.0
    %2128 = vmatpush1.msra.mxu0 0.0
    %2129 = vmatprep.subr.mxu0 0.0
    %2130 = vmatpush1.msra.mxu0 0.0
    %2131 = vmatprep.subr.mxu0 0.0
    %2132 = vmatpush1.msra.mxu0 0.0
    %2133 = vmatprep.subr.mxu0 0.0
    %2134 = vmatpush1.msra.mxu0 0.0
    %2135 = vmatprep.subr.mxu0 0.0
    %2136 = vmatpush1.msra.mxu0 0.0
    %2137 = vmatprep.subr.mxu0 0.0
    %2138 = vmatpush1.msra.mxu0 0.0
    %2139 = vmatprep.subr.mxu0 0.0
    %2140 = vmatpush1.msra.mxu0 0.0
    %2141 = vmatprep.subr.mxu0 0.0
    %2142 = vmatpush1.msra.mxu0 0.0
    %2143 = vmatprep.subr.mxu0 0.0
    %2144 = vmatpush1.msra.mxu0 0.0
    %2145 = vmatprep.subr.mxu0 0.0
    %2146 = vmatpush1.msra.mxu0 0.0
    %2147 = vmatprep.subr.mxu0 0.0
    %2148 = vmatpush1.msra.mxu0 0.0
    %2149 = vmatprep.subr.mxu0 0.0
    %2150 = vmatpush1.msra.mxu0 0.0
    %2151 = vmatprep.subr.mxu0 0.0
    %2152 = vmatpush1.msra.mxu0 0.0
    %2153 = vmatprep.subr.mxu0 0.0
    %2154 = vmatpush1.msra.mxu0 0.0
    %2155 = vmatprep.subr.mxu0 0.0
    %2156 = vmatpush1.msra.mxu0 0.0
    %2157 = vmatprep.subr.mxu0 0.0
    %2158 = vmatpush1.msra.mxu0 0.0
    %2159 = vmatprep.mubr.f32.mxu0 0.0
    %2160 = vmatmul.mubr.f32.gmra.mrb[0].mxu0 %v2090
    %v2161 = vpop.f32.mrb[0].mxu0
    %v2162 = vadd.f32 %v2082, %v2161
    %v2163 = vpop.f32.mrb[0].mxu0
    %2164 = vmatprep.mubr.f32.mxu0 0.0
    %2165 = vmatmul.mubr.f32.gmra.mrb[0].mxu0 %v2093
    %v2166 = vpop.f32.mrb[0].mxu0
    %v2167 = vadd.f32 %v2087, %v2166
    %v2168 = vpop.f32.mrb[0].mxu0
    %2169 = vdwg.mxu0
    %v2170 = vmax.f32 %v2162, 0.0
    %v2171 = vmax.f32 %v2167, 0.0
    %v2172 = vld [vmem:[#allocation43] sm:$0xff]
    %v2173 = vld [vmem:[#allocation43 + $0x8] sm:$0xff]
    %v2174 = vld [vmem:[#allocation45] sm:$0xff]
    %v2175 = vld [vmem:[#allocation45 + $0x8] sm:$0xff]
    %v2176 = vld [vmem:[#allocation46] sm:$0xff]
    %v2177 = vld [vmem:[#allocation46 + $0x8] sm:$0xff]
    %2179 = vset.pattern.permute.xlu0 1
    %2180 = vperm.xlu0 %2179, %v2172
    %v2181 = vpop.permute.xlu0 %2180
    %2184 = vset.pattern.permute.xlu0 1
    %2185 = vperm.xlu0 %2184, %v2173
    %v2186 = vpop.permute.xlu0 %2185
    %v2188 = vmul.f32 %v2181, %v2170
    %v2189 = vmul.f32 %v2186, %v2171
    %2192 = vrot.lane.b32.xlu0 %v2170, 97
    %v2193 = vpop.permute.xlu0 %2192
    %2194 = vrot.lane.b32.xlu0 %v2171, 97
    %v2195 = vpop.permute.xlu0 %2194
    %2198 = vrot.lane.b32.xlu0 %v2170, 1
    %v2199 = vpop.permute.xlu0 %2198
    %2200 = vrot.lane.b32.xlu0 %v2171, 1
    %v2201 = vpop.permute.xlu0 %2200
    %v2204 = vsel %vm903, %v2193, %v2199
    %v2205 = vsel %vm903, %v2195, %v2201
    %v2206 = vmul.f32 %v2204, %v909
    %v2207 = vmul.f32 %v2205, %v909
    %2208 = vset.pattern.permute.xlu0 0
    %2209 = vperm.xlu0 %2208, %v2172
    %v2210 = vpop.permute.xlu0 %2209
    %2212 = vset.pattern.permute.xlu0 0
    %2213 = vperm.xlu0 %2212, %v2173
    %v2214 = vpop.permute.xlu0 %2213
    %v2216 = vmul.f32 %v2210, %v2206
    %v2217 = vmul.f32 %v2214, %v2207
    %v2218 = vadd.f32 %v2188, %v2216
    %v2219 = vadd.f32 %v2189, %v2217
    %2220 = vrot.lane.b32.xlu0 %v2170, 127
    %v2221 = vpop.permute.xlu0 %2220
    %2222 = vrot.lane.b32.xlu0 %v2171, 127
    %v2223 = vpop.permute.xlu0 %2222
    %2226 = vrot.lane.b32.xlu0 %v2170, 31
    %v2227 = vpop.permute.xlu0 %2226
    %2228 = vrot.lane.b32.xlu0 %v2171, 31
    %v2229 = vpop.permute.xlu0 %2228
    %v2232 = vsel %vm924, %v2221, %v2227
    %v2233 = vsel %vm924, %v2223, %v2229
    %v2234 = vmul.f32 %v2232, %v930
    %v2235 = vmul.f32 %v2233, %v930
    %2236 = vset.pattern.permute.xlu0 2
    %2237 = vperm.xlu0 %2236, %v2172
    %v2238 = vpop.permute.xlu0 %2237
    %2240 = vset.pattern.permute.xlu0 2
    %2241 = vperm.xlu0 %2240, %v2173
    %v2242 = vpop.permute.xlu0 %2241
    %v2244 = vmul.f32 %v2238, %v2234
    %v2245 = vmul.f32 %v2242, %v2235
    %v2246 = vadd.f32 %v2218, %v2244
    %v2247 = vadd.f32 %v2219, %v2245
    %2249 = vset.pattern.permute.xlu0 0
    %2250 = vperm.xlu0 %2249, %v2176
    %v2251 = vpop.permute.xlu0 %2250
    %2254 = vset.pattern.permute.xlu0 0
    %2255 = vperm.xlu0 %2254, %v2177
    %v2256 = vpop.permute.xlu0 %2255
    %v2259 = vsel %vm1051, %v2174, 0
    %v2262 = vsel %vm1051, %v2175, 0
    %2264 = vmatprep.subr.mxu0 0.0
    %2265 = vmatpush1.msra.mxu0 %v2246
    %2266 = vmatprep.subr.mxu0 0.0
    %2267 = vmatpush1.msra.mxu0 %v2247
    %2268 = vmatprep.subr.mxu0 0.0
    %2269 = vmatpush1.msra.mxu0 0.0
    %2270 = vmatprep.subr.mxu0 0.0
    %2271 = vmatpush1.msra.mxu0 0.0
    %2272 = vmatprep.subr.mxu0 0.0
    %2273 = vmatpush1.msra.mxu0 0.0
    %2274 = vmatprep.subr.mxu0 0.0
    %2275 = vmatpush1.msra.mxu0 0.0
    %2276 = vmatprep.subr.mxu0 0.0
    %2277 = vmatpush1.msra.mxu0 0.0
    %2278 = vmatprep.subr.mxu0 0.0
    %2279 = vmatpush1.msra.mxu0 0.0
    %2280 = vmatprep.subr.mxu0 0.0
    %2281 = vmatpush1.msra.mxu0 0.0
    %2282 = vmatprep.subr.mxu0 0.0
    %2283 = vmatpush1.msra.mxu0 0.0
    %2284 = vmatprep.subr.mxu0 0.0
    %2285 = vmatpush1.msra.mxu0 0.0
    %2286 = vmatprep.subr.mxu0 0.0
    %2287 = vmatpush1.msra.mxu0 0.0
    %2288 = vmatprep.subr.mxu0 0.0
    %2289 = vmatpush1.msra.mxu0 0.0
    %2290 = vmatprep.subr.mxu0 0.0
    %2291 = vmatpush1.msra.mxu0 0.0
    %2292 = vmatprep.subr.mxu0 0.0
    %2293 = vmatpush1.msra.mxu0 0.0
    %2294 = vmatprep.subr.mxu0 0.0
    %2295 = vmatpush1.msra.mxu0 0.0
    %2296 = vmatprep.subr.mxu0 0.0
    %2297 = vmatpush1.msra.mxu0 0.0
    %2298 = vmatprep.subr.mxu0 0.0
    %2299 = vmatpush1.msra.mxu0 0.0
    %2300 = vmatprep.subr.mxu0 0.0
    %2301 = vmatpush1.msra.mxu0 0.0
    %2302 = vmatprep.subr.mxu0 0.0
    %2303 = vmatpush1.msra.mxu0 0.0
    %2304 = vmatprep.subr.mxu0 0.0
    %2305 = vmatpush1.msra.mxu0 0.0
    %2306 = vmatprep.subr.mxu0 0.0
    %2307 = vmatpush1.msra.mxu0 0.0
    %2308 = vmatprep.subr.mxu0 0.0
    %2309 = vmatpush1.msra.mxu0 0.0
    %2310 = vmatprep.subr.mxu0 0.0
    %2311 = vmatpush1.msra.mxu0 0.0
    %2312 = vmatprep.subr.mxu0 0.0
    %2313 = vmatpush1.msra.mxu0 0.0
    %2314 = vmatprep.subr.mxu0 0.0
    %2315 = vmatpush1.msra.mxu0 0.0
    %2316 = vmatprep.subr.mxu0 0.0
    %2317 = vmatpush1.msra.mxu0 0.0
    %2318 = vmatprep.subr.mxu0 0.0
    %2319 = vmatpush1.msra.mxu0 0.0
    %2320 = vmatprep.subr.mxu0 0.0
    %2321 = vmatpush1.msra.mxu0 0.0
    %2322 = vmatprep.subr.mxu0 0.0
    %2323 = vmatpush1.msra.mxu0 0.0
    %2324 = vmatprep.subr.mxu0 0.0
    %2325 = vmatpush1.msra.mxu0 0.0
    %2326 = vmatprep.subr.mxu0 0.0
    %2327 = vmatpush1.msra.mxu0 0.0
    %2328 = vmatprep.mubr.f32.mxu0 0.0
    %2329 = vmatmul.mubr.f32.gmra.mrb[0].mxu0 %v2259
    %v2330 = vpop.f32.mrb[0].mxu0
    %v2331 = vadd.f32 %v2251, %v2330
    %v2332 = vpop.f32.mrb[0].mxu0
    %2333 = vmatprep.mubr.f32.mxu0 0.0
    %2334 = vmatmul.mubr.f32.gmra.mrb[0].mxu0 %v2262
    %v2335 = vpop.f32.mrb[0].mxu0
    %v2336 = vadd.f32 %v2256, %v2335
    %v2337 = vpop.f32.mrb[0].mxu0
    %2338 = vdwg.mxu0
    %v2339 = vadd.f32 %v2331, %v1995
    %v2340 = vadd.f32 %v2336, %v2000
    %v2341 = vmax.f32 %v2339, 0.0
    %v2342 = vmax.f32 %v2340, 0.0
    %v2343 = vld [vmem:[#allocation48] sm:$0xff]
    %v2344 = vld [vmem:[#allocation48 + $0x8] sm:$0xff]
    %v2345 = vld [vmem:[#allocation49] sm:$0xff]
    %v2346 = vld [vmem:[#allocation49 + $0x8] sm:$0xff]
    %2348 = vset.pattern.permute.xlu0 0
    %2349 = vperm.xlu0 %2348, %v2345
    %v2350 = vpop.permute.xlu0 %2349
    %2353 = vset.pattern.permute.xlu0 0
    %2354 = vperm.xlu0 %2353, %v2346
    %v2355 = vpop.permute.xlu0 %2354
    %v2358 = vsel %vm1051, %v2343, 0
    %v2361 = vsel %vm1051, %v2344, 0
    %2363 = vmatprep.subr.mxu0 0.0
    %2364 = vmatpush1.msra.mxu0 %v2341
    %2365 = vmatprep.subr.mxu0 0.0
    %2366 = vmatpush1.msra.mxu0 %v2342
    %2367 = vmatprep.subr.mxu0 0.0
    %2368 = vmatpush1.msra.mxu0 0.0
    %2369 = vmatprep.subr.mxu0 0.0
    %2370 = vmatpush1.msra.mxu0 0.0
    %2371 = vmatprep.subr.mxu0 0.0
    %2372 = vmatpush1.msra.mxu0 0.0
    %2373 = vmatprep.subr.mxu0 0.0
    %2374 = vmatpush1.msra.mxu0 0.0
    %2375 = vmatprep.subr.mxu0 0.0
    %2376 = vmatpush1.msra.mxu0 0.0
    %2377 = vmatprep.subr.mxu0 0.0
    %2378 = vmatpush1.msra.mxu0 0.0
    %2379 = vmatprep.subr.mxu0 0.0
    %2380 = vmatpush1.msra.mxu0 0.0
    %2381 = vmatprep.subr.mxu0 0.0
    %2382 = vmatpush1.msra.mxu0 0.0
    %2383 = vmatprep.subr.mxu0 0.0
    %2384 = vmatpush1.msra.mxu0 0.0
    %2385 = vmatprep.subr.mxu0 0.0
    %2386 = vmatpush1.msra.mxu0 0.0
    %2387 = vmatprep.subr.mxu0 0.0
    %2388 = vmatpush1.msra.mxu0 0.0
    %2389 = vmatprep.subr.mxu0 0.0
    %2390 = vmatpush1.msra.mxu0 0.0
    %2391 = vmatprep.subr.mxu0 0.0
    %2392 = vmatpush1.msra.mxu0 0.0
    %2393 = vmatprep.subr.mxu0 0.0
    %2394 = vmatpush1.msra.mxu0 0.0
    %2395 = vmatprep.subr.mxu0 0.0
    %2396 = vmatpush1.msra.mxu0 0.0
    %2397 = vmatprep.subr.mxu0 0.0
    %2398 = vmatpush1.msra.mxu0 0.0
    %2399 = vmatprep.subr.mxu0 0.0
    %2400 = vmatpush1.msra.mxu0 0.0
    %2401 = vmatprep.subr.mxu0 0.0
    %2402 = vmatpush1.msra.mxu0 0.0
    %2403 = vmatprep.subr.mxu0 0.0
    %2404 = vmatpush1.msra.mxu0 0.0
    %2405 = vmatprep.subr.mxu0 0.0
    %2406 = vmatpush1.msra.mxu0 0.0
    %2407 = vmatprep.subr.mxu0 0.0
    %2408 = vmatpush1.msra.mxu0 0.0
    %2409 = vmatprep.subr.mxu0 0.0
    %2410 = vmatpush1.msra.mxu0 0.0
    %2411 = vmatprep.subr.mxu0 0.0
    %2412 = vmatpush1.msra.mxu0 0.0
    %2413 = vmatprep.subr.mxu0 0.0
    %2414 = vmatpush1.msra.mxu0 0.0
    %2415 = vmatprep.subr.mxu0 0.0
    %2416 = vmatpush1.msra.mxu0 0.0
    %2417 = vmatprep.subr.mxu0 0.0
    %2418 = vmatpush1.msra.mxu0 0.0
    %2419 = vmatprep.subr.mxu0 0.0
    %2420 = vmatpush1.msra.mxu0 0.0
    %2421 = vmatprep.subr.mxu0 0.0
    %2422 = vmatpush1.msra.mxu0 0.0
    %2423 = vmatprep.subr.mxu0 0.0
    %2424 = vmatpush1.msra.mxu0 0.0
    %2425 = vmatprep.subr.mxu0 0.0
    %2426 = vmatpush1.msra.mxu0 0.0
    %2427 = vmatprep.mubr.f32.mxu0 0.0
    %2428 = vmatmul.mubr.f32.gmra.mrb[0].mxu0 %v2358
    %v2429 = vpop.f32.mrb[0].mxu0
    %v2430 = vadd.f32 %v2350, %v2429
    %v2431 = vpop.f32.mrb[0].mxu0
    %2432 = vmatprep.mubr.f32.mxu0 0.0
    %2433 = vmatmul.mubr.f32.gmra.mrb[0].mxu0 %v2361
    %v2434 = vpop.f32.mrb[0].mxu0
    %v2435 = vadd.f32 %v2355, %v2434
    %v2436 = vpop.f32.mrb[0].mxu0
    %2437 = vdwg.mxu0
    %v2438 = vld [vmem:[#allocation51] sm:$0xff]
    %v2439 = vld [vmem:[#allocation51 + $0x8] sm:$0xff]
    %v2440 = vld [vmem:[#allocation52] sm:$0xff]
    %v2441 = vld [vmem:[#allocation52 + $0x8] sm:$0xff]
    %v2442 = vld [vmem:[#allocation54] sm:$0xff]
    %v2443 = vld [vmem:[#allocation54 + $0x8] sm:$0xff]
    %2445 = vset.pattern.permute.xlu0 1
    %2446 = vperm.xlu0 %2445, %v2438
    %v2447 = vpop.permute.xlu0 %2446
    %2450 = vset.pattern.permute.xlu0 1
    %2451 = vperm.xlu0 %2450, %v2439
    %v2452 = vpop.permute.xlu0 %2451
    %v2454 = vmul.f32 %v2447, %v2341
    %v2455 = vmul.f32 %v2452, %v2342
    %2458 = vrot.lane.b32.xlu0 %v2341, 97
    %v2459 = vpop.permute.xlu0 %2458
    %2460 = vrot.lane.b32.xlu0 %v2342, 97
    %v2461 = vpop.permute.xlu0 %2460
    %2464 = vrot.lane.b32.xlu0 %v2341, 1
    %v2465 = vpop.permute.xlu0 %2464
    %2466 = vrot.lane.b32.xlu0 %v2342, 1
    %v2467 = vpop.permute.xlu0 %2466
    %v2470 = vsel %vm903, %v2459, %v2465
    %v2471 = vsel %vm903, %v2461, %v2467
    %v2472 = vmul.f32 %v2470, %v909
    %v2473 = vmul.f32 %v2471, %v909
    %2474 = vset.pattern.permute.xlu0 0
    %2475 = vperm.xlu0 %2474, %v2438
    %v2476 = vpop.permute.xlu0 %2475
    %2478 = vset.pattern.permute.xlu0 0
    %2479 = vperm.xlu0 %2478, %v2439
    %v2480 = vpop.permute.xlu0 %2479
    %v2482 = vmul.f32 %v2476, %v2472
    %v2483 = vmul.f32 %v2480, %v2473
    %v2484 = vadd.f32 %v2454, %v2482
    %v2485 = vadd.f32 %v2455, %v2483
    %2486 = vrot.lane.b32.xlu0 %v2341, 127
    %v2487 = vpop.permute.xlu0 %2486
    %2488 = vrot.lane.b32.xlu0 %v2342, 127
    %v2489 = vpop.permute.xlu0 %2488
    %2492 = vrot.lane.b32.xlu0 %v2341, 31
    %v2493 = vpop.permute.xlu0 %2492
    %2494 = vrot.lane.b32.xlu0 %v2342, 31
    %v2495 = vpop.permute.xlu0 %2494
    %v2498 = vsel %vm924, %v2487, %v2493
    %v2499 = vsel %vm924, %v2489, %v2495
    %v2500 = vmul.f32 %v2498, %v930
    %v2501 = vmul.f32 %v2499, %v930
    %2502 = vset.pattern.permute.xlu0 2
    %2503 = vperm.xlu0 %2502, %v2438
    %v2504 = vpop.permute.xlu0 %2503
    %2506 = vset.pattern.permute.xlu0 2
    %2507 = vperm.xlu0 %2506, %v2439
    %v2508 = vpop.permute.xlu0 %2507
    %v2510 = vmul.f32 %v2504, %v2500
    %v2511 = vmul.f32 %v2508, %v2501
    %v2512 = vadd.f32 %v2484, %v2510
    %v2513 = vadd.f32 %v2485, %v2511
    %2515 = vset.pattern.permute.xlu0 0
    %2516 = vperm.xlu0 %2515, %v2442
    %v2517 = vpop.permute.xlu0 %2516
    %2520 = vset.pattern.permute.xlu0 0
    %2521 = vperm.xlu0 %2520, %v2443
    %v2522 = vpop.permute.xlu0 %2521
    %v2525 = vsel %vm1051, %v2440, 0
    %v2528 = vsel %vm1051, %v2441, 0
    %2530 = vmatprep.subr.mxu0 0.0
    %2531 = vmatpush1.msra.mxu0 %v2512
    %2532 = vmatprep.subr.mxu0 0.0
    %2533 = vmatpush1.msra.mxu0 %v2513
    %2534 = vmatprep.subr.mxu0 0.0
    %2535 = vmatpush1.msra.mxu0 0.0
    %2536 = vmatprep.subr.mxu0 0.0
    %2537 = vmatpush1.msra.mxu0 0.0
    %2538 = vmatprep.subr.mxu0 0.0
    %2539 = vmatpush1.msra.mxu0 0.0
    %2540 = vmatprep.subr.mxu0 0.0
    %2541 = vmatpush1.msra.mxu0 0.0
    %2542 = vmatprep.subr.mxu0 0.0
    %2543 = vmatpush1.msra.mxu0 0.0
    %2544 = vmatprep.subr.mxu0 0.0
    %2545 = vmatpush1.msra.mxu0 0.0
    %2546 = vmatprep.subr.mxu0 0.0
    %2547 = vmatpush1.msra.mxu0 0.0
    %2548 = vmatprep.subr.mxu0 0.0
    %2549 = vmatpush1.msra.mxu0 0.0
    %2550 = vmatprep.subr.mxu0 0.0
    %2551 = vmatpush1.msra.mxu0 0.0
    %2552 = vmatprep.subr.mxu0 0.0
    %2553 = vmatpush1.msra.mxu0 0.0
    %2554 = vmatprep.subr.mxu0 0.0
    %2555 = vmatpush1.msra.mxu0 0.0
    %2556 = vmatprep.subr.mxu0 0.0
    %2557 = vmatpush1.msra.mxu0 0.0
    %2558 = vmatprep.subr.mxu0 0.0
    %2559 = vmatpush1.msra.mxu0 0.0
    %2560 = vmatprep.subr.mxu0 0.0
    %2561 = vmatpush1.msra.mxu0 0.0
    %2562 = vmatprep.subr.mxu0 0.0
    %2563 = vmatpush1.msra.mxu0 0.0
    %2564 = vmatprep.subr.mxu0 0.0
    %2565 = vmatpush1.msra.mxu0 0.0
    %2566 = vmatprep.subr.mxu0 0.0
    %2567 = vmatpush1.msra.mxu0 0.0
    %2568 = vmatprep.subr.mxu0 0.0
    %2569 = vmatpush1.msra.mxu0 0.0
    %2570 = vmatprep.subr.mxu0 0.0
    %2571 = vmatpush1.msra.mxu0 0.0
    %2572 = vmatprep.subr.mxu0 0.0
    %2573 = vmatpush1.msra.mxu0 0.0
    %2574 = vmatprep.subr.mxu0 0.0
    %2575 = vmatpush1.msra.mxu0 0.0
    %2576 = vmatprep.subr.mxu0 0.0
    %2577 = vmatpush1.msra.mxu0 0.0
    %2578 = vmatprep.subr.mxu0 0.0
    %2579 = vmatpush1.msra.mxu0 0.0
    %2580 = vmatprep.subr.mxu0 0.0
    %2581 = vmatpush1.msra.mxu0 0.0
    %2582 = vmatprep.subr.mxu0 0.0
    %2583 = vmatpush1.msra.mxu0 0.0
    %2584 = vmatprep.subr.mxu0 0.0
    %2585 = vmatpush1.msra.mxu0 0.0
    %2586 = vmatprep.subr.mxu0 0.0
    %2587 = vmatpush1.msra.mxu0 0.0
    %2588 = vmatprep.subr.mxu0 0.0
    %2589 = vmatpush1.msra.mxu0 0.0
    %2590 = vmatprep.subr.mxu0 0.0
    %2591 = vmatpush1.msra.mxu0 0.0
    %2592 = vmatprep.subr.mxu0 0.0
    %2593 = vmatpush1.msra.mxu0 0.0
    %2594 = vmatprep.mubr.f32.mxu0 0.0
    %2595 = vmatmul.mubr.f32.gmra.mrb[0].mxu0 %v2525
    %v2596 = vpop.f32.mrb[0].mxu0
    %v2597 = vadd.f32 %v2517, %v2596
    %v2598 = vpop.f32.mrb[0].mxu0
    %2599 = vmatprep.mubr.f32.mxu0 0.0
    %2600 = vmatmul.mubr.f32.gmra.mrb[0].mxu0 %v2528
    %v2601 = vpop.f32.mrb[0].mxu0
    %v2602 = vadd.f32 %v2522, %v2601
    %v2603 = vpop.f32.mrb[0].mxu0
    %2604 = vdwg.mxu0
    %v2605 = vmax.f32 %v2597, 0.0
    %v2606 = vmax.f32 %v2602, 0.0
    %v2607 = vld [vmem:[#allocation55] sm:$0xff]
    %v2608 = vld [vmem:[#allocation55 + $0x8] sm:$0xff]
    %v2609 = vld [vmem:[#allocation57] sm:$0xff]
    %v2610 = vld [vmem:[#allocation57 + $0x8] sm:$0xff]
    %v2611 = vld [vmem:[#allocation58] sm:$0xff]
    %v2612 = vld [vmem:[#allocation58 + $0x8] sm:$0xff]
    %2614 = vset.pattern.permute.xlu0 1
    %2615 = vperm.xlu0 %2614, %v2607
    %v2616 = vpop.permute.xlu0 %2615
    %2619 = vset.pattern.permute.xlu0 1
    %2620 = vperm.xlu0 %2619, %v2608
    %v2621 = vpop.permute.xlu0 %2620
    %v2623 = vmul.f32 %v2616, %v2605
    %v2624 = vmul.f32 %v2621, %v2606
    %2627 = vrot.lane.b32.xlu0 %v2605, 97
    %v2628 = vpop.permute.xlu0 %2627
    %2629 = vrot.lane.b32.xlu0 %v2606, 97
    %v2630 = vpop.permute.xlu0 %2629
    %2633 = vrot.lane.b32.xlu0 %v2605, 1
    %v2634 = vpop.permute.xlu0 %2633
    %2635 = vrot.lane.b32.xlu0 %v2606, 1
    %v2636 = vpop.permute.xlu0 %2635
    %v2639 = vsel %vm903, %v2628, %v2634
    %v2640 = vsel %vm903, %v2630, %v2636
    %v2641 = vmul.f32 %v2639, %v909
    %v2642 = vmul.f32 %v2640, %v909
    %2643 = vset.pattern.permute.xlu0 0
    %2644 = vperm.xlu0 %2643, %v2607
    %v2645 = vpop.permute.xlu0 %2644
    %2647 = vset.pattern.permute.xlu0 0
    %2648 = vperm.xlu0 %2647, %v2608
    %v2649 = vpop.permute.xlu0 %2648
    %v2651 = vmul.f32 %v2645, %v2641
    %v2652 = vmul.f32 %v2649, %v2642
    %v2653 = vadd.f32 %v2623, %v2651
    %v2654 = vadd.f32 %v2624, %v2652
    %2655 = vrot.lane.b32.xlu0 %v2605, 127
    %v2656 = vpop.permute.xlu0 %2655
    %2657 = vrot.lane.b32.xlu0 %v2606, 127
    %v2658 = vpop.permute.xlu0 %2657
    %2661 = vrot.lane.b32.xlu0 %v2605, 31
    %v2662 = vpop.permute.xlu0 %2661
    %2663 = vrot.lane.b32.xlu0 %v2606, 31
    %v2664 = vpop.permute.xlu0 %2663
    %v2667 = vsel %vm924, %v2656, %v2662
    %v2668 = vsel %vm924, %v2658, %v2664
    %v2669 = vmul.f32 %v2667, %v930
    %v2670 = vmul.f32 %v2668, %v930
    %2671 = vset.pattern.permute.xlu0 2
    %2672 = vperm.xlu0 %2671, %v2607
    %v2673 = vpop.permute.xlu0 %2672
    %2675 = vset.pattern.permute.xlu0 2
    %2676 = vperm.xlu0 %2675, %v2608
    %v2677 = vpop.permute.xlu0 %2676
    %v2679 = vmul.f32 %v2673, %v2669
    %v2680 = vmul.f32 %v2677, %v2670
    %v2681 = vadd.f32 %v2653, %v2679
    %v2682 = vadd.f32 %v2654, %v2680
    %2684 = vset.pattern.permute.xlu0 0
    %2685 = vperm.xlu0 %2684, %v2611
    %v2686 = vpop.permute.xlu0 %2685
    %2689 = vset.pattern.permute.xlu0 0
    %2690 = vperm.xlu0 %2689, %v2612
    %v2691 = vpop.permute.xlu0 %2690
    %v2694 = vsel %vm1051, %v2609, 0
    %v2697 = vsel %vm1051, %v2610, 0
    %2699 = vmatprep.subr.mxu0 0.0
    %2700 = vmatpush1.msra.mxu0 %v2681
    %2701 = vmatprep.subr.mxu0 0.0
    %2702 = vmatpush1.msra.mxu0 %v2682
    %2703 = vmatprep.subr.mxu0 0.0
    %2704 = vmatpush1.msra.mxu0 0.0
    %2705 = vmatprep.subr.mxu0 0.0
    %2706 = vmatpush1.msra.mxu0 0.0
    %2707 = vmatprep.subr.mxu0 0.0
    %2708 = vmatpush1.msra.mxu0 0.0
    %2709 = vmatprep.subr.mxu0 0.0
    %2710 = vmatpush1.msra.mxu0 0.0
    %2711 = vmatprep.subr.mxu0 0.0
    %2712 = vmatpush1.msra.mxu0 0.0
    %2713 = vmatprep.subr.mxu0 0.0
    %2714 = vmatpush1.msra.mxu0 0.0
    %2715 = vmatprep.subr.mxu0 0.0
    %2716 = vmatpush1.msra.mxu0 0.0
    %2717 = vmatprep.subr.mxu0 0.0
    %2718 = vmatpush1.msra.mxu0 0.0
    %2719 = vmatprep.subr.mxu0 0.0
    %2720 = vmatpush1.msra.mxu0 0.0
    %2721 = vmatprep.subr.mxu0 0.0
    %2722 = vmatpush1.msra.mxu0 0.0
    %2723 = vmatprep.subr.mxu0 0.0
    %2724 = vmatpush1.msra.mxu0 0.0
    %2725 = vmatprep.subr.mxu0 0.0
    %2726 = vmatpush1.msra.mxu0 0.0
    %2727 = vmatprep.subr.mxu0 0.0
    %2728 = vmatpush1.msra.mxu0 0.0
    %2729 = vmatprep.subr.mxu0 0.0
    %2730 = vmatpush1.msra.mxu0 0.0
    %2731 = vmatprep.subr.mxu0 0.0
    %2732 = vmatpush1.msra.mxu0 0.0
    %2733 = vmatprep.subr.mxu0 0.0
    %2734 = vmatpush1.msra.mxu0 0.0
    %2735 = vmatprep.subr.mxu0 0.0
    %2736 = vmatpush1.msra.mxu0 0.0
    %2737 = vmatprep.subr.mxu0 0.0
    %2738 = vmatpush1.msra.mxu0 0.0
    %2739 = vmatprep.subr.mxu0 0.0
    %2740 = vmatpush1.msra.mxu0 0.0
    %2741 = vmatprep.subr.mxu0 0.0
    %2742 = vmatpush1.msra.mxu0 0.0
    %2743 = vmatprep.subr.mxu0 0.0
    %2744 = vmatpush1.msra.mxu0 0.0
    %2745 = vmatprep.subr.mxu0 0.0
    %2746 = vmatpush1.msra.mxu0 0.0
    %2747 = vmatprep.subr.mxu0 0.0
    %2748 = vmatpush1.msra.mxu0 0.0
    %2749 = vmatprep.subr.mxu0 0.0
    %2750 = vmatpush1.msra.mxu0 0.0
    %2751 = vmatprep.subr.mxu0 0.0
    %2752 = vmatpush1.msra.mxu0 0.0
    %2753 = vmatprep.subr.mxu0 0.0
    %2754 = vmatpush1.msra.mxu0 0.0
    %2755 = vmatprep.subr.mxu0 0.0
    %2756 = vmatpush1.msra.mxu0 0.0
    %2757 = vmatprep.subr.mxu0 0.0
    %2758 = vmatpush1.msra.mxu0 0.0
    %2759 = vmatprep.subr.mxu0 0.0
    %2760 = vmatpush1.msra.mxu0 0.0
    %2761 = vmatprep.subr.mxu0 0.0
    %2762 = vmatpush1.msra.mxu0 0.0
    %2763 = vmatprep.mubr.f32.mxu0 0.0
    %2764 = vmatmul.mubr.f32.gmra.mrb[0].mxu0 %v2694
    %v2765 = vpop.f32.mrb[0].mxu0
    %v2766 = vadd.f32 %v2686, %v2765
    %v2767 = vpop.f32.mrb[0].mxu0
    %2768 = vmatprep.mubr.f32.mxu0 0.0
    %2769 = vmatmul.mubr.f32.gmra.mrb[0].mxu0 %v2697
    %v2770 = vpop.f32.mrb[0].mxu0
    %v2771 = vadd.f32 %v2691, %v2770
    %v2772 = vpop.f32.mrb[0].mxu0
    %2773 = vdwg.mxu0
    %v2774 = vadd.f32 %v2766, %v2430
    %v2775 = vadd.f32 %v2771, %v2435
    %v2776 = vmax.f32 %v2774, 0.0
    %v2777 = vmax.f32 %v2775, 0.0
    %v2778 = vld [vmem:[#allocation60] sm:$0xff]
    %v2779 = vld [vmem:[#allocation60 + $0x8] sm:$0xff]
    %v2780 = vld [vmem:[#allocation61] sm:$0xff]
    %v2781 = vld [vmem:[#allocation61 + $0x8] sm:$0xff]
    %2783 = vset.pattern.permute.xlu0 0
    %2784 = vperm.xlu0 %2783, %v2780
    %v2785 = vpop.permute.xlu0 %2784
    %2788 = vset.pattern.permute.xlu0 0
    %2789 = vperm.xlu0 %2788, %v2781
    %v2790 = vpop.permute.xlu0 %2789
    %v2793 = vsel %vm1051, %v2778, 0
    %v2796 = vsel %vm1051, %v2779, 0
    %2798 = vmatprep.subr.mxu0 0.0
    %2799 = vmatpush1.msra.mxu0 %v2776
    %2800 = vmatprep.subr.mxu0 0.0
    %2801 = vmatpush1.msra.mxu0 %v2777
    %2802 = vmatprep.subr.mxu0 0.0
    %2803 = vmatpush1.msra.mxu0 0.0
    %2804 = vmatprep.subr.mxu0 0.0
    %2805 = vmatpush1.msra.mxu0 0.0
    %2806 = vmatprep.subr.mxu0 0.0
    %2807 = vmatpush1.msra.mxu0 0.0
    %2808 = vmatprep.subr.mxu0 0.0
    %2809 = vmatpush1.msra.mxu0 0.0
    %2810 = vmatprep.subr.mxu0 0.0
    %2811 = vmatpush1.msra.mxu0 0.0
    %2812 = vmatprep.subr.mxu0 0.0
    %2813 = vmatpush1.msra.mxu0 0.0
    %2814 = vmatprep.subr.mxu0 0.0
    %2815 = vmatpush1.msra.mxu0 0.0
    %2816 = vmatprep.subr.mxu0 0.0
    %2817 = vmatpush1.msra.mxu0 0.0
    %2818 = vmatprep.subr.mxu0 0.0
    %2819 = vmatpush1.msra.mxu0 0.0
    %2820 = vmatprep.subr.mxu0 0.0
    %2821 = vmatpush1.msra.mxu0 0.0
    %2822 = vmatprep.subr.mxu0 0.0
    %2823 = vmatpush1.msra.mxu0 0.0
    %2824 = vmatprep.subr.mxu0 0.0
    %2825 = vmatpush1.msra.mxu0 0.0
    %2826 = vmatprep.subr.mxu0 0.0
    %2827 = vmatpush1.msra.mxu0 0.0
    %2828 = vmatprep.subr.mxu0 0.0
    %2829 = vmatpush1.msra.mxu0 0.0
    %2830 = vmatprep.subr.mxu0 0.0
    %2831 = vmatpush1.msra.mxu0 0.0
    %2832 = vmatprep.subr.mxu0 0.0
    %2833 = vmatpush1.msra.mxu0 0.0
    %2834 = vmatprep.subr.mxu0 0.0
    %2835 = vmatpush1.msra.mxu0 0.0
    %2836 = vmatprep.subr.mxu0 0.0
    %2837 = vmatpush1.msra.mxu0 0.0
    %2838 = vmatprep.subr.mxu0 0.0
    %2839 = vmatpush1.msra.mxu0 0.0
    %2840 = vmatprep.subr.mxu0 0.0
    %2841 = vmatpush1.msra.mxu0 0.0
    %2842 = vmatprep.subr.mxu0 0.0
    %2843 = vmatpush1.msra.mxu0 0.0
    %2844 = vmatprep.subr.mxu0 0.0
    %2845 = vmatpush1.msra.mxu0 0.0
    %2846 = vmatprep.subr.mxu0 0.0
    %2847 = vmatpush1.msra.mxu0 0.0
    %2848 = vmatprep.subr.mxu0 0.0
    %2849 = vmatpush1.msra.mxu0 0.0
    %2850 = vmatprep.subr.mxu0 0.0
    %2851 = vmatpush1.msra.mxu0 0.0
    %2852 = vmatprep.subr.mxu0 0.0
    %2853 = vmatpush1.msra.mxu0 0.0
    %2854 = vmatprep.subr.mxu0 0.0
    %2855 = vmatpush1.msra.mxu0 0.0
    %2856 = vmatprep.subr.mxu0 0.0
    %2857 = vmatpush1.msra.mxu0 0.0
    %2858 = vmatprep.subr.mxu0 0.0
    %2859 = vmatpush1.msra.mxu0 0.0
    %2860 = vmatprep.subr.mxu0 0.0
    %2861 = vmatpush1.msra.mxu0 0.0
    %2862 = vmatprep.mubr.f32.mxu0 0.0
    %2863 = vmatmul.mubr.f32.gmra.mrb[0].mxu0 %v2793
    %v2864 = vpop.f32.mrb[0].mxu0
    %v2865 = vadd.f32 %v2785, %v2864
    %v2866 = vpop.f32.mrb[0].mxu0
    %2867 = vmatprep.mubr.f32.mxu0 0.0
    %2868 = vmatmul.mubr.f32.gmra.mrb[0].mxu0 %v2796
    %v2869 = vpop.f32.mrb[0].mxu0
    %v2870 = vadd.f32 %v2790, %v2869
    %v2871 = vpop.f32.mrb[0].mxu0
    %2872 = vdwg.mxu0
    %v2873 = vld [vmem:[#allocation63] sm:$0xff]
    %v2874 = vld [vmem:[#allocation63 + $0x8] sm:$0xff]
    %v2875 = vld [vmem:[%s87] sm:$0xff]
    %v2876 = vld [vmem:[%s87 + $0x8] sm:$0xff]
    %v2877 = vld [vmem:[%s89] sm:$0xff]
    %v2878 = vld [vmem:[%s89 + $0x8] sm:$0xff]
    %2880 = vset.pattern.permute.xlu0 1
    %2881 = vperm.xlu0 %2880, %v2873
    %v2882 = vpop.permute.xlu0 %2881
    %2885 = vset.pattern.permute.xlu0 1
    %2886 = vperm.xlu0 %2885, %v2874
    %v2887 = vpop.permute.xlu0 %2886
    %v2889 = vmul.f32 %v2882, %v2776
    %v2890 = vmul.f32 %v2887, %v2777
    %2893 = vrot.lane.b32.xlu0 %v2776, 97
    %v2894 = vpop.permute.xlu0 %2893
    %2895 = vrot.lane.b32.xlu0 %v2777, 97
    %v2896 = vpop.permute.xlu0 %2895
    %2899 = vrot.lane.b32.xlu0 %v2776, 1
    %v2900 = vpop.permute.xlu0 %2899
    %2901 = vrot.lane.b32.xlu0 %v2777, 1
    %v2902 = vpop.permute.xlu0 %2901
    %v2905 = vsel %vm903, %v2894, %v2900
    %v2906 = vsel %vm903, %v2896, %v2902
    %v2907 = vmul.f32 %v2905, %v909
    %v2908 = vmul.f32 %v2906, %v909
    %2909 = vset.pattern.permute.xlu0 0
    %2910 = vperm.xlu0 %2909, %v2873
    %v2911 = vpop.permute.xlu0 %2910
    %2913 = vset.pattern.permute.xlu0 0
    %2914 = vperm.xlu0 %2913, %v2874
    %v2915 = vpop.permute.xlu0 %2914
    %v2917 = vmul.f32 %v2911, %v2907
    %v2918 = vmul.f32 %v2915, %v2908
    %v2919 = vadd.f32 %v2889, %v2917
    %v2920 = vadd.f32 %v2890, %v2918
    %2921 = vrot.lane.b32.xlu0 %v2776, 127
    %v2922 = vpop.permute.xlu0 %2921
    %2923 = vrot.lane.b32.xlu0 %v2777, 127
    %v2924 = vpop.permute.xlu0 %2923
    %2927 = vrot.lane.b32.xlu0 %v2776, 31
    %v2928 = vpop.permute.xlu0 %2927
    %2929 = vrot.lane.b32.xlu0 %v2777, 31
    %v2930 = vpop.permute.xlu0 %2929
    %v2933 = vsel %vm924, %v2922, %v2928
    %v2934 = vsel %vm924, %v2924, %v2930
    %v2935 = vmul.f32 %v2933, %v930
    %v2936 = vmul.f32 %v2934, %v930
    %2937 = vset.pattern.permute.xlu0 2
    %2938 = vperm.xlu0 %2937, %v2873
    %v2939 = vpop.permute.xlu0 %2938
    %2941 = vset.pattern.permute.xlu0 2
    %2942 = vperm.xlu0 %2941, %v2874
    %v2943 = vpop.permute.xlu0 %2942
    %v2945 = vmul.f32 %v2939, %v2935
    %v2946 = vmul.f32 %v2943, %v2936
    %v2947 = vadd.f32 %v2919, %v2945
    %v2948 = vadd.f32 %v2920, %v2946
    %2950 = vset.pattern.permute.xlu0 0
    %2951 = vperm.xlu0 %2950, %v2877
    %v2952 = vpop.permute.xlu0 %2951
    %2955 = vset.pattern.permute.xlu0 0
    %2956 = vperm.xlu0 %2955, %v2878
    %v2957 = vpop.permute.xlu0 %2956
    %v2960 = vsel %vm1051, %v2875, 0
    %v2963 = vsel %vm1051, %v2876, 0
    %2965 = vmatprep.subr.mxu0 0.0
    %2966 = vmatpush1.msra.mxu0 %v2947
    %2967 = vmatprep.subr.mxu0 0.0
    %2968 = vmatpush1.msra.mxu0 %v2948
    %2969 = vmatprep.subr.mxu0 0.0
    %2970 = vmatpush1.msra.mxu0 0.0
    %2971 = vmatprep.subr.mxu0 0.0
    %2972 = vmatpush1.msra.mxu0 0.0
    %2973 = vmatprep.subr.mxu0 0.0
    %2974 = vmatpush1.msra.mxu0 0.0
    %2975 = vmatprep.subr.mxu0 0.0
    %2976 = vmatpush1.msra.mxu0 0.0
    %2977 = vmatprep.subr.mxu0 0.0
    %2978 = vmatpush1.msra.mxu0 0.0
    %2979 = vmatprep.subr.mxu0 0.0
    %2980 = vmatpush1.msra.mxu0 0.0
    %2981 = vmatprep.subr.mxu0 0.0
    %2982 = vmatpush1.msra.mxu0 0.0
    %2983 = vmatprep.subr.mxu0 0.0
    %2984 = vmatpush1.msra.mxu0 0.0
    %2985 = vmatprep.subr.mxu0 0.0
    %2986 = vmatpush1.msra.mxu0 0.0
    %2987 = vmatprep.subr.mxu0 0.0
    %2988 = vmatpush1.msra.mxu0 0.0
    %2989 = vmatprep.subr.mxu0 0.0
    %2990 = vmatpush1.msra.mxu0 0.0
    %2991 = vmatprep.subr.mxu0 0.0
    %2992 = vmatpush1.msra.mxu0 0.0
    %2993 = vmatprep.subr.mxu0 0.0
    %2994 = vmatpush1.msra.mxu0 0.0
    %2995 = vmatprep.subr.mxu0 0.0
    %2996 = vmatpush1.msra.mxu0 0.0
    %2997 = vmatprep.subr.mxu0 0.0
    %2998 = vmatpush1.msra.mxu0 0.0
    %2999 = vmatprep.subr.mxu0 0.0
    %3000 = vmatpush1.msra.mxu0 0.0
    %3001 = vmatprep.subr.mxu0 0.0
    %3002 = vmatpush1.msra.mxu0 0.0
    %3003 = vmatprep.subr.mxu0 0.0
    %3004 = vmatpush1.msra.mxu0 0.0
    %3005 = vmatprep.subr.mxu0 0.0
    %3006 = vmatpush1.msra.mxu0 0.0
    %3007 = vmatprep.subr.mxu0 0.0
    %3008 = vmatpush1.msra.mxu0 0.0
    %3009 = vmatprep.subr.mxu0 0.0
    %3010 = vmatpush1.msra.mxu0 0.0
    %3011 = vmatprep.subr.mxu0 0.0
    %3012 = vmatpush1.msra.mxu0 0.0
    %3013 = vmatprep.subr.mxu0 0.0
    %3014 = vmatpush1.msra.mxu0 0.0
    %3015 = vmatprep.subr.mxu0 0.0
    %3016 = vmatpush1.msra.mxu0 0.0
    %3017 = vmatprep.subr.mxu0 0.0
    %3018 = vmatpush1.msra.mxu0 0.0
    %3019 = vmatprep.subr.mxu0 0.0
    %3020 = vmatpush1.msra.mxu0 0.0
    %3021 = vmatprep.subr.mxu0 0.0
    %3022 = vmatpush1.msra.mxu0 0.0
    %3023 = vmatprep.subr.mxu0 0.0
    %3024 = vmatpush1.msra.mxu0 0.0
    %3025 = vmatprep.subr.mxu0 0.0
    %3026 = vmatpush1.msra.mxu0 0.0
    %3027 = vmatprep.subr.mxu0 0.0
    %3028 = vmatpush1.msra.mxu0 0.0
    %3029 = vmatprep.mubr.f32.mxu0 0.0
    %3030 = vmatmul.mubr.f32.gmra.mrb[0].mxu0 %v2960
    %v3031 = vpop.f32.mrb[0].mxu0
    %v3032 = vadd.f32 %v2952, %v3031
    %v3033 = vpop.f32.mrb[0].mxu0
    %3034 = vmatprep.mubr.f32.mxu0 0.0
    %3035 = vmatmul.mubr.f32.gmra.mrb[0].mxu0 %v2963
    %v3036 = vpop.f32.mrb[0].mxu0
    %v3037 = vadd.f32 %v2957, %v3036
    %v3038 = vpop.f32.mrb[0].mxu0
    %3039 = vdwg.mxu0
    %v3040 = vmax.f32 %v3032, 0.0
    %v3041 = vmax.f32 %v3037, 0.0
    %v3042 = vld [vmem:[%s91] sm:$0xff]
    %v3043 = vld [vmem:[%s91 + $0x8] sm:$0xff]
    %v3044 = vld [vmem:[%s93] sm:$0xff]
    %v3045 = vld [vmem:[%s93 + $0x8] sm:$0xff]
    %v3046 = vld [vmem:[#allocation64] sm:$0xff]
    %v3047 = vld [vmem:[#allocation64 + $0x8] sm:$0xff]
    %3049 = vset.pattern.permute.xlu0 1
    %3050 = vperm.xlu0 %3049, %v3042
    %v3051 = vpop.permute.xlu0 %3050
    %3054 = vset.pattern.permute.xlu0 1
    %3055 = vperm.xlu0 %3054, %v3043
    %v3056 = vpop.permute.xlu0 %3055
    %v3058 = vmul.f32 %v3051, %v3040
    %v3059 = vmul.f32 %v3056, %v3041
    %3062 = vrot.lane.b32.xlu0 %v3040, 97
    %v3063 = vpop.permute.xlu0 %3062
    %3064 = vrot.lane.b32.xlu0 %v3041, 97
    %v3065 = vpop.permute.xlu0 %3064
    %3068 = vrot.lane.b32.xlu0 %v3040, 1
    %v3069 = vpop.permute.xlu0 %3068
    %3070 = vrot.lane.b32.xlu0 %v3041, 1
    %v3071 = vpop.permute.xlu0 %3070
    %v3074 = vsel %vm903, %v3063, %v3069
    %v3075 = vsel %vm903, %v3065, %v3071
    %v3076 = vmul.f32 %v3074, %v909
    %v3077 = vmul.f32 %v3075, %v909
    %3078 = vset.pattern.permute.xlu0 0
    %3079 = vperm.xlu0 %3078, %v3042
    %v3080 = vpop.permute.xlu0 %3079
    %3082 = vset.pattern.permute.xlu0 0
    %3083 = vperm.xlu0 %3082, %v3043
    %v3084 = vpop.permute.xlu0 %3083
    %v3086 = vmul.f32 %v3080, %v3076
    %v3087 = vmul.f32 %v3084, %v3077
    %v3088 = vadd.f32 %v3058, %v3086
    %v3089 = vadd.f32 %v3059, %v3087
    %3090 = vrot.lane.b32.xlu0 %v3040, 127
    %v3091 = vpop.permute.xlu0 %3090
    %3092 = vrot.lane.b32.xlu0 %v3041, 127
    %v3093 = vpop.permute.xlu0 %3092
    %3096 = vrot.lane.b32.xlu0 %v3040, 31
    %v3097 = vpop.permute.xlu0 %3096
    %3098 = vrot.lane.b32.xlu0 %v3041, 31
    %v3099 = vpop.permute.xlu0 %3098
    %v3102 = vsel %vm924, %v3091, %v3097
    %v3103 = vsel %vm924, %v3093, %v3099
    %v3104 = vmul.f32 %v3102, %v930
    %v3105 = vmul.f32 %v3103, %v930
    %3106 = vset.pattern.permute.xlu0 2
    %3107 = vperm.xlu0 %3106, %v3042
    %v3108 = vpop.permute.xlu0 %3107
    %3110 = vset.pattern.permute.xlu0 2
    %3111 = vperm.xlu0 %3110, %v3043
    %v3112 = vpop.permute.xlu0 %3111
    %v3114 = vmul.f32 %v3108, %v3104
    %v3115 = vmul.f32 %v3112, %v3105
    %v3116 = vadd.f32 %v3088, %v3114
    %v3117 = vadd.f32 %v3089, %v3115
    %3119 = vset.pattern.permute.xlu0 0
    %3120 = vperm.xlu0 %3119, %v3046
    %v3121 = vpop.permute.xlu0 %3120
    %3124 = vset.pattern.permute.xlu0 0
    %3125 = vperm.xlu0 %3124, %v3047
    %v3126 = vpop.permute.xlu0 %3125
    %v3129 = vsel %vm1051, %v3044, 0
    %v3132 = vsel %vm1051, %v3045, 0
    %3134 = vmatprep.subr.mxu0 0.0
    %3135 = vmatpush1.msra.mxu0 %v3116
    %3136 = vmatprep.subr.mxu0 0.0
    %3137 = vmatpush1.msra.mxu0 %v3117
    %3138 = vmatprep.subr.mxu0 0.0
    %3139 = vmatpush1.msra.mxu0 0.0
    %3140 = vmatprep.subr.mxu0 0.0
    %3141 = vmatpush1.msra.mxu0 0.0
    %3142 = vmatprep.subr.mxu0 0.0
    %3143 = vmatpush1.msra.mxu0 0.0
    %3144 = vmatprep.subr.mxu0 0.0
    %3145 = vmatpush1.msra.mxu0 0.0
    %3146 = vmatprep.subr.mxu0 0.0
    %3147 = vmatpush1.msra.mxu0 0.0
    %3148 = vmatprep.subr.mxu0 0.0
    %3149 = vmatpush1.msra.mxu0 0.0
    %3150 = vmatprep.subr.mxu0 0.0
    %3151 = vmatpush1.msra.mxu0 0.0
    %3152 = vmatprep.subr.mxu0 0.0
    %3153 = vmatpush1.msra.mxu0 0.0
    %3154 = vmatprep.subr.mxu0 0.0
    %3155 = vmatpush1.msra.mxu0 0.0
    %3156 = vmatprep.subr.mxu0 0.0
    %3157 = vmatpush1.msra.mxu0 0.0
    %3158 = vmatprep.subr.mxu0 0.0
    %3159 = vmatpush1.msra.mxu0 0.0
    %3160 = vmatprep.subr.mxu0 0.0
    %3161 = vmatpush1.msra.mxu0 0.0
    %3162 = vmatprep.subr.mxu0 0.0
    %3163 = vmatpush1.msra.mxu0 0.0
    %3164 = vmatprep.subr.mxu0 0.0
    %3165 = vmatpush1.msra.mxu0 0.0
    %3166 = vmatprep.subr.mxu0 0.0
    %3167 = vmatpush1.msra.mxu0 0.0
    %3168 = vmatprep.subr.mxu0 0.0
    %3169 = vmatpush1.msra.mxu0 0.0
    %3170 = vmatprep.subr.mxu0 0.0
    %3171 = vmatpush1.msra.mxu0 0.0
    %3172 = vmatprep.subr.mxu0 0.0
    %3173 = vmatpush1.msra.mxu0 0.0
    %3174 = vmatprep.subr.mxu0 0.0
    %3175 = vmatpush1.msra.mxu0 0.0
    %3176 = vmatprep.subr.mxu0 0.0
    %3177 = vmatpush1.msra.mxu0 0.0
    %3178 = vmatprep.subr.mxu0 0.0
    %3179 = vmatpush1.msra.mxu0 0.0
    %3180 = vmatprep.subr.mxu0 0.0
    %3181 = vmatpush1.msra.mxu0 0.0
    %3182 = vmatprep.subr.mxu0 0.0
    %3183 = vmatpush1.msra.mxu0 0.0
    %3184 = vmatprep.subr.mxu0 0.0
    %3185 = vmatpush1.msra.mxu0 0.0
    %3186 = vmatprep.subr.mxu0 0.0
    %3187 = vmatpush1.msra.mxu0 0.0
    %3188 = vmatprep.subr.mxu0 0.0
    %3189 = vmatpush1.msra.mxu0 0.0
    %3190 = vmatprep.subr.mxu0 0.0
    %3191 = vmatpush1.msra.mxu0 0.0
    %3192 = vmatprep.subr.mxu0 0.0
    %3193 = vmatpush1.msra.mxu0 0.0
    %3194 = vmatprep.subr.mxu0 0.0
    %3195 = vmatpush1.msra.mxu0 0.0
    %3196 = vmatprep.subr.mxu0 0.0
    %3197 = vmatpush1.msra.mxu0 0.0
    %3198 = vmatprep.mubr.f32.mxu0 0.0
    %3199 = vmatmul.mubr.f32.gmra.mrb[0].mxu0 %v3129
    %v3200 = vpop.f32.mrb[0].mxu0
    %v3201 = vadd.f32 %v3121, %v3200
    %v3202 = vpop.f32.mrb[0].mxu0
    %3203 = vmatprep.mubr.f32.mxu0 0.0
    %3204 = vmatmul.mubr.f32.gmra.mrb[0].mxu0 %v3132
    %v3205 = vpop.f32.mrb[0].mxu0
    %v3206 = vadd.f32 %v3126, %v3205
    %v3207 = vpop.f32.mrb[0].mxu0
    %3208 = vdwg.mxu0
    %v3209 = vadd.f32 %v3201, %v2865
    %v3210 = vadd.f32 %v3206, %v2870
    %v3211 = vmax.f32 %v3209, 0.0
    %v3212 = vmax.f32 %v3210, 0.0
    %v3213 = vld [vmem:[#allocation66] sm:$0xff]
    %v3214 = vld [vmem:[#allocation66 + $0x8] sm:$0xff]
    %v3215 = vld [vmem:[%s99] sm:$0xff]
    %v3216 = vld [vmem:[%s99 + $0x8] sm:$0xff]
    %v3217 = vld [vmem:[%s99 + $0x10] sm:$0xff]
    %v3218 = vld [vmem:[%s101] sm:$0xff]
    %v3219 = vld [vmem:[%s101 + $0x8] sm:$0xff]
    %v3220 = vld [vmem:[%s101 + $0x10] sm:$0xff]
    %3222 = vset.pattern.permute.xlu0 1
    %3223 = vperm.xlu0 %3222, %v3213
    %v3224 = vpop.permute.xlu0 %3223
    %3227 = vset.pattern.permute.xlu0 1
    %3228 = vperm.xlu0 %3227, %v3214
    %v3229 = vpop.permute.xlu0 %3228
    %v3231 = vmul.f32 %v3224, %v3211
    %v3232 = vmul.f32 %v3229, %v3212
    %3235 = vrot.lane.b32.xlu0 %v3211, 97
    %v3236 = vpop.permute.xlu0 %3235
    %3237 = vrot.lane.b32.xlu0 %v3212, 97
    %v3238 = vpop.permute.xlu0 %3237
    %3241 = vrot.lane.b32.xlu0 %v3211, 1
    %v3242 = vpop.permute.xlu0 %3241
    %3243 = vrot.lane.b32.xlu0 %v3212, 1
    %v3244 = vpop.permute.xlu0 %3243
    %v3247 = vsel %vm903, %v3236, %v3242
    %v3248 = vsel %vm903, %v3238, %v3244
    %v3249 = vmul.f32 %v3247, %v909
    %v3250 = vmul.f32 %v3248, %v909
    %3251 = vset.pattern.permute.xlu0 0
    %3252 = vperm.xlu0 %3251, %v3213
    %v3253 = vpop.permute.xlu0 %3252
    %3255 = vset.pattern.permute.xlu0 0
    %3256 = vperm.xlu0 %3255, %v3214
    %v3257 = vpop.permute.xlu0 %3256
    %v3259 = vmul.f32 %v3253, %v3249
    %v3260 = vmul.f32 %v3257, %v3250
    %v3261 = vadd.f32 %v3231, %v3259
    %v3262 = vadd.f32 %v3232, %v3260
    %3263 = vrot.lane.b32.xlu0 %v3211, 127
    %v3264 = vpop.permute.xlu0 %3263
    %3265 = vrot.lane.b32.xlu0 %v3212, 127
    %v3266 = vpop.permute.xlu0 %3265
    %3269 = vrot.lane.b32.xlu0 %v3211, 31
    %v3270 = vpop.permute.xlu0 %3269
    %3271 = vrot.lane.b32.xlu0 %v3212, 31
    %v3272 = vpop.permute.xlu0 %3271
    %v3275 = vsel %vm924, %v3264, %v3270
    %v3276 = vsel %vm924, %v3266, %v3272
    %v3277 = vmul.f32 %v3275, %v930
    %v3278 = vmul.f32 %v3276, %v930
    %3279 = vset.pattern.permute.xlu0 2
    %3280 = vperm.xlu0 %3279, %v3213
    %v3281 = vpop.permute.xlu0 %3280
    %3283 = vset.pattern.permute.xlu0 2
    %3284 = vperm.xlu0 %3283, %v3214
    %v3285 = vpop.permute.xlu0 %3284
    %v3287 = vmul.f32 %v3281, %v3277
    %v3288 = vmul.f32 %v3285, %v3278
    %v3289 = vadd.f32 %v3261, %v3287
    %v3290 = vadd.f32 %v3262, %v3288
    %3292 = vset.pattern.permute.xlu0 0
    %3293 = vperm.xlu0 %3292, %v3218
    %v3294 = vpop.permute.xlu0 %3293
    %3297 = vset.pattern.permute.xlu0 0
    %3298 = vperm.xlu0 %3297, %v3219
    %v3299 = vpop.permute.xlu0 %3298
    %3302 = vset.pattern.permute.xlu0 0
    %3303 = vperm.xlu0 %3302, %v3220
    %v3304 = vpop.permute.xlu0 %3303
    %v3307 = vsel %vm1051, %v3215, 0
    %v3310 = vsel %vm1051, %v3216, 0
    %v3313 = vsel %vm1051, %v3217, 0
    %3315 = vmatprep.subr.mxu0 0.0
    %3316 = vmatpush1.msra.mxu0 %v3289
    %3317 = vmatprep.subr.mxu0 0.0
    %3318 = vmatpush1.msra.mxu0 %v3290
    %3319 = vmatprep.subr.mxu0 0.0
    %3320 = vmatpush1.msra.mxu0 0.0
    %3321 = vmatprep.subr.mxu0 0.0
    %3322 = vmatpush1.msra.mxu0 0.0
    %3323 = vmatprep.subr.mxu0 0.0
    %3324 = vmatpush1.msra.mxu0 0.0
    %3325 = vmatprep.subr.mxu0 0.0
    %3326 = vmatpush1.msra.mxu0 0.0
    %3327 = vmatprep.subr.mxu0 0.0
    %3328 = vmatpush1.msra.mxu0 0.0
    %3329 = vmatprep.subr.mxu0 0.0
    %3330 = vmatpush1.msra.mxu0 0.0
    %3331 = vmatprep.subr.mxu0 0.0
    %3332 = vmatpush1.msra.mxu0 0.0
    %3333 = vmatprep.subr.mxu0 0.0
    %3334 = vmatpush1.msra.mxu0 0.0
    %3335 = vmatprep.subr.mxu0 0.0
    %3336 = vmatpush1.msra.mxu0 0.0
    %3337 = vmatprep.subr.mxu0 0.0
    %3338 = vmatpush1.msra.mxu0 0.0
    %3339 = vmatprep.subr.mxu0 0.0
    %3340 = vmatpush1.msra.mxu0 0.0
    %3341 = vmatprep.subr.mxu0 0.0
    %3342 = vmatpush1.msra.mxu0 0.0
    %3343 = vmatprep.subr.mxu0 0.0
    %3344 = vmatpush1.msra.mxu0 0.0
    %3345 = vmatprep.subr.mxu0 0.0
    %3346 = vmatpush1.msra.mxu0 0.0
    %3347 = vmatprep.subr.mxu0 0.0
    %3348 = vmatpush1.msra.mxu0 0.0
    %3349 = vmatprep.subr.mxu0 0.0
    %3350 = vmatpush1.msra.mxu0 0.0
    %3351 = vmatprep.subr.mxu0 0.0
    %3352 = vmatpush1.msra.mxu0 0.0
    %3353 = vmatprep.subr.mxu0 0.0
    %3354 = vmatpush1.msra.mxu0 0.0
    %3355 = vmatprep.subr.mxu0 0.0
    %3356 = vmatpush1.msra.mxu0 0.0
    %3357 = vmatprep.subr.mxu0 0.0
    %3358 = vmatpush1.msra.mxu0 0.0
    %3359 = vmatprep.subr.mxu0 0.0
    %3360 = vmatpush1.msra.mxu0 0.0
    %3361 = vmatprep.subr.mxu0 0.0
    %3362 = vmatpush1.msra.mxu0 0.0
    %3363 = vmatprep.subr.mxu0 0.0
    %3364 = vmatpush1.msra.mxu0 0.0
    %3365 = vmatprep.subr.mxu0 0.0
    %3366 = vmatpush1.msra.mxu0 0.0
    %3367 = vmatprep.subr.mxu0 0.0
    %3368 = vmatpush1.msra.mxu0 0.0
    %3369 = vmatprep.subr.mxu0 0.0
    %3370 = vmatpush1.msra.mxu0 0.0
    %3371 = vmatprep.subr.mxu0 0.0
    %3372 = vmatpush1.msra.mxu0 0.0
    %3373 = vmatprep.subr.mxu0 0.0
    %3374 = vmatpush1.msra.mxu0 0.0
    %3375 = vmatprep.subr.mxu0 0.0
    %3376 = vmatpush1.msra.mxu0 0.0
    %3377 = vmatprep.subr.mxu0 0.0
    %3378 = vmatpush1.msra.mxu0 0.0
    %3379 = vmatprep.mubr.f32.mxu0 0.0
    %3380 = vmatmul.mubr.f32.gmra.mrb[0].mxu0 %v3307
    %v3381 = vpop.f32.mrb[0].mxu0
    %v3382 = vadd.f32 %v3294, %v3381
    %v3383 = vpop.f32.mrb[0].mxu0
    %3384 = vmatprep.mubr.f32.mxu0 0.0
    %3385 = vmatmul.mubr.f32.gmra.mrb[0].mxu0 %v3310
    %v3386 = vpop.f32.mrb[0].mxu0
    %v3387 = vadd.f32 %v3299, %v3386
    %v3388 = vpop.f32.mrb[0].mxu0
    %3389 = vmatprep.mubr.f32.mxu0 0.0
    %3390 = vmatmul.mubr.f32.gmra.mrb[0].mxu0 %v3313
    %v3391 = vpop.f32.mrb[0].mxu0
    %v3392 = vadd.f32 %v3304, %v3391
    %v3393 = vpop.f32.mrb[0].mxu0
    %3394 = vdwg.mxu0
    %v3395 = vmax.f32 %v3382, 0.0
    %v3396 = vmax.f32 %v3387, 0.0
    %v3397 = vmax.f32 %v3392, 0.0
    %v3398 = vld [vmem:[%s103] sm:$0xff]
    %v3399 = vld [vmem:[%s103 + $0x8] sm:$0xff]
    %v3400 = vld [vmem:[%s103 + $0x10] sm:$0xff]
    %v3401 = vld [vmem:[%s105] sm:$0xff]
    %v3402 = vld [vmem:[%s105 + $0x8] sm:$0xff]
    %v3403 = vld [vmem:[%s105 + $0x10] sm:$0xff]
    %v3404 = vld [vmem:[%s105 + $0x18] sm:$0xff]
    %v3405 = vld [vmem:[%s107] sm:$0xff]
    %v3406 = vld [vmem:[%s107 + $0x8] sm:$0xff]
    %v3407 = vld [vmem:[%s107 + $0x10] sm:$0xff]
    %v3408 = vld [vmem:[%s107 + $0x18] sm:$0xff]
    %3410 = vset.pattern.permute.xlu0 0
    %3411 = vperm.xlu0 %3410, %v3398
    %v3412 = vpop.permute.xlu0 %3411
    %3415 = vset.pattern.permute.xlu0 0
    %3416 = vperm.xlu0 %3415, %v3399
    %v3417 = vpop.permute.xlu0 %3416
    %3420 = vset.pattern.permute.xlu0 0
    %3421 = vperm.xlu0 %3420, %v3400
    %v3422 = vpop.permute.xlu0 %3421
    %v3424 = vmul.f32 %v3412, %v3395
    %v3425 = vmul.f32 %v3417, %v3396
    %v3426 = vmul.f32 %v3422, %v3397
    %3428 = vset.pattern.permute.xlu0 0
    %3429 = vperm.xlu0 %3428, %v3405
    %v3430 = vpop.permute.xlu0 %3429
    %3433 = vset.pattern.permute.xlu0 0
    %3434 = vperm.xlu0 %3433, %v3406
    %v3435 = vpop.permute.xlu0 %3434
    %3438 = vset.pattern.permute.xlu0 0
    %3439 = vperm.xlu0 %3438, %v3407
    %v3440 = vpop.permute.xlu0 %3439
    %3443 = vset.pattern.permute.xlu0 0
    %3444 = vperm.xlu0 %3443, %v3408
    %v3445 = vpop.permute.xlu0 %3444
    %vm3447 = vcmask 195584
    %v3449 = vsel %vm3447, %v3401, 0
    %v3452 = vsel %vm3447, %v3402, 0
    %v3455 = vsel %vm3447, %v3403, 0
    %v3458 = vsel %vm3447, %v3404, 0
    %3460 = vmatprep.subr.mxu0 0.0
    %3461 = vmatpush1.msra.mxu0 %v3424
    %3462 = vmatprep.subr.mxu0 0.0
    %3463 = vmatpush1.msra.mxu0 %v3425
    %3464 = vmatprep.subr.mxu0 0.0
    %3465 = vmatpush1.msra.mxu0 %v3426
    %3466 = vmatprep.subr.mxu0 0.0
    %3467 = vmatpush1.msra.mxu0 0.0
    %3468 = vmatprep.subr.mxu0 0.0
    %3469 = vmatpush1.msra.mxu0 0.0
    %3470 = vmatprep.subr.mxu0 0.0
    %3471 = vmatpush1.msra.mxu0 0.0
    %3472 = vmatprep.subr.mxu0 0.0
    %3473 = vmatpush1.msra.mxu0 0.0
    %3474 = vmatprep.subr.mxu0 0.0
    %3475 = vmatpush1.msra.mxu0 0.0
    %3476 = vmatprep.subr.mxu0 0.0
    %3477 = vmatpush1.msra.mxu0 0.0
    %3478 = vmatprep.subr.mxu0 0.0
    %3479 = vmatpush1.msra.mxu0 0.0
    %3480 = vmatprep.subr.mxu0 0.0
    %3481 = vmatpush1.msra.mxu0 0.0
    %3482 = vmatprep.subr.mxu0 0.0
    %3483 = vmatpush1.msra.mxu0 0.0
    %3484 = vmatprep.subr.mxu0 0.0
    %3485 = vmatpush1.msra.mxu0 0.0
    %3486 = vmatprep.subr.mxu0 0.0
    %3487 = vmatpush1.msra.mxu0 0.0
    %3488 = vmatprep.subr.mxu0 0.0
    %3489 = vmatpush1.msra.mxu0 0.0
    %3490 = vmatprep.subr.mxu0 0.0
    %3491 = vmatpush1.msra.mxu0 0.0
    %3492 = vmatprep.subr.mxu0 0.0
    %3493 = vmatpush1.msra.mxu0 0.0
    %3494 = vmatprep.subr.mxu0 0.0
    %3495 = vmatpush1.msra.mxu0 0.0
    %3496 = vmatprep.subr.mxu0 0.0
    %3497 = vmatpush1.msra.mxu0 0.0
    %3498 = vmatprep.subr.mxu0 0.0
    %3499 = vmatpush1.msra.mxu0 0.0
    %3500 = vmatprep.subr.mxu0 0.0
    %3501 = vmatpush1.msra.mxu0 0.0
    %3502 = vmatprep.subr.mxu0 0.0
    %3503 = vmatpush1.msra.mxu0 0.0
    %3504 = vmatprep.subr.mxu0 0.0
    %3505 = vmatpush1.msra.mxu0 0.0
    %3506 = vmatprep.subr.mxu0 0.0
    %3507 = vmatpush1.msra.mxu0 0.0
    %3508 = vmatprep.subr.mxu0 0.0
    %3509 = vmatpush1.msra.mxu0 0.0
    %3510 = vmatprep.subr.mxu0 0.0
    %3511 = vmatpush1.msra.mxu0 0.0
    %3512 = vmatprep.subr.mxu0 0.0
    %3513 = vmatpush1.msra.mxu0 0.0
    %3514 = vmatprep.subr.mxu0 0.0
    %3515 = vmatpush1.msra.mxu0 0.0
    %3516 = vmatprep.subr.mxu0 0.0
    %3517 = vmatpush1.msra.mxu0 0.0
    %3518 = vmatprep.subr.mxu0 0.0
    %3519 = vmatpush1.msra.mxu0 0.0
    %3520 = vmatprep.subr.mxu0 0.0
    %3521 = vmatpush1.msra.mxu0 0.0
    %3522 = vmatprep.subr.mxu0 0.0
    %3523 = vmatpush1.msra.mxu0 0.0
    %3524 = vmatprep.mubr.f32.mxu0 0.0
    %3525 = vmatmul.mubr.f32.gmra.mrb[0].mxu0 %v3449
    %v3526 = vpop.f32.mrb[0].mxu0
    %v3527 = vadd.f32 %v3430, %v3526
    %v3528 = vpop.f32.mrb[0].mxu0
    %3529 = vmatprep.mubr.f32.mxu0 0.0
    %3530 = vmatmul.mubr.f32.gmra.mrb[0].mxu0 %v3452
    %v3531 = vpop.f32.mrb[0].mxu0
    %v3532 = vadd.f32 %v3435, %v3531
    %v3533 = vpop.f32.mrb[0].mxu0
    %3534 = vmatprep.mubr.f32.mxu0 0.0
    %3535 = vmatmul.mubr.f32.gmra.mrb[0].mxu0 %v3455
    %v3536 = vpop.f32.mrb[0].mxu0
    %v3537 = vadd.f32 %v3440, %v3536
    %v3538 = vpop.f32.mrb[0].mxu0
    %3539 = vmatprep.mubr.f32.mxu0 0.0
    %3540 = vmatmul.mubr.f32.gmra.mrb[0].mxu0 %v3458
    %v3541 = vpop.f32.mrb[0].mxu0
    %v3542 = vadd.f32 %v3445, %v3541
    %v3543 = vpop.f32.mrb[0].mxu0
    %3544 = vdwg.mxu0
    %v3545 = vmax.f32 %v3527, 0.0
    %v3546 = vmax.f32 %v3532, 0.0
    %v3547 = vmax.f32 %v3537, 0.0
    %v3548 = vmax.f32 %v3542, 0.0
    %v3549 = vld [vmem:[#allocation67] sm:$0xff]
    %v3550 = vld [vmem:[#allocation67 + $0x8] sm:$0xff]
    %v3551 = vld [vmem:[#allocation69] sm:$0xff]
    %v3552 = vld [vmem:[#allocation69 + $0x8] sm:$0xff]
    %v3553 = vld [vmem:[#allocation70] sm:$0xff]
    %v3554 = vld [vmem:[#allocation70 + $0x8] sm:$0xff]
    %v3555 = vld [vmem:[#allocation72] sm:$0xff]
    %v3556 = vld [vmem:[#allocation73] sm:$0xff]
    %v3557 = vld [vmem:[%s7] sm:$0xff]
    %v3558 = vld [vmem:[%s7 + $0x8] sm:$0xff]
    %v3559 = vld [vmem:[%s7 + $0x10] sm:$0xff]
    %v3560 = vld [vmem:[%s7 + $0x18] sm:$0xff]
    %v3561 = vld [vmem:[#allocation6] sm:$0x3]
    %3563 = vset.pattern.permute.xlu0 0
    %3564 = vperm.xlu0 %3563, %v3551
    %v3565 = vpop.permute.xlu0 %3564
    %3568 = vset.pattern.permute.xlu0 0
    %3569 = vperm.xlu0 %3568, %v3552
    %v3570 = vpop.permute.xlu0 %3569
    %vm3572 = vcmask 261120
    %v3574 = vsel %vm3572, %v3549, 0
    %v3577 = vsel %vm3572, %v3550, 0
    %3579 = vmatprep.subr.mxu0 0.0
    %3580 = vmatpush1.msra.mxu0 %v3545
    %3581 = vmatprep.subr.mxu0 0.0
    %3582 = vmatpush1.msra.mxu0 %v3546
    %3583 = vmatprep.subr.mxu0 0.0
    %3584 = vmatpush1.msra.mxu0 %v3547
    %3585 = vmatprep.subr.mxu0 0.0
    %3586 = vmatpush1.msra.mxu0 %v3548
    %3587 = vmatprep.subr.mxu0 0.0
    %3588 = vmatpush1.msra.mxu0 0.0
    %3589 = vmatprep.subr.mxu0 0.0
    %3590 = vmatpush1.msra.mxu0 0.0
    %3591 = vmatprep.subr.mxu0 0.0
    %3592 = vmatpush1.msra.mxu0 0.0
    %3593 = vmatprep.subr.mxu0 0.0
    %3594 = vmatpush1.msra.mxu0 0.0
    %3595 = vmatprep.subr.mxu0 0.0
    %3596 = vmatpush1.msra.mxu0 0.0
    %3597 = vmatprep.subr.mxu0 0.0
    %3598 = vmatpush1.msra.mxu0 0.0
    %3599 = vmatprep.subr.mxu0 0.0
    %3600 = vmatpush1.msra.mxu0 0.0
    %3601 = vmatprep.subr.mxu0 0.0
    %3602 = vmatpush1.msra.mxu0 0.0
    %3603 = vmatprep.subr.mxu0 0.0
    %3604 = vmatpush1.msra.mxu0 0.0
    %3605 = vmatprep.subr.mxu0 0.0
    %3606 = vmatpush1.msra.mxu0 0.0
    %3607 = vmatprep.subr.mxu0 0.0
    %3608 = vmatpush1.msra.mxu0 0.0
    %3609 = vmatprep.subr.mxu0 0.0
    %3610 = vmatpush1.msra.mxu0 0.0
    %3611 = vmatprep.subr.mxu0 0.0
    %3612 = vmatpush1.msra.mxu0 0.0
    %3613 = vmatprep.subr.mxu0 0.0
    %3614 = vmatpush1.msra.mxu0 0.0
    %3615 = vmatprep.subr.mxu0 0.0
    %3616 = vmatpush1.msra.mxu0 0.0
    %3617 = vmatprep.subr.mxu0 0.0
    %3618 = vmatpush1.msra.mxu0 0.0
    %3619 = vmatprep.subr.mxu0 0.0
    %3620 = vmatpush1.msra.mxu0 0.0
    %3621 = vmatprep.subr.mxu0 0.0
    %3622 = vmatpush1.msra.mxu0 0.0
    %3623 = vmatprep.subr.mxu0 0.0
    %3624 = vmatpush1.msra.mxu0 0.0
    %3625 = vmatprep.subr.mxu0 0.0
    %3626 = vmatpush1.msra.mxu0 0.0
    %3627 = vmatprep.subr.mxu0 0.0
    %3628 = vmatpush1.msra.mxu0 0.0
    %3629 = vmatprep.subr.mxu0 0.0
    %3630 = vmatpush1.msra.mxu0 0.0
    %3631 = vmatprep.subr.mxu0 0.0
    %3632 = vmatpush1.msra.mxu0 0.0
    %3633 = vmatprep.subr.mxu0 0.0
    %3634 = vmatpush1.msra.mxu0 0.0
    %3635 = vmatprep.subr.mxu0 0.0
    %3636 = vmatpush1.msra.mxu0 0.0
    %3637 = vmatprep.subr.mxu0 0.0
    %3638 = vmatpush1.msra.mxu0 0.0
    %3639 = vmatprep.subr.mxu0 0.0
    %3640 = vmatpush1.msra.mxu0 0.0
    %3641 = vmatprep.subr.mxu0 0.0
    %3642 = vmatpush1.msra.mxu0 0.0
    %3643 = vmatprep.mubr.f32.mxu0 0.0
    %3644 = vmatmul.mubr.f32.gmra.mrb[0].mxu0 %v3574
    %v3645 = vpop.f32.mrb[0].mxu0
    %v3646 = vadd.f32 %v3565, %v3645
    %v3647 = vpop.f32.mrb[0].mxu0
    %3648 = vmatprep.mubr.f32.mxu0 0.0
    %3649 = vmatmul.mubr.f32.gmra.mrb[0].mxu0 %v3577
    %v3650 = vpop.f32.mrb[0].mxu0
    %v3651 = vadd.f32 %v3570, %v3650
    %v3652 = vpop.f32.mrb[0].mxu0
    %3653 = vdwg.mxu0
    %v3654 = vtanh.pop %v3646
    %v3655 = vtanh.pop %v3651
    %3657 = vset.pattern.permute.xlu0 0
    %3658 = vperm.xlu0 %3657, %v3553
    %v3659 = vpop.permute.xlu0 %3658
    %3662 = vset.pattern.permute.xlu0 0
    %3663 = vperm.xlu0 %3662, %v3554
    %v3664 = vpop.permute.xlu0 %3663
    %v3666 = vmul.f32 %v3659, %v3654
    %v3667 = vmul.f32 %v3664, %v3655
    %v3668 = vsel %vm3572, %v3666, 0.0
    %v3669 = vsel %vm3572, %v3667, 0.0
    %v3670 = vadd.f32 %v3668, %v3669
    %v3671 = vrot.slane %v3670, 4
    %v3672 = vadd.f32 %v3670, %v3671
    %v3673 = vrot.slane %v3672, 2
    %v3674 = vadd.f32 %v3672, %v3673
    %v3675 = vrot.slane %v3674, 1
    %v3676 = vadd.f32 %v3674, %v3675
    %v3677 = vsel %vm3572, %v3676, -inf
    %3678 = vmax.xlane.f32.xlu0 %v3677
    %v3679 = vpop.xlane.xlu0 %3678
    %v3680 = vsub.f32 %v3676, %v3679
    %v3681 = vmul.f32 %v3680, 1.442695
    %v3682 = vpow.pop %v3681
    %v3684 = vsel %vm3572, %v3682, 0
    %3686 = vmatprep.subr.mxu0 0.0
    %3687 = vmatpush1.msra.mxu0 %v3557
    %3688 = vmatprep.subr.mxu0 0.0
    %3689 = vmatpush1.msra.mxu0 %v3558
    %3690 = vmatprep.subr.mxu0 0.0
    %3691 = vmatpush1.msra.mxu0 %v3559
    %3692 = vmatprep.subr.mxu0 0.0
    %3693 = vmatpush1.msra.mxu0 %v3560
    %3694 = vmatprep.subr.mxu0 0.0
    %3695 = vmatpush1.msra.mxu0 0.0
    %3696 = vmatprep.subr.mxu0 0.0
    %3697 = vmatpush1.msra.mxu0 0.0
    %3698 = vmatprep.subr.mxu0 0.0
    %3699 = vmatpush1.msra.mxu0 0.0
    %3700 = vmatprep.subr.mxu0 0.0
    %3701 = vmatpush1.msra.mxu0 0.0
    %3702 = vmatprep.subr.mxu0 0.0
    %3703 = vmatpush1.msra.mxu0 0.0
    %3704 = vmatprep.subr.mxu0 0.0
    %3705 = vmatpush1.msra.mxu0 0.0
    %3706 = vmatprep.subr.mxu0 0.0
    %3707 = vmatpush1.msra.mxu0 0.0
    %3708 = vmatprep.subr.mxu0 0.0
    %3709 = vmatpush1.msra.mxu0 0.0
    %3710 = vmatprep.subr.mxu0 0.0
    %3711 = vmatpush1.msra.mxu0 0.0
    %3712 = vmatprep.subr.mxu0 0.0
    %3713 = vmatpush1.msra.mxu0 0.0
    %3714 = vmatprep.subr.mxu0 0.0
    %3715 = vmatpush1.msra.mxu0 0.0
    %3716 = vmatprep.subr.mxu0 0.0
    %3717 = vmatpush1.msra.mxu0 0.0
    %3718 = vmatprep.subr.mxu0 0.0
    %3719 = vmatpush1.msra.mxu0 0.0
    %3720 = vmatprep.subr.mxu0 0.0
    %3721 = vmatpush1.msra.mxu0 0.0
    %3722 = vmatprep.subr.mxu0 0.0
    %3723 = vmatpush1.msra.mxu0 0.0
    %3724 = vmatprep.subr.mxu0 0.0
    %3725 = vmatpush1.msra.mxu0 0.0
    %3726 = vmatprep.subr.mxu0 0.0
    %3727 = vmatpush1.msra.mxu0 0.0
    %3728 = vmatprep.subr.mxu0 0.0
    %3729 = vmatpush1.msra.mxu0 0.0
    %3730 = vmatprep.subr.mxu0 0.0
    %3731 = vmatpush1.msra.mxu0 0.0
    %3732 = vmatprep.subr.mxu0 0.0
    %3733 = vmatpush1.msra.mxu0 0.0
    %3734 = vmatprep.subr.mxu0 0.0
    %3735 = vmatpush1.msra.mxu0 0.0
    %3736 = vmatprep.subr.mxu0 0.0
    %3737 = vmatpush1.msra.mxu0 0.0
    %3738 = vmatprep.subr.mxu0 0.0
    %3739 = vmatpush1.msra.mxu0 0.0
    %3740 = vmatprep.subr.mxu0 0.0
    %3741 = vmatpush1.msra.mxu0 0.0
    %3742 = vmatprep.subr.mxu0 0.0
    %3743 = vmatpush1.msra.mxu0 0.0
    %3744 = vmatprep.subr.mxu0 0.0
    %3745 = vmatpush1.msra.mxu0 0.0
    %3746 = vmatprep.subr.mxu0 0.0
    %3747 = vmatpush1.msra.mxu0 0.0
    %3748 = vmatprep.subr.mxu0 0.0
    %3749 = vmatpush1.msra.mxu0 0.0
    %3750 = vmatprep.mubr.f32.mxu0 0.0
    %3751 = vmatmul.mubr.f32.gmra.mrb[0].mxu0 %v3684
    %v3752 = vpop.f32.mrb[0].mxu0
    %v3753 = vadd.f32 0.0, %v3752
    %v3754 = vpop.f32.mrb[0].mxu0
    %3755 = vdwg.mxu0
    %vm3756 = vcmask 15360
    %v3758 = vsel %vm3756, %v3753, 0
    %vm3760 = vcmask 1041408
    %v3762 = vsel %vm3760, %v3561, 0
    %3764 = vmatprep.subr.mxu0 0.0
    %3765 = vmatpush1.msra.mxu0 %v3762
    %3766 = vmatprep.subr.mxu0 0.0
    %3767 = vmatpush1.msra.mxu0 0.0
    %3768 = vmatprep.subr.mxu0 0.0
    %3769 = vmatpush1.msra.mxu0 0.0
    %3770 = vmatprep.subr.mxu0 0.0
    %3771 = vmatpush1.msra.mxu0 0.0
    %3772 = vmatprep.subr.mxu0 0.0
    %3773 = vmatpush1.msra.mxu0 0.0
    %3774 = vmatprep.subr.mxu0 0.0
    %3775 = vmatpush1.msra.mxu0 0.0
    %3776 = vmatprep.subr.mxu0 0.0
    %3777 = vmatpush1.msra.mxu0 0.0
    %3778 = vmatprep.subr.mxu0 0.0
    %3779 = vmatpush1.msra.mxu0 0.0
    %3780 = vmatprep.subr.mxu0 0.0
    %3781 = vmatpush1.msra.mxu0 0.0
    %3782 = vmatprep.subr.mxu0 0.0
    %3783 = vmatpush1.msra.mxu0 0.0
    %3784 = vmatprep.subr.mxu0 0.0
    %3785 = vmatpush1.msra.mxu0 0.0
    %3786 = vmatprep.subr.mxu0 0.0
    %3787 = vmatpush1.msra.mxu0 0.0
    %3788 = vmatprep.subr.mxu0 0.0
    %3789 = vmatpush1.msra.mxu0 0.0
    %3790 = vmatprep.subr.mxu0 0.0
    %3791 = vmatpush1.msra.mxu0 0.0
    %3792 = vmatprep.subr.mxu0 0.0
    %3793 = vmatpush1.msra.mxu0 0.0
    %3794 = vmatprep.subr.mxu0 0.0
    %3795 = vmatpush1.msra.mxu0 0.0
    %3796 = vmatprep.subr.mxu0 0.0
    %3797 = vmatpush1.msra.mxu0 0.0
    %3798 = vmatprep.subr.mxu0 0.0
    %3799 = vmatpush1.msra.mxu0 0.0
    %3800 = vmatprep.subr.mxu0 0.0
    %3801 = vmatpush1.msra.mxu0 0.0
    %3802 = vmatprep.subr.mxu0 0.0
    %3803 = vmatpush1.msra.mxu0 0.0
    %3804 = vmatprep.subr.mxu0 0.0
    %3805 = vmatpush1.msra.mxu0 0.0
    %3806 = vmatprep.subr.mxu0 0.0
    %3807 = vmatpush1.msra.mxu0 0.0
    %3808 = vmatprep.subr.mxu0 0.0
    %3809 = vmatpush1.msra.mxu0 0.0
    %3810 = vmatprep.subr.mxu0 0.0
    %3811 = vmatpush1.msra.mxu0 0.0
    %3812 = vmatprep.subr.mxu0 0.0
    %3813 = vmatpush1.msra.mxu0 0.0
    %3814 = vmatprep.subr.mxu0 0.0
    %3815 = vmatpush1.msra.mxu0 0.0
    %3816 = vmatprep.subr.mxu0 0.0
    %3817 = vmatpush1.msra.mxu0 0.0
    %3818 = vmatprep.subr.mxu0 0.0
    %3819 = vmatpush1.msra.mxu0 0.0
    %3820 = vmatprep.subr.mxu0 0.0
    %3821 = vmatpush1.msra.mxu0 0.0
    %3822 = vmatprep.subr.mxu0 0.0
    %3823 = vmatpush1.msra.mxu0 0.0
    %3824 = vmatprep.subr.mxu0 0.0
    %3825 = vmatpush1.msra.mxu0 0.0
    %3826 = vmatprep.subr.mxu0 0.0
    %3827 = vmatpush1.msra.mxu0 0.0
    %3828 = vmatprep.mubr.f32.mxu0 0.0
    %3829 = vmatmul.mubr.f32.gmra.mrb[0].mxu0 %v3758
    %v3830 = vpop.f32.mrb[0].mxu0
    %v3831 = vadd.f32 0.0, %v3830
    %v3832 = vpop.f32.mrb[0].mxu0
    %3833 = vdwg.mxu0
    %v3834 = vrcp.pop %v3831
    %v3835 = vmul.f32 %v3682, %v3834
    %vm3836 = vcmask 253952
    %3837 = vst.msk [vmem:[%s121] sm:$0x1] %vm3836, %v3835
    %v3838 = vlaneseq
    %v3839 = vshrl.u32 %v3838, 7
    %v3840 = vsub.s32 0, %v3839
    %v3841 = vrot.slane %v3835, %v3840
    %v3842 = vmul.f32 %v3545, %v3841
    %v3843 = vmul.f32 %v3546, %v3841
    %v3844 = vmul.f32 %v3547, %v3841
    %v3845 = vmul.f32 %v3548, %v3841
    %v3847 = vsel %vm3572, %v3842, 0
    %v3850 = vsel %vm3572, %v3843, 0
    %v3853 = vsel %vm3572, %v3844, 0
    %v3856 = vsel %vm3572, %v3845, 0
    %3858 = vmatprep.subr.mxu0 0.0
    %3859 = vmatpush1.msra.mxu0 %v3557
    %3860 = vmatprep.subr.mxu0 0.0
    %3861 = vmatpush1.msra.mxu0 %v3558
    %3862 = vmatprep.subr.mxu0 0.0
    %3863 = vmatpush1.msra.mxu0 %v3559
    %3864 = vmatprep.subr.mxu0 0.0
    %3865 = vmatpush1.msra.mxu0 %v3560
    %3866 = vmatprep.subr.mxu0 0.0
    %3867 = vmatpush1.msra.mxu0 0.0
    %3868 = vmatprep.subr.mxu0 0.0
    %3869 = vmatpush1.msra.mxu0 0.0
    %3870 = vmatprep.subr.mxu0 0.0
    %3871 = vmatpush1.msra.mxu0 0.0
    %3872 = vmatprep.subr.mxu0 0.0
    %3873 = vmatpush1.msra.mxu0 0.0
    %3874 = vmatprep.subr.mxu0 0.0
    %3875 = vmatpush1.msra.mxu0 0.0
    %3876 = vmatprep.subr.mxu0 0.0
    %3877 = vmatpush1.msra.mxu0 0.0
    %3878 = vmatprep.subr.mxu0 0.0
    %3879 = vmatpush1.msra.mxu0 0.0
    %3880 = vmatprep.subr.mxu0 0.0
    %3881 = vmatpush1.msra.mxu0 0.0
    %3882 = vmatprep.subr.mxu0 0.0
    %3883 = vmatpush1.msra.mxu0 0.0
    %3884 = vmatprep.subr.mxu0 0.0
    %3885 = vmatpush1.msra.mxu0 0.0
    %3886 = vmatprep.subr.mxu0 0.0
    %3887 = vmatpush1.msra.mxu0 0.0
    %3888 = vmatprep.subr.mxu0 0.0
    %3889 = vmatpush1.msra.mxu0 0.0
    %3890 = vmatprep.subr.mxu0 0.0
    %3891 = vmatpush1.msra.mxu0 0.0
    %3892 = vmatprep.subr.mxu0 0.0
    %3893 = vmatpush1.msra.mxu0 0.0
    %3894 = vmatprep.subr.mxu0 0.0
    %3895 = vmatpush1.msra.mxu0 0.0
    %3896 = vmatprep.subr.mxu0 0.0
    %3897 = vmatpush1.msra.mxu0 0.0
    %3898 = vmatprep.subr.mxu0 0.0
    %3899 = vmatpush1.msra.mxu0 0.0
    %3900 = vmatprep.subr.mxu0 0.0
    %3901 = vmatpush1.msra.mxu0 0.0
    %3902 = vmatprep.subr.mxu0 0.0
    %3903 = vmatpush1.msra.mxu0 0.0
    %3904 = vmatprep.subr.mxu0 0.0
    %3905 = vmatpush1.msra.mxu0 0.0
    %3906 = vmatprep.subr.mxu0 0.0
    %3907 = vmatpush1.msra.mxu0 0.0
    %3908 = vmatprep.subr.mxu0 0.0
    %3909 = vmatpush1.msra.mxu0 0.0
    %3910 = vmatprep.subr.mxu0 0.0
    %3911 = vmatpush1.msra.mxu0 0.0
    %3912 = vmatprep.subr.mxu0 0.0
    %3913 = vmatpush1.msra.mxu0 0.0
    %3914 = vmatprep.subr.mxu0 0.0
    %3915 = vmatpush1.msra.mxu0 0.0
    %3916 = vmatprep.subr.mxu0 0.0
    %3917 = vmatpush1.msra.mxu0 0.0
    %3918 = vmatprep.subr.mxu0 0.0
    %3919 = vmatpush1.msra.mxu0 0.0
    %3920 = vmatprep.subr.mxu0 0.0
    %3921 = vmatpush1.msra.mxu0 0.0
    %3922 = vmatprep.mubr.f32.mxu0 0.0
    %3923 = vmatmul.mubr.f32.gmra.mrb[0].mxu0 %v3847
    %v3924 = vpop.f32.mrb[0].mxu0
    %v3925 = vadd.f32 0.0, %v3924
    %v3926 = vpop.f32.mrb[0].mxu0
    %3927 = vmatprep.mubr.f32.mxu0 0.0
    %3928 = vmatmul.mubr.f32.gmra.mrb[0].mxu0 %v3850
    %v3929 = vpop.f32.mrb[0].mxu0
    %v3930 = vadd.f32 0.0, %v3929
    %v3931 = vpop.f32.mrb[0].mxu0
    %3932 = vmatprep.mubr.f32.mxu0 0.0
    %3933 = vmatmul.mubr.f32.gmra.mrb[0].mxu0 %v3853
    %v3934 = vpop.f32.mrb[0].mxu0
    %v3935 = vadd.f32 0.0, %v3934
    %v3936 = vpop.f32.mrb[0].mxu0
    %3937 = vmatprep.mubr.f32.mxu0 0.0
    %3938 = vmatmul.mubr.f32.gmra.mrb[0].mxu0 %v3856
    %v3939 = vpop.f32.mrb[0].mxu0
    %v3940 = vadd.f32 0.0, %v3939
    %v3941 = vpop.f32.mrb[0].mxu0
    %3942 = vdwg.mxu0
    %3944 = vset.pattern.permute.xlu0 0
    %3945 = vperm.xlu0 %3944, %v3556
    %v3946 = vpop.permute.xlu0 %3945
    %v3949 = vsel %vm3572, %v3555, 0
    %3951 = vmatprep.subr.mxu0 0.0
    %3952 = vmatpush1.msra.mxu0 %v3925
    %3953 = vmatprep.subr.mxu0 0.0
    %3954 = vmatpush1.msra.mxu0 %v3930
    %3955 = vmatprep.subr.mxu0 0.0
    %3956 = vmatpush1.msra.mxu0 %v3935
    %3957 = vmatprep.subr.mxu0 0.0
    %3958 = vmatpush1.msra.mxu0 %v3940
    %3959 = vmatprep.subr.mxu0 0.0
    %3960 = vmatpush1.msra.mxu0 0.0
    %3961 = vmatprep.subr.mxu0 0.0
    %3962 = vmatpush1.msra.mxu0 0.0
    %3963 = vmatprep.subr.mxu0 0.0
    %3964 = vmatpush1.msra.mxu0 0.0
    %3965 = vmatprep.subr.mxu0 0.0
    %3966 = vmatpush1.msra.mxu0 0.0
    %3967 = vmatprep.subr.mxu0 0.0
    %3968 = vmatpush1.msra.mxu0 0.0
    %3969 = vmatprep.subr.mxu0 0.0
    %3970 = vmatpush1.msra.mxu0 0.0
    %3971 = vmatprep.subr.mxu0 0.0
    %3972 = vmatpush1.msra.mxu0 0.0
    %3973 = vmatprep.subr.mxu0 0.0
    %3974 = vmatpush1.msra.mxu0 0.0
    %3975 = vmatprep.subr.mxu0 0.0
    %3976 = vmatpush1.msra.mxu0 0.0
    %3977 = vmatprep.subr.mxu0 0.0
    %3978 = vmatpush1.msra.mxu0 0.0
    %3979 = vmatprep.subr.mxu0 0.0
    %3980 = vmatpush1.msra.mxu0 0.0
    %3981 = vmatprep.subr.mxu0 0.0
    %3982 = vmatpush1.msra.mxu0 0.0
    %3983 = vmatprep.subr.mxu0 0.0
    %3984 = vmatpush1.msra.mxu0 0.0
    %3985 = vmatprep.subr.mxu0 0.0
    %3986 = vmatpush1.msra.mxu0 0.0
    %3987 = vmatprep.subr.mxu0 0.0
    %3988 = vmatpush1.msra.mxu0 0.0
    %3989 = vmatprep.subr.mxu0 0.0
    %3990 = vmatpush1.msra.mxu0 0.0
    %3991 = vmatprep.subr.mxu0 0.0
    %3992 = vmatpush1.msra.mxu0 0.0
    %3993 = vmatprep.subr.mxu0 0.0
    %3994 = vmatpush1.msra.mxu0 0.0
    %3995 = vmatprep.subr.mxu0 0.0
    %3996 = vmatpush1.msra.mxu0 0.0
    %3997 = vmatprep.subr.mxu0 0.0
    %3998 = vmatpush1.msra.mxu0 0.0
    %3999 = vmatprep.subr.mxu0 0.0
    %4000 = vmatpush1.msra.mxu0 0.0
    %4001 = vmatprep.subr.mxu0 0.0
    %4002 = vmatpush1.msra.mxu0 0.0
    %4003 = vmatprep.subr.mxu0 0.0
    %4004 = vmatpush1.msra.mxu0 0.0
    %4005 = vmatprep.subr.mxu0 0.0
    %4006 = vmatpush1.msra.mxu0 0.0
    %4007 = vmatprep.subr.mxu0 0.0
    %4008 = vmatpush1.msra.mxu0 0.0
    %4009 = vmatprep.subr.mxu0 0.0
    %4010 = vmatpush1.msra.mxu0 0.0
    %4011 = vmatprep.subr.mxu0 0.0
    %4012 = vmatpush1.msra.mxu0 0.0
    %4013 = vmatprep.subr.mxu0 0.0
    %4014 = vmatpush1.msra.mxu0 0.0
    %4015 = vmatprep.mubr.f32.mxu0 0.0
    %4016 = vmatmul.mubr.f32.gmra.mrb[0].mxu0 %v3949
    %v4017 = vpop.f32.mrb[0].mxu0
    %v4018 = vadd.f32 %v3946, %v4017
    %v4019 = vpop.f32.mrb[0].mxu0
    %4020 = vdwg.mxu0
    %4021 = vst.msk [vmem:[%s119] sm:$0xff] %vm3756, %v4018
    // Predicated region
    $region430: #{forward.1} parent=1 // pred_check
      _
    $region431: #{forward.1} parent=1 // pred_check_branch
      %4023 = sbr.rel (0) target = $region433
    $region432: #{forward.1} parent=1 // pred_region
      _
    $region433: #{forward.1} parent=1 // pred_fallthru
      _
    // Predicated region
    $region434: #{forward.1} parent=1 // pred_check
      _
    $region435: #{forward.1} parent=1 // pred_check_branch
      %4025 = sbr.rel (0) target = $region437
    $region436: #{forward.1} parent=1 // pred_region
      _
    $region437: #{forward.1} parent=1 // pred_fallthru
      _
    // Predicated region
    $region438: #{forward.1} parent=1 // pred_check
      _
    $region439: #{forward.1} parent=1 // pred_check_branch
      %4027 = sbr.rel (0) target = $region441
    $region440: #{forward.1} parent=1 // pred_region
      _
    $region441: #{forward.1} parent=1 // pred_fallthru
      _
    // Predicated region
    $region442: #{forward.1} parent=1 // pred_check
      _
    $region443: #{forward.1} parent=1 // pred_check_branch
      %4029 = sbr.rel (0) target = $region445
    $region444: #{forward.1} parent=1 // pred_region
      _
    $region445: #{forward.1} parent=1 // pred_fallthru
      _
    %4030 = vsyncpa [#allocation3], 1
    %4031 = vsyncpa [#allocation5], 1
    %4032 = vsyncpa [#allocation8], 1
    %4033 = vsyncpa [#allocation11], 1
    %4034 = vsyncpa [#allocation14], 1
    %4035 = vsyncpa [#allocation17], 1
    %4036 = vsyncpa [#allocation20], 1
    %4037 = vsyncpa [#allocation23], 1
    %4038 = vsyncpa [#allocation26], 1
    %4039 = vsyncpa [#allocation29], 1
    %4040 = vsyncpa [#allocation32], 1
    %4041 = vsyncpa [#allocation35], 1
    %4042 = vsyncpa [#allocation38], 1
    %4043 = vsyncpa [#allocation41], 1
    %4044 = vsyncpa [#allocation44], 1
    %4045 = vsyncpa [#allocation47], 1
    %4046 = vsyncpa [#allocation50], 1
    %4047 = vsyncpa [#allocation53], 1
    %4048 = vsyncpa [#allocation56], 1
    %4049 = vsyncpa [#allocation59], 1
    %4050 = vsyncpa [#allocation62], 1
    %4051 = vsyncpa [#allocation65], 1
    %4052 = vsyncpa [#allocation68], 1
    %4053 = vsyncpa [#allocation71], 1
    %4054 = vsyncpa [#allocation74], 1

</llo_original>
